<compile_context>
chip_gen: v5e
topology: v5e:2x2
jax: 0.10.0
libtpu: 0.0.40
codegen_flags: <defaults>
</compile_context>

<pallas_src>
import math
from functools import partial

import jax
import jax.numpy as jnp
from jax import lax
from jax.experimental import pallas as pl
from jax.experimental.pallas import tpu as pltpu


# ----------------------------------------------------------------------------
# Per-generation scoped-VMEM budget (v5e/v6e: 128 MiB physical, v7x: 64 MiB)
# ----------------------------------------------------------------------------
_VMEM_LIMIT_CACHE = None


def _vmem_limit():
    global _VMEM_LIMIT_CACHE
    if _VMEM_LIMIT_CACHE is None:
        try:
            phys = pltpu.get_tpu_info().vmem_capacity_bytes
            _VMEM_LIMIT_CACHE = int(min(phys * 3 // 4, 100 * 1024 * 1024))
        except Exception:
            _VMEM_LIMIT_CACHE = 32 * 1024 * 1024  # conservative, works on all gens
    return _VMEM_LIMIT_CACHE


def _cparams(semantics):
    return pltpu.CompilerParams(dimension_semantics=semantics,
                                vmem_limit_bytes=_vmem_limit())


def _tile(dim, pref, quantum):
    """Largest multiple of `quantum` that divides `dim` (capped at `pref`); else full dim."""
    if dim % quantum != 0:
        return dim
    best = quantum
    t = quantum
    cap = min(pref, dim)
    while t <= cap:
        if dim % t == 0:
            best = t
        t += quantum
    return best


# ----------------------------------------------------------------------------
# Tiled linear:  out = relu?(x @ w + b),  bf16 in / bf16 out, f32 accumulation
# ----------------------------------------------------------------------------
def _matmul_kernel(x_ref, w_ref, b_ref, o_ref, acc_ref, *, relu):
    @pl.when(pl.program_id(2) == 0)
    def _():
        acc_ref[...] = jnp.zeros_like(acc_ref)

    acc_ref[...] += jnp.dot(x_ref[...], w_ref[...], preferred_element_type=jnp.float32)

    @pl.when(pl.program_id(2) == pl.num_programs(2) - 1)
    def _():
        y = acc_ref[...] + b_ref[...]
        if relu:
            y = jnp.maximum(y, 0.0)
        o_ref[...] = y.astype(o_ref.dtype)


def linear(x, w, b, relu=False):
    """x: (M, K) bf16, w: (K, N) bf16, b: (N,) f32 -> (M, N) bf16."""
    M, K = x.shape
    N = w.shape[1]
    tm = _tile(M, 256, 16)        # bf16 sublane packing -> multiples of 16
    tn = _tile(N, 512, 128)       # v6e/v7x MXU is 256 wide -> prefer >=256
    tk = _tile(K, 1024, 128)
    grid = (M // tm, N // tn, K // tk)
    return pl.pallas_call(
        partial(_matmul_kernel, relu=relu),
        out_shape=jax.ShapeDtypeStruct((M, N), jnp.bfloat16),
        grid=grid,
        in_specs=[
            pl.BlockSpec((tm, tk), lambda i, j, k: (i, k)),
            pl.BlockSpec((tk, tn), lambda i, j, k: (k, j)),
            pl.BlockSpec((1, tn), lambda i, j, k: (0, j)),
        ],
        out_specs=pl.BlockSpec((tm, tn), lambda i, j, k: (i, j)),
        scratch_shapes=[pltpu.VMEM((tm, tn), jnp.float32)],
        compiler_params=_cparams(("parallel", "parallel", "arbitrary")),
    )(x, w, b.reshape(1, N).astype(jnp.float32))


# ----------------------------------------------------------------------------
# Linear + residual + LayerNorm fused finalize:  out = LN(res + x @ w + b)
# (N is kept whole = d_model so the full row is in the accumulator at finalize)
# ----------------------------------------------------------------------------
def _matmul_add_ln_kernel(x_ref, w_ref, b_ref, res_ref, g_ref, beta_ref, o_ref, acc_ref):
    @pl.when(pl.program_id(1) == 0)
    def _():
        acc_ref[...] = jnp.zeros_like(acc_ref)

    acc_ref[...] += jnp.dot(x_ref[...], w_ref[...], preferred_element_type=jnp.float32)

    @pl.when(pl.program_id(1) == pl.num_programs(1) - 1)
    def _():
        y = acc_ref[...] + b_ref[...] + res_ref[...].astype(jnp.float32)
        mu = jnp.mean(y, axis=-1, keepdims=True)
        var = jnp.mean(jnp.square(y - mu), axis=-1, keepdims=True)
        o_ref[...] = ((y - mu) * lax.rsqrt(var + 1e-5) * g_ref[...]
                      + beta_ref[...]).astype(o_ref.dtype)


def linear_add_ln(x, w, b, res, gamma, beta):
    """x: (M, K) bf16, w: (K, N) bf16, res: (M, N) bf16 -> LN(res + x@w + b): (M, N) bf16."""
    M, K = x.shape
    N = w.shape[1]
    tm = _tile(M, 256, 16)
    tk = _tile(K, 1024, 128)
    grid = (M // tm, K // tk)
    return pl.pallas_call(
        _matmul_add_ln_kernel,
        out_shape=jax.ShapeDtypeStruct((M, N), jnp.bfloat16),
        grid=grid,
        in_specs=[
            pl.BlockSpec((tm, tk), lambda i, k: (i, k)),
            pl.BlockSpec((tk, N), lambda i, k: (k, 0)),
            pl.BlockSpec((1, N), lambda i, k: (0, 0)),
            pl.BlockSpec((tm, N), lambda i, k: (i, 0)),
            pl.BlockSpec((1, N), lambda i, k: (0, 0)),
            pl.BlockSpec((1, N), lambda i, k: (0, 0)),
        ],
        out_specs=pl.BlockSpec((tm, N), lambda i, k: (i, 0)),
        scratch_shapes=[pltpu.VMEM((tm, N), jnp.float32)],
        compiler_params=_cparams(("parallel", "arbitrary")),
    )(x, w, b.reshape(1, N).astype(jnp.float32), res,
      gamma.reshape(1, N).astype(jnp.float32), beta.reshape(1, N).astype(jnp.float32))


# ----------------------------------------------------------------------------
# Fused FFN + residual + LayerNorm: out = LN(x + relu(x@w1+b1)@w2 + b2)
# d_ff tiled as an "arbitrary" accumulation axis (no (M, d_ff) HBM round trip)
# ----------------------------------------------------------------------------
def _ffn_add_ln_kernel(x_ref, w1_ref, b1_ref, w2_ref, b2_ref, g_ref, beta_ref,
                       o_ref, acc_ref):
    @pl.when(pl.program_id(1) == 0)
    def _():
        acc_ref[...] = jnp.zeros_like(acc_ref)

    h = jnp.dot(x_ref[...], w1_ref[...], preferred_element_type=jnp.float32) + b1_ref[...]
    h = jnp.maximum(h, 0.0).astype(jnp.bfloat16)
    acc_ref[...] += jnp.dot(h, w2_ref[...], preferred_element_type=jnp.float32)

    @pl.when(pl.program_id(1) == pl.num_programs(1) - 1)
    def _():
        y = acc_ref[...] + b2_ref[...] + x_ref[...].astype(jnp.float32)
        mu = jnp.mean(y, axis=-1, keepdims=True)
        var = jnp.mean(jnp.square(y - mu), axis=-1, keepdims=True)
        o_ref[...] = ((y - mu) * lax.rsqrt(var + 1e-5) * g_ref[...]
                      + beta_ref[...]).astype(o_ref.dtype)


def ffn_add_ln(x, w1, b1, w2, b2, gamma, beta):
    """x: (M, D) bf16 -> LN(x + FFN(x)): (M, D) bf16."""
    M, D = x.shape
    F = w1.shape[1]
    tm = _tile(M, 256, 16)
    # shrink the d_ff tile on the smaller-VMEM generation (v7x): double-buffered
    # w1/w2 blocks cost ~4*D*tf bytes.
    tf_pref = 512 if _vmem_limit() >= 64 * 1024 * 1024 else 256
    tf = _tile(F, tf_pref, 128)
    grid = (M // tm, F // tf)
    return pl.pallas_call(
        _ffn_add_ln_kernel,
        out_shape=jax.ShapeDtypeStruct((M, D), jnp.bfloat16),
        grid=grid,
        in_specs=[
            pl.BlockSpec((tm, D), lambda i, f: (i, 0)),
            pl.BlockSpec((D, tf), lambda i, f: (0, f)),
            pl.BlockSpec((1, tf), lambda i, f: (0, f)),
            pl.BlockSpec((tf, D), lambda i, f: (f, 0)),
            pl.BlockSpec((1, D), lambda i, f: (0, 0)),
            pl.BlockSpec((1, D), lambda i, f: (0, 0)),
            pl.BlockSpec((1, D), lambda i, f: (0, 0)),
        ],
        out_specs=pl.BlockSpec((tm, D), lambda i, f: (i, 0)),
        scratch_shapes=[pltpu.VMEM((tm, D), jnp.float32)],
        compiler_params=_cparams(("parallel", "arbitrary")),
    )(x, w1, b1.reshape(1, F).astype(jnp.float32), w2,
      b2.reshape(1, D).astype(jnp.float32),
      gamma.reshape(1, D).astype(jnp.float32), beta.reshape(1, D).astype(jnp.float32))


# ----------------------------------------------------------------------------
# Multi-head attention: flash/online softmax over Skv tiles, per-head scratch,
# per-head lane stores (no concat), 1/sqrt(dh) pre-folded into the Q projection.
# ----------------------------------------------------------------------------
def _make_attn_kernel(num_heads, d_model, has_bias):
    dh = d_model // num_heads

    def kernel(*refs):
        if has_bias:
            q_ref, k_ref, v_ref, bias_ref, o_ref, m_ref, l_ref, acc_ref = refs
        else:
            q_ref, k_ref, v_ref, o_ref, m_ref, l_ref, acc_ref = refs
            bias_ref = None

        ki = pl.program_id(2)

        @pl.when(ki == 0)
        def _():
            m_ref[...] = jnp.full_like(m_ref, -jnp.inf)
            l_ref[...] = jnp.zeros_like(l_ref)
            acc_ref[...] = jnp.zeros_like(acc_ref)

        q_all = q_ref[0]   # (tq,  d_model) bf16  (scale folded into Wq at init)
        k_all = k_ref[0]   # (tkv, d_model) bf16
        v_all = v_ref[0]   # (tkv, d_model) bf16
        if has_bias:
            bias = bias_ref[...]
            if bias.ndim == 3:
                bias = bias[0]
            bias = bias.astype(jnp.float32)            # (tq, tkv)
        else:
            bias = None

        for h in range(num_heads):
            # TODO(synk): when dh < 128 these lane slices relayout; group heads to a
            # 128-lane-wide block per MXU call for full lane alignment.
            qh = q_all[:, h * dh:(h + 1) * dh]
            kh = k_all[:, h * dh:(h + 1) * dh]
            vh = v_all[:, h * dh:(h + 1) * dh]
            s = jnp.dot(qh, kh.T, preferred_element_type=jnp.float32)   # (tq, tkv)
            if bias is not None:
                s = s + bias
            m_prev = m_ref[h]
            m_new = jnp.maximum(m_prev, jnp.max(s, axis=-1, keepdims=True))
            a = jnp.exp(m_prev - m_new)
            p = jnp.exp(s - m_new)
            l_ref[h] = a * l_ref[h] + jnp.sum(p, axis=-1, keepdims=True)
            acc_ref[h] = a * acc_ref[h] + jnp.dot(
                p.astype(v_all.dtype), vh, preferred_element_type=jnp.float32)
            m_ref[h] = m_new

        @pl.when(ki == pl.num_programs(2) - 1)
        def _():
            for h in range(num_heads):
                inv = pl.reciprocal(l_ref[h], approx=True)
                o_ref[0, :, h * dh:(h + 1) * dh] = (acc_ref[h] * inv).astype(o_ref.dtype)

    return kernel


def attention(q, k, v, q_col, k_col, v_col, bias, num_heads, d_model):
    """q/k/v: (B, S, n*d_model) bf16 (possibly the same packed array); *_col selects the
    d_model-wide column block.  bias: None, (Sq, Skv) or (B, Sq, Skv) additive f32.
    Returns (B, Sq, d_model) bf16."""
    B, Sq = q.shape[0], q.shape[1]
    Skv = k.shape[1]
    dh = d_model // num_heads
    tq = _tile(Sq, 256, 16)            # modest q tile -> low vreg/VMEM pressure
    tkv = _tile(Skv, 512, 128)         # K/V streamed in tiles (flash) for long Skv
    grid = (B, Sq // tq, Skv // tkv)

    in_specs = [
        pl.BlockSpec((1, tq, d_model), lambda b, qi, ki, c=q_col: (b, qi, c)),
        pl.BlockSpec((1, tkv, d_model), lambda b, qi, ki, c=k_col: (b, ki, c)),
        pl.BlockSpec((1, tkv, d_model), lambda b, qi, ki, c=v_col: (b, ki, c)),
    ]
    args = [q, k, v]
    if bias is not None:
        bias = bias.astype(jnp.float32)
        if bias.ndim == 2:
            in_specs.append(pl.BlockSpec((tq, tkv), lambda b, qi, ki: (qi, ki)))
        else:
            in_specs.append(pl.BlockSpec((1, tq, tkv), lambda b, qi, ki: (b, qi, ki)))
        args.append(bias)

    kernel = _make_attn_kernel(num_heads, d_model, bias is not None)
    return pl.pallas_call(
        kernel,
        out_shape=jax.ShapeDtypeStruct((B, Sq, d_model), jnp.bfloat16),
        grid=grid,
        in_specs=in_specs,
        out_specs=pl.BlockSpec((1, tq, d_model), lambda b, qi, ki: (b, qi, 0)),
        scratch_shapes=[
            pltpu.VMEM((num_heads, tq, 1), jnp.float32),    # running max
            pltpu.VMEM((num_heads, tq, 1), jnp.float32),    # running sum
            pltpu.VMEM((num_heads, tq, dh), jnp.float32),   # running output
        ],
        compiler_params=_cparams(("parallel", "parallel", "arbitrary")),
    )(*args)


# ----------------------------------------------------------------------------
# Per-token classifier + softmax (matches fc_out -> Softmax(dim=-1)); exact divide.
# ----------------------------------------------------------------------------
def _cls_softmax_kernel(x_ref, w_ref, b_ref, o_ref):
    logits = jnp.dot(x_ref[...].astype(jnp.float32), w_ref[...],
                     preferred_element_type=jnp.float32) + b_ref[...]
    m = jnp.max(logits, axis=-1, keepdims=True)
    e = jnp.exp(logits - m)
    o_ref[...] = e / jnp.sum(e, axis=-1, keepdims=True)


def classify_softmax(x, w, b):
    """x: (M, D) bf16, w: (D, C) f32, b: (C,) f32 -> softmax probabilities (M, C) f32."""
    M, D = x.shape
    C = w.shape[1]
    tm = _tile(M, 512, 16)
    return pl.pallas_call(
        _cls_softmax_kernel,
        out_shape=jax.ShapeDtypeStruct((M, C), jnp.float32),
        grid=(M // tm,),
        in_specs=[
            pl.BlockSpec((tm, D), lambda i: (i, 0)),
            pl.BlockSpec((D, C), lambda i: (0, 0)),
            pl.BlockSpec((1, C), lambda i: (0, 0)),
        ],
        out_specs=pl.BlockSpec((tm, C), lambda i: (i, 0)),
        compiler_params=_cparams(("parallel",)),
    )(x, w.astype(jnp.float32), b.reshape(1, C).astype(jnp.float32))


# ----------------------------------------------------------------------------
# Model composition (plain-JAX glue around the Pallas kernels)
# ----------------------------------------------------------------------------
def sinusoidal_pe(seq_len, d_model):
    pos = jnp.arange(seq_len, dtype=jnp.float32)[:, None]
    div = jnp.exp(jnp.arange(0, d_model, 2, dtype=jnp.float32)
                  * (-math.log(10000.0) / d_model))
    pe = jnp.zeros((seq_len, d_model), jnp.float32)
    pe = pe.at[:, 0::2].set(jnp.sin(pos * div))
    pe = pe.at[:, 1::2].set(jnp.cos(pos * div))
    return pe  # (S, D)


def attn_sublayer_self(x, p, num_heads, bias, ln_g, ln_b):
    """Returns LN(x + SelfAttn(x) @ Wo + bo) as (B*S, D) bf16."""
    B, S, D = x.shape
    x2 = x.reshape(B * S, D)
    qkv = linear(x2, p["wqkv"], p["bqkv"]).reshape(B, S, 3 * D)
    if D % 128 == 0:
        # lane-aligned column blocks of the packed QKV: no over-fetch, no XLA split
        o = attention(qkv, qkv, qkv, 0, 1, 2, bias, num_heads, D)
    else:
        q, k, v = jnp.split(qkv, 3, axis=-1)
        o = attention(q, k, v, 0, 0, 0, bias, num_heads, D)
    return linear_add_ln(o.reshape(B * S, D), p["wo"], p["bo"], x2, ln_g, ln_b)


def attn_sublayer_cross(xq, x_kv, p, num_heads, ln_g, ln_b):
    """Returns LN(xq + CrossAttn(xq, x_kv) @ Wo + bo) as (B*Sq, D) bf16."""
    B, Sq, D = xq.shape
    Skv = x_kv.shape[1]
    xq2 = xq.reshape(B * Sq, D)
    q = linear(xq2, p["wq"], p["bq"]).reshape(B, Sq, D)
    kv = linear(x_kv.reshape(B * Skv, D), p["wkv"], p["bkv"]).reshape(B, Skv, 2 * D)
    if D % 128 == 0:
        o = attention(q, kv, kv, 0, 0, 1, None, num_heads, D)
    else:
        k, v = jnp.split(kv, 2, axis=-1)
        o = attention(q, k, v, 0, 0, 0, None, num_heads, D)
    return linear_add_ln(o.reshape(B * Sq, D), p["wo"], p["bo"], xq2, ln_g, ln_b)


def encoder_layer(x, p, num_heads):
    B, S, D = x.shape
    x1 = attn_sublayer_self(x, p["attn"], num_heads, None, p["ln1_g"], p["ln1_b"])
    x2 = ffn_add_ln(x1, p["w1"], p["b1"], p["w2"], p["b2"], p["ln2_g"], p["ln2_b"])
    return x2.reshape(B, S, D)


def decoder_layer(y, enc_out, p, num_heads, self_bias):
    B, S, D = y.shape
    y1 = attn_sublayer_self(y, p["self_attn"], num_heads, self_bias, p["ln1_g"], p["ln1_b"])
    y2 = attn_sublayer_cross(y1.reshape(B, S, D), enc_out, p["cross_attn"],
                             num_heads, p["ln2_g"], p["ln2_b"])
    y3 = ffn_add_ln(y2, p["w1"], p["b1"], p["w2"], p["b2"], p["ln3_g"], p["ln3_b"])
    return y3.reshape(B, S, D)


def transformer_forward(params, src, trg, mask, d_model, num_heads):
    B, S_src = src.shape
    S_trg = trg.shape[1]

    # Embedding gather + positional encoding (sqrt(d_model) scale folded into the table).
    src_e = (jnp.take(params["emb"], src, axis=0)
             + sinusoidal_pe(S_src, d_model)).astype(jnp.bfloat16)
    trg_e = (jnp.take(params["emb"], trg, axis=0)
             + sinusoidal_pe(S_trg, d_model)).astype(jnp.bfloat16)

    if mask is not None:
        # Additive bias, kept 2-D (S,S) when possible (shared across batch & heads).
        # TODO(synk): for a pure causal mask, generate the bias in-kernel via
        # broadcasted_iota instead of DMAing an (S,S) f32 block per grid step.
        self_bias = (1.0 - mask.astype(jnp.float32)) * jnp.float32(-1e9)
    else:
        self_bias = None

    x = src_e
    for lp in params["enc"]:
        x = encoder_layer(x, lp, num_heads)
    enc_out = x

    y = trg_e
    for lp in params["dec"]:
        y = decoder_layer(y, enc_out, lp, num_heads, self_bias)

    # fc_out + Softmax(dim=-1): per-token class probabilities, like the reference module.
    probs = classify_softmax(y.reshape(B * S_trg, d_model), params["fc_w"], params["fc_b"])
    return probs.reshape(B, S_trg, -1)


# ----------------------------------------------------------------------------
# Deterministic parameter init (weights bf16 for MXU, biases / LN params f32)
# ----------------------------------------------------------------------------
def init_params(key, vocab_size, d_model, num_heads, d_ff, n_layers, num_classes):
    kit = iter(jax.random.split(key, 1024))
    q_scale = 1.0 / math.sqrt(d_model // num_heads)

    def w(din, dout, dtype=jnp.bfloat16):
        return (jax.random.normal(next(kit), (din, dout), jnp.float32) * 0.02).astype(dtype)

    def zeros(n):
        return jnp.zeros((n,), jnp.float32)

    def ones(n):
        return jnp.ones((n,), jnp.float32)

    def self_attn_block():
        wqkv = jax.random.normal(next(kit), (d_model, 3 * d_model), jnp.float32) * 0.02
        # 1/sqrt(dh) folded into the Q columns -> no per-score scaling in the kernel.
        wqkv = wqkv.at[:, :d_model].multiply(q_scale)
        return {"wqkv": wqkv.astype(jnp.bfloat16), "bqkv": zeros(3 * d_model),
                "wo": w(d_model, d_model), "bo": zeros(d_model)}

    def cross_attn_block():
        wq = jax.random.normal(next(kit), (d_model, d_model), jnp.float32) * 0.02 * q_scale
        return {"wq": wq.astype(jnp.bfloat16), "bq": zeros(d_model),
                "wkv": w(d_model, 2 * d_model), "bkv": zeros(2 * d_model),
                "wo": w(d_model, d_model), "bo": zeros(d_model)}

    def enc_layer_p():
        return {"attn": self_attn_block(),
                "w1": w(d_model, d_ff), "b1": zeros(d_ff),
                "w2": w(d_ff, d_model), "b2": zeros(d_model),
                "ln1_g": ones(d_model), "ln1_b": zeros(d_model),
                "ln2_g": ones(d_model), "ln2_b": zeros(d_model)}

    def dec_layer_p():
        return {"self_attn": self_attn_block(),
                "cross_attn": cross_attn_block(),
                "w1": w(d_model, d_ff), "b1": zeros(d_ff),
                "w2": w(d_ff, d_model), "b2": zeros(d_model),
                "ln1_g": ones(d_model), "ln1_b": zeros(d_model),
                "ln2_g": ones(d_model), "ln2_b": zeros(d_model),
                "ln3_g": ones(d_model), "ln3_b": zeros(d_model)}

    emb = jax.random.normal(next(kit), (vocab_size, d_model), jnp.float32) * 0.02
    return {
        "emb": emb * math.sqrt(d_model),   # InputEmbedder's sqrt(d_model) scale folded in
        "enc": [enc_layer_p() for _ in range(n_layers)],
        "dec": [dec_layer_p() for _ in range(n_layers)],
        "fc_w": w(d_model, num_classes, dtype=jnp.float32),
        "fc_b": zeros(num_classes),
    }


# ----------------------------------------------------------------------------
if __name__ == "__main__":
    vocab_size, d_model, num_heads, d_ff, n_layers, num_classes = 100, 128, 4, 256, 2, 3
    B, S = 2, 8

    key = jax.random.PRNGKey(0)
    k_src, k_trg, k_params = jax.random.split(key, 3)
    src = jax.random.randint(k_src, (B, S), 0, vocab_size)
    trg = jax.random.randint(k_trg, (B, S), 0, vocab_size)
    params = init_params(k_params, vocab_size, d_model, num_heads, d_ff, n_layers, num_classes)

    fwd = jax.jit(transformer_forward, static_argnums=(4, 5))

    # mask=None path
    probs = fwd(params, src, trg, None, d_model, num_heads)
    jax.block_until_ready(probs)
    assert probs.shape == (B, S, num_classes)
    assert bool(jnp.all(jnp.isfinite(probs)))
    assert bool(jnp.allclose(jnp.sum(probs, axis=-1), 1.0, atol=1e-3))

    # causal decoder self-attention mask path (mask tensor -> additive bias)
    causal = jnp.tril(jnp.ones((S, S), jnp.float32))
    probs_masked = fwd(params, src, trg, causal, d_model, num_heads)
    jax.block_until_ready(probs_masked)
    assert probs_masked.shape == (B, S, num_classes)
    assert bool(jnp.all(jnp.isfinite(probs_masked)))
    assert bool(jnp.allclose(jnp.sum(probs_masked, axis=-1), 1.0, atol=1e-3))

    print("KERNEL_OK")
</pallas_src>

<mosaic_0001>
module attributes {stable_mosaic.version = 11 : i64} {
  func.func @_matmul_kernel(%arg0: i32, %arg1: i32, %arg2: i32, %arg3: memref<16x128xbf16, #tpu.memory_space<vmem>>, %arg4: memref<128x384xbf16, #tpu.memory_space<vmem>>, %arg5: memref<1x384xf32, #tpu.memory_space<vmem>>, %arg6: memref<16x384xbf16, #tpu.memory_space<vmem>>, %arg7: memref<16x384xf32, #tpu.memory_space<vmem>>) attributes {dimension_semantics = [#tpu.dimension_semantics<parallel>, #tpu.dimension_semantics<parallel>, #tpu.dimension_semantics<arbitrary>], iteration_bounds = array<i64: 1, 1, 1>, scalar_prefetch = 0 : i64, scratch_operands = 1 : i64, tpu.core_type = #tpu.core_type<tc>, window_params = [{transform_indices = @transform_0, window_bounds = array<i64: 16, 128>}, {transform_indices = @transform_1, window_bounds = array<i64: 128, 384>}, {transform_indices = @transform_2, window_bounds = array<i64: 1, 384>}, {transform_indices = @transform_3, window_bounds = array<i64: 16, 384>}]} {
    %c0_i32 = arith.constant 0 : i32
    %0 = arith.cmpi eq, %arg2, %c0_i32 : i32
    %1 = arith.extui %0 : i1 to i32
    %c0_i32_0 = arith.constant 0 : i32
    %2 = arith.cmpi ne, %1, %c0_i32_0 : i32
    scf.if %2 {
      %cst_10 = arith.constant 0.000000e+00 : f32
      %12 = vector.broadcast %cst_10 : f32 to vector<16x384xf32>
      %c0_11 = arith.constant 0 : index
      %c0_12 = arith.constant 0 : index
      %13 = vector.load %arg7[%c0_11, %c0_12] : memref<16x384xf32, #tpu.memory_space<vmem>>, vector<16x384xf32>
      tpu.vector_store %arg7[%c0_11, %c0_12], %12 {strides = array<i32>} : memref<16x384xf32, #tpu.memory_space<vmem>>, vector<16x384xf32>,
    } else {
    }
    %c0 = arith.constant 0 : index
    %c0_1 = arith.constant 0 : index
    %3 = vector.load %arg7[%c0, %c0_1] : memref<16x384xf32, #tpu.memory_space<vmem>>, vector<16x384xf32>
    %c0_2 = arith.constant 0 : index
    %c0_3 = arith.constant 0 : index
    %4 = vector.load %arg3[%c0_2, %c0_3] : memref<16x128xbf16, #tpu.memory_space<vmem>>, vector<16x128xbf16>
    %c0_4 = arith.constant 0 : index
    %c0_5 = arith.constant 0 : index
    %5 = vector.load %arg4[%c0_4, %c0_5] : memref<128x384xbf16, #tpu.memory_space<vmem>>, vector<128x384xbf16>
    %cst = arith.constant dense<0.000000e+00> : vector<16x384xf32>
    %6 = tpu.matmul %4, %5, %cst {dimension_numbers = #tpu.dot_dimension_numbers<[1], [0], [0], [1], [0, 0, 1, 1], [], []>} : vector<16x128xbf16>, vector<128x384xbf16>, vector<16x384xf32> -> vector<16x384xf32>
    %7 = arith.addf %3, %6 : vector<16x384xf32>
    %c0_6 = arith.constant 0 : index
    %c0_7 = arith.constant 0 : index
    %8 = vector.load %arg7[%c0_6, %c0_7] : memref<16x384xf32, #tpu.memory_space<vmem>>, vector<16x384xf32>
    tpu.vector_store %arg7[%c0_6, %c0_7], %7 {strides = array<i32>} : memref<16x384xf32, #tpu.memory_space<vmem>>, vector<16x384xf32>,
    %c0_i32_8 = arith.constant 0 : i32
    %9 = arith.cmpi eq, %arg2, %c0_i32_8 : i32
    %10 = arith.extui %9 : i1 to i32
    %c0_i32_9 = arith.constant 0 : i32
    %11 = arith.cmpi ne, %10, %c0_i32_9 : i32
    scf.if %11 {
      %c0_10 = arith.constant 0 : index
      %c0_11 = arith.constant 0 : index
      %12 = vector.load %arg7[%c0_10, %c0_11] : memref<16x384xf32, #tpu.memory_space<vmem>>, vector<16x384xf32>
      %c0_12 = arith.constant 0 : index
      %c0_13 = arith.constant 0 : index
      %13 = vector.load %arg5[%c0_12, %c0_13] : memref<1x384xf32, #tpu.memory_space<vmem>>, vector<1x384xf32>
      %14 = vector.broadcast %13 : vector<1x384xf32> to vector<16x384xf32>
      %15 = arith.addf %12, %14 : vector<16x384xf32>
      %16 = arith.truncf %15 : vector<16x384xf32> to vector<16x384xbf16>
      %c0_14 = arith.constant 0 : index
      %c0_15 = arith.constant 0 : index
      %17 = vector.load %arg6[%c0_14, %c0_15] : memref<16x384xbf16, #tpu.memory_space<vmem>>, vector<16x384xbf16>
      tpu.vector_store %arg6[%c0_14, %c0_15], %16 {strides = array<i32>} : memref<16x384xbf16, #tpu.memory_space<vmem>>, vector<16x384xbf16>,
    } else {
    }
    return
  }
  func.func @transform_0(%arg0: i32, %arg1: i32, %arg2: i32) -> (i32, i32) {
    %c0_i32 = arith.constant 0 : i32
    return %arg0, %arg2 : i32, i32
  }
  func.func @transform_1(%arg0: i32, %arg1: i32, %arg2: i32) -> (i32, i32) {
    %c0_i32 = arith.constant 0 : i32
    return %arg2, %arg1 : i32, i32
  }
  func.func @transform_2(%arg0: i32, %arg1: i32, %arg2: i32) -> (i32, i32) {
    %c0_i32 = arith.constant 0 : i32
    %c0_i32_0 = arith.constant 0 : i32
    return %c0_i32, %arg1 : i32, i32
  }
  func.func @transform_3(%arg0: i32, %arg1: i32, %arg2: i32) -> (i32, i32) {
    %c0_i32 = arith.constant 0 : i32
    return %arg0, %arg1 : i32, i32
  }
}

module attributes {stable_mosaic.version = 11 : i64} {
  func.func @kernel(%arg0: i32, %arg1: i32, %arg2: i32, %arg3: memref<1x8x128xbf16, #tpu.memory_space<vmem>>, %arg4: memref<1x8x128xbf16, #tpu.memory_space<vmem>>, %arg5: memref<1x8x128xbf16, #tpu.memory_space<vmem>>, %arg6: memref<1x8x128xbf16, #tpu.memory_space<vmem>>, %arg7: memref<4x8x1xf32, #tpu.memory_space<vmem>>, %arg8: memref<4x8x1xf32, #tpu.memory_space<vmem>>, %arg9: memref<4x8x32xf32, #tpu.memory_space<vmem>>) attributes {dimension_semantics = [#tpu.dimension_semantics<parallel>, #tpu.dimension_semantics<parallel>, #tpu.dimension_semantics<arbitrary>], iteration_bounds = array<i64: 2, 1, 1>, scalar_prefetch = 0 : i64, scratch_operands = 3 : i64, tpu.core_type = #tpu.core_type<tc>, window_params = [{transform_indices = @transform_0, window_bounds = array<i64: 1, 8, 128>}, {transform_indices = @transform_1, window_bounds = array<i64: 1, 8, 128>}, {transform_indices = @transform_2, window_bounds = array<i64: 1, 8, 128>}, {transform_indices = @transform_3, window_bounds = array<i64: 1, 8, 128>}]} {
    %c0_i32 = arith.constant 0 : i32
    %0 = arith.cmpi eq, %arg2, %c0_i32 : i32
    %1 = arith.extui %0 : i1 to i32
    %c0_i32_0 = arith.constant 0 : i32
    %2 = arith.cmpi ne, %1, %c0_i32_0 : i32
    scf.if %2 {
      %cst_95 = arith.constant 0xFF800000 : f32
      %160 = vector.broadcast %cst_95 : f32 to vector<4x8x1xf32>
      %c0_96 = arith.constant 0 : index
      %c0_97 = arith.constant 0 : index
      %c0_98 = arith.constant 0 : index
      %161 = vector.load %arg7[%c0_96, %c0_97, %c0_98] : memref<4x8x1xf32, #tpu.memory_space<vmem>>, vector<4x8x1xf32>
      tpu.vector_store %arg7[%c0_96, %c0_97, %c0_98], %160 {strides = array<i32>} : memref<4x8x1xf32, #tpu.memory_space<vmem>>, vector<4x8x1xf32>,
      %cst_99 = arith.constant 0.000000e+00 : f32
      %162 = vector.broadcast %cst_99 : f32 to vector<4x8x1xf32>
      %c0_100 = arith.constant 0 : index
      %c0_101 = arith.constant 0 : index
      %c0_102 = arith.constant 0 : index
      %163 = vector.load %arg8[%c0_100, %c0_101, %c0_102] : memref<4x8x1xf32, #tpu.memory_space<vmem>>, vector<4x8x1xf32>
      tpu.vector_store %arg8[%c0_100, %c0_101, %c0_102], %162 {strides = array<i32>} : memref<4x8x1xf32, #tpu.memory_space<vmem>>, vector<4x8x1xf32>,
      %cst_103 = arith.constant 0.000000e+00 : f32
      %164 = vector.broadcast %cst_103 : f32 to vector<4x8x32xf32>
      %c0_104 = arith.constant 0 : index
      %c0_105 = arith.constant 0 : index
      %c0_106 = arith.constant 0 : index
      %165 = vector.load %arg9[%c0_104, %c0_105, %c0_106] : memref<4x8x32xf32, #tpu.memory_space<vmem>>, vector<4x8x32xf32>
      tpu.vector_store %arg9[%c0_104, %c0_105, %c0_106], %164 {strides = array<i32>} : memref<4x8x32xf32, #tpu.memory_space<vmem>>, vector<4x8x32xf32>,
    } else {
    }
    %c0 = arith.constant 0 : index
    %c0_1 = arith.constant 0 : index
    %c0_2 = arith.constant 0 : index
    %3 = vector.load %arg3[%c0, %c0_1, %c0_2] : memref<1x8x128xbf16, #tpu.memory_space<vmem>>, vector<1x8x128xbf16>
    %4 = vector.shape_cast %3 : vector<1x8x128xbf16> to vector<8x128xbf16>
    %c0_3 = arith.constant 0 : index
    %c0_4 = arith.constant 0 : index
    %c0_5 = arith.constant 0 : index
    %5 = vector.load %arg4[%c0_3, %c0_4, %c0_5] : memref<1x8x128xbf16, #tpu.memory_space<vmem>>, vector<1x8x128xbf16>
    %6 = vector.shape_cast %5 : vector<1x8x128xbf16> to vector<8x128xbf16>
    %c0_6 = arith.constant 0 : index
    %c0_7 = arith.constant 0 : index
    %c0_8 = arith.constant 0 : index
    %7 = vector.load %arg5[%c0_6, %c0_7, %c0_8] : memref<1x8x128xbf16, #tpu.memory_space<vmem>>, vector<1x8x128xbf16>
    %8 = vector.shape_cast %7 : vector<1x8x128xbf16> to vector<8x128xbf16>
    %9 = vector.extract_strided_slice %4 {offsets = [0, 0], sizes = [8, 32], strides = [1, 1]} : vector<8x128xbf16> to vector<8x32xbf16>
    %10 = vector.extract_strided_slice %6 {offsets = [0, 0], sizes = [8, 32], strides = [1, 1]} : vector<8x128xbf16> to vector<8x32xbf16>
    %11 = vector.extract_strided_slice %8 {offsets = [0, 0], sizes = [8, 32], strides = [1, 1]} : vector<8x128xbf16> to vector<8x32xbf16>
    %12 = tpu.transpose %10, [1, 0] : vector<8x32xbf16> -> vector<32x8xbf16>
    %cst = arith.constant dense<0.000000e+00> : vector<8x8xf32>
    %13 = tpu.matmul %9, %12, %cst {dimension_numbers = #tpu.dot_dimension_numbers<[1], [0], [0], [1], [0, 0, 1, 1], [], []>} : vector<8x32xbf16>, vector<32x8xbf16>, vector<8x8xf32> -> vector<8x8xf32>
    %c0_9 = arith.constant 0 : index
    %c0_10 = arith.constant 0 : index
    %c0_11 = arith.constant 0 : index
    %14 = vector.load %arg7[%c0_9, %c0_10, %c0_11] : memref<4x8x1xf32, #tpu.memory_space<vmem>>, vector<1x8x1xf32>
    %15 = vector.shape_cast %14 : vector<1x8x1xf32> to vector<8x1xf32>
    %cst_12 = arith.constant dense<0xFF800000> : vector<8xf32>
    %16 = vector.multi_reduction <maximumf>, %13, %cst_12 [1] : vector<8x8xf32> to vector<8xf32>
    %17 = vector.shape_cast %16 : vector<8xf32> to vector<8x1xf32>
    %18 = arith.maximumf %15, %17 : vector<8x1xf32>
    %19 = arith.subf %15, %18 : vector<8x1xf32>
    %20 = math.exp %19 : vector<8x1xf32>
    %21 = vector.broadcast %18 : vector<8x1xf32> to vector<8x8xf32>
    %22 = arith.subf %13, %21 : vector<8x8xf32>
    %23 = math.exp %22 : vector<8x8xf32>
    %c0_13 = arith.constant 0 : index
    %c0_14 = arith.constant 0 : index
    %c0_15 = arith.constant 0 : index
    %24 = vector.load %arg8[%c0_13, %c0_14, %c0_15] : memref<4x8x1xf32, #tpu.memory_space<vmem>>, vector<1x8x1xf32>
    %25 = vector.shape_cast %24 : vector<1x8x1xf32> to vector<8x1xf32>
    %26 = arith.mulf %20, %25 : vector<8x1xf32>
    %cst_16 = arith.constant dense<0.000000e+00> : vector<8xf32>
    %27 = vector.multi_reduction <add>, %23, %cst_16 [1] : vector<8x8xf32> to vector<8xf32>
    %28 = vector.shape_cast %27 : vector<8xf32> to vector<8x1xf32>
    %29 = arith.addf %26, %28 : vector<8x1xf32>
    %c0_17 = arith.constant 0 : index
    %c0_18 = arith.constant 0 : index
    %c0_19 = arith.constant 0 : index
    %30 = vector.load %arg8[%c0_17, %c0_18, %c0_19] : memref<4x8x1xf32, #tpu.memory_space<vmem>>, vector<1x8x1xf32>
    %31 = vector.shape_cast %30 : vector<1x8x1xf32> to vector<8x1xf32>
    %32 = vector.shape_cast %29 : vector<8x1xf32> to vector<1x8x1xf32>
    tpu.vector_store %arg8[%c0_17, %c0_18, %c0_19], %32 {strides = array<i32>} : memref<4x8x1xf32, #tpu.memory_space<vmem>>, vector<1x8x1xf32>,
    %c0_20 = arith.constant 0 : index
    %c0_21 = arith.constant 0 : index
    %c0_22 = arith.constant 0 : index
    %33 = vector.load %arg9[%c0_20, %c0_21, %c0_22] : memref<4x8x32xf32, #tpu.memory_space<vmem>>, vector<1x8x32xf32>
    %34 = vector.shape_cast %33 : vector<1x8x32xf32> to vector<8x32xf32>
    %35 = vector.broadcast %20 : vector<8x1xf32> to vector<8x32xf32>
    %36 = arith.mulf %35, %34 : vector<8x32xf32>
    %37 = arith.truncf %23 : vector<8x8xf32> to vector<8x8xbf16>
    %cst_23 = arith.constant dense<0.000000e+00> : vector<8x32xf32>
    %38 = tpu.matmul %37, %11, %cst_23 {dimension_numbers = #tpu.dot_dimension_numbers<[1], [0], [0], [1], [0, 0, 1, 1], [], []>} : vector<8x8xbf16>, vector<8x32xbf16>, vector<8x32xf32> -> vector<8x32xf32>
    %39 = arith.addf %36, %38 : vector<8x32xf32>
    %c0_24 = arith.constant 0 : index
    %c0_25 = arith.constant 0 : index
    %c0_26 = arith.constant 0 : index
    %40 = vector.load %arg9[%c0_24, %c0_25, %c0_26] : memref<4x8x32xf32, #tpu.memory_space<vmem>>, vector<1x8x32xf32>
    %41 = vector.shape_cast %40 : vector<1x8x32xf32> to vector<8x32xf32>
    %42 = vector.shape_cast %39 : vector<8x32xf32> to vector<1x8x32xf32>
    tpu.vector_store %arg9[%c0_24, %c0_25, %c0_26], %42 {strides = array<i32>} : memref<4x8x32xf32, #tpu.memory_space<vmem>>, vector<1x8x32xf32>,
    %c0_27 = arith.constant 0 : index
    %c0_28 = arith.constant 0 : index
    %c0_29 = arith.constant 0 : index
    %43 = vector.load %arg7[%c0_27, %c0_28, %c0_29] : memref<4x8x1xf32, #tpu.memory_space<vmem>>, vector<1x8x1xf32>
    %44 = vector.shape_cast %43 : vector<1x8x1xf32> to vector<8x1xf32>
    %45 = vector.shape_cast %18 : vector<8x1xf32> to vector<1x8x1xf32>
    tpu.vector_store %arg7[%c0_27, %c0_28, %c0_29], %45 {strides = array<i32>} : memref<4x8x1xf32, #tpu.memory_space<vmem>>, vector<1x8x1xf32>,
    %46 = vector.extract_strided_slice %4 {offsets = [0, 32], sizes = [8, 32], strides = [1, 1]} : vector<8x128xbf16> to vector<8x32xbf16>
    %47 = vector.extract_strided_slice %6 {offsets = [0, 32], sizes = [8, 32], strides = [1, 1]} : vector<8x128xbf16> to vector<8x32xbf16>
    %48 = vector.extract_strided_slice %8 {offsets = [0, 32], sizes = [8, 32], strides = [1, 1]} : vector<8x128xbf16> to vector<8x32xbf16>
    %49 = tpu.transpose %47, [1, 0] : vector<8x32xbf16> -> vector<32x8xbf16>
    %cst_30 = arith.constant dense<0.000000e+00> : vector<8x8xf32>
    %50 = tpu.matmul %46, %49, %cst_30 {dimension_numbers = #tpu.dot_dimension_numbers<[1], [0], [0], [1], [0, 0, 1, 1], [], []>} : vector<8x32xbf16>, vector<32x8xbf16>, vector<8x8xf32> -> vector<8x8xf32>
    %c1 = arith.constant 1 : index
    %c0_31 = arith.constant 0 : index
    %c0_32 = arith.constant 0 : index
    %51 = vector.load %arg7[%c1, %c0_31, %c0_32] : memref<4x8x1xf32, #tpu.memory_space<vmem>>, vector<1x8x1xf32>
    %52 = vector.shape_cast %51 : vector<1x8x1xf32> to vector<8x1xf32>
    %cst_33 = arith.constant dense<0xFF800000> : vector<8xf32>
    %53 = vector.multi_reduction <maximumf>, %50, %cst_33 [1] : vector<8x8xf32> to vector<8xf32>
    %54 = vector.shape_cast %53 : vector<8xf32> to vector<8x1xf32>
    %55 = arith.maximumf %52, %54 : vector<8x1xf32>
    %56 = arith.subf %52, %55 : vector<8x1xf32>
    %57 = math.exp %56 : vector<8x1xf32>
    %58 = vector.broadcast %55 : vector<8x1xf32> to vector<8x8xf32>
    %59 = arith.subf %50, %58 : vector<8x8xf32>
    %60 = math.exp %59 : vector<8x8xf32>
    %c1_34 = arith.constant 1 : index
    %c0_35 = arith.constant 0 : index
    %c0_36 = arith.constant 0 : index
    %61 = vector.load %arg8[%c1_34, %c0_35, %c0_36] : memref<4x8x1xf32, #tpu.memory_space<vmem>>, vector<1x8x1xf32>
    %62 = vector.shape_cast %61 : vector<1x8x1xf32> to vector<8x1xf32>
    %63 = arith.mulf %57, %62 : vector<8x1xf32>
    %cst_37 = arith.constant dense<0.000000e+00> : vector<8xf32>
    %64 = vector.multi_reduction <add>, %60, %cst_37 [1] : vector<8x8xf32> to vector<8xf32>
    %65 = vector.shape_cast %64 : vector<8xf32> to vector<8x1xf32>
    %66 = arith.addf %63, %65 : vector<8x1xf32>
    %c1_38 = arith.constant 1 : index
    %c0_39 = arith.constant 0 : index
    %c0_40 = arith.constant 0 : index
    %67 = vector.load %arg8[%c1_38, %c0_39, %c0_40] : memref<4x8x1xf32, #tpu.memory_space<vmem>>, vector<1x8x1xf32>
    %68 = vector.shape_cast %67 : vector<1x8x1xf32> to vector<8x1xf32>
    %69 = vector.shape_cast %66 : vector<8x1xf32> to vector<1x8x1xf32>
    tpu.vector_store %arg8[%c1_38, %c0_39, %c0_40], %69 {strides = array<i32>} : memref<4x8x1xf32, #tpu.memory_space<vmem>>, vector<1x8x1xf32>,
    %c1_41 = arith.constant 1 : index
    %c0_42 = arith.constant 0 : index
    %c0_43 = arith.constant 0 : index
    %70 = vector.load %arg9[%c1_41, %c0_42, %c0_43] : memref<4x8x32xf32, #tpu.memory_space<vmem>>, vector<1x8x32xf32>
    %71 = vector.shape_cast %70 : vector<1x8x32xf32> to vector<8x32xf32>
    %72 = vector.broadcast %57 : vector<8x1xf32> to vector<8x32xf32>
    %73 = arith.mulf %72, %71 : vector<8x32xf32>
    %74 = arith.truncf %60 : vector<8x8xf32> to vector<8x8xbf16>
    %cst_44 = arith.constant dense<0.000000e+00> : vector<8x32xf32>
    %75 = tpu.matmul %74, %48, %cst_44 {dimension_numbers = #tpu.dot_dimension_numbers<[1], [0], [0], [1], [0, 0, 1, 1], [], []>} : vector<8x8xbf16>, vector<8x32xbf16>, vector<8x32xf32> -> vector<8x32xf32>
    %76 = arith.addf %73, %75 : vector<8x32xf32>
    %c1_45 = arith.constant 1 : index
    %c0_46 = arith.constant 0 : index
    %c0_47 = arith.constant 0 : index
    %77 = vector.load %arg9[%c1_45, %c0_46, %c0_47] : memref<4x8x32xf32, #tpu.memory_space<vmem>>, vector<1x8x32xf32>
    %78 = vector.shape_cast %77 : vector<1x8x32xf32> to vector<8x32xf32>
    %79 = vector.shape_cast %76 : vector<8x32xf32> to vector<1x8x32xf32>
    tpu.vector_store %arg9[%c1_45, %c0_46, %c0_47], %79 {strides = array<i32>} : memref<4x8x32xf32, #tpu.memory_space<vmem>>, vector<1x8x32xf32>,
    %c1_48 = arith.constant 1 : index
    %c0_49 = arith.constant 0 : index
    %c0_50 = arith.constant 0 : index
    %80 = vector.load %arg7[%c1_48, %c0_49, %c0_50] : memref<4x8x1xf32, #tpu.memory_space<vmem>>, vector<1x8x1xf32>
    %81 = vector.shape_cast %80 : vector<1x8x1xf32> to vector<8x1xf32>
    %82 = vector.shape_cast %55 : vector<8x1xf32> to vector<1x8x1xf32>
    tpu.vector_store %arg7[%c1_48, %c0_49, %c0_50], %82 {strides = array<i32>} : memref<4x8x1xf32, #tpu.memory_space<vmem>>, vector<1x8x1xf32>,
    %83 = vector.extract_strided_slice %4 {offsets = [0, 64], sizes = [8, 32], strides = [1, 1]} : vector<8x128xbf16> to vector<8x32xbf16>
    %84 = vector.extract_strided_slice %6 {offsets = [0, 64], sizes = [8, 32], strides = [1, 1]} : vector<8x128xbf16> to vector<8x32xbf16>
    %85 = vector.extract_strided_slice %8 {offsets = [0, 64], sizes = [8, 32], strides = [1, 1]} : vector<8x128xbf16> to vector<8x32xbf16>
    %86 = tpu.transpose %84, [1, 0] : vector<8x32xbf16> -> vector<32x8xbf16>
    %cst_51 = arith.constant dense<0.000000e+00> : vector<8x8xf32>
    %87 = tpu.matmul %83, %86, %cst_51 {dimension_numbers = #tpu.dot_dimension_numbers<[1], [0], [0], [1], [0, 0, 1, 1], [], []>} : vector<8x32xbf16>, vector<32x8xbf16>, vector<8x8xf32> -> vector<8x8xf32>
    %c2 = arith.constant 2 : index
    %c0_52 = arith.constant 0 : index
    %c0_53 = arith.constant 0 : index
    %88 = vector.load %arg7[%c2, %c0_52, %c0_53] : memref<4x8x1xf32, #tpu.memory_space<vmem>>, vector<1x8x1xf32>
    %89 = vector.shape_cast %88 : vector<1x8x1xf32> to vector<8x1xf32>
    %cst_54 = arith.constant dense<0xFF800000> : vector<8xf32>
    %90 = vector.multi_reduction <maximumf>, %87, %cst_54 [1] : vector<8x8xf32> to vector<8xf32>
    %91 = vector.shape_cast %90 : vector<8xf32> to vector<8x1xf32>
    %92 = arith.maximumf %89, %91 : vector<8x1xf32>
    %93 = arith.subf %89, %92 : vector<8x1xf32>
    %94 = math.exp %93 : vector<8x1xf32>
    %95 = vector.broadcast %92 : vector<8x1xf32> to vector<8x8xf32>
    %96 = arith.subf %87, %95 : vector<8x8xf32>
    %97 = math.exp %96 : vector<8x8xf32>
    %c2_55 = arith.constant 2 : index
    %c0_56 = arith.constant 0 : index
    %c0_57 = arith.constant 0 : index
    %98 = vector.load %arg8[%c2_55, %c0_56, %c0_57] : memref<4x8x1xf32, #tpu.memory_space<vmem>>, vector<1x8x1xf32>
    %99 = vector.shape_cast %98 : vector<1x8x1xf32> to vector<8x1xf32>
    %100 = arith.mulf %94, %99 : vector<8x1xf32>
    %cst_58 = arith.constant dense<0.000000e+00> : vector<8xf32>
    %101 = vector.multi_reduction <add>, %97, %cst_58 [1] : vector<8x8xf32> to vector<8xf32>
    %102 = vector.shape_cast %101 : vector<8xf32> to vector<8x1xf32>
    %103 = arith.addf %100, %102 : vector<8x1xf32>
    %c2_59 = arith.constant 2 : index
    %c0_60 = arith.constant 0 : index
    %c0_61 = arith.constant 0 : index
    %104 = vector.load %arg8[%c2_59, %c0_60, %c0_61] : memref<4x8x1xf32, #tpu.memory_space<vmem>>, vector<1x8x1xf32>
    %105 = vector.shape_cast %104 : vector<1x8x1xf32> to vector<8x1xf32>
    %106 = vector.shape_cast %103 : vector<8x1xf32> to vector<1x8x1xf32>
    tpu.vector_store %arg8[%c2_59, %c0_60, %c0_61], %106 {strides = array<i32>} : memref<4x8x1xf32, #tpu.memory_space<vmem>>, vector<1x8x1xf32>,
    %c2_62 = arith.constant 2 : index
    %c0_63 = arith.constant 0 : index
    %c0_64 = arith.constant 0 : index
    %107 = vector.load %arg9[%c2_62, %c0_63, %c0_64] : memref<4x8x32xf32, #tpu.memory_space<vmem>>, vector<1x8x32xf32>
    %108 = vector.shape_cast %107 : vector<1x8x32xf32> to vector<8x32xf32>
    %109 = vector.broadcast %94 : vector<8x1xf32> to vector<8x32xf32>
    %110 = arith.mulf %109, %108 : vector<8x32xf32>
    %111 = arith.truncf %97 : vector<8x8xf32> to vector<8x8xbf16>
    %cst_65 = arith.constant dense<0.000000e+00> : vector<8x32xf32>
    %112 = tpu.matmul %111, %85, %cst_65 {dimension_numbers = #tpu.dot_dimension_numbers<[1], [0], [0], [1], [0, 0, 1, 1], [], []>} : vector<8x8xbf16>, vector<8x32xbf16>, vector<8x32xf32> -> vector<8x32xf32>
    %113 = arith.addf %110, %112 : vector<8x32xf32>
    %c2_66 = arith.constant 2 : index
    %c0_67 = arith.constant 0 : index
    %c0_68 = arith.constant 0 : index
    %114 = vector.load %arg9[%c2_66, %c0_67, %c0_68] : memref<4x8x32xf32, #tpu.memory_space<vmem>>, vector<1x8x32xf32>
    %115 = vector.shape_cast %114 : vector<1x8x32xf32> to vector<8x32xf32>
    %116 = vector.shape_cast %113 : vector<8x32xf32> to vector<1x8x32xf32>
    tpu.vector_store %arg9[%c2_66, %c0_67, %c0_68], %116 {strides = array<i32>} : memref<4x8x32xf32, #tpu.memory_space<vmem>>, vector<1x8x32xf32>,
    %c2_69 = arith.constant 2 : index
    %c0_70 = arith.constant 0 : index
    %c0_71 = arith.constant 0 : index
    %117 = vector.load %arg7[%c2_69, %c0_70, %c0_71] : memref<4x8x1xf32, #tpu.memory_space<vmem>>, vector<1x8x1xf32>
    %118 = vector.shape_cast %117 : vector<1x8x1xf32> to vector<8x1xf32>
    %119 = vector.shape_cast %92 : vector<8x1xf32> to vector<1x8x1xf32>
    tpu.vector_store %arg7[%c2_69, %c0_70, %c0_71], %119 {strides = array<i32>} : memref<4x8x1xf32, #tpu.memory_space<vmem>>, vector<1x8x1xf32>,
    %120 = vector.extract_strided_slice %4 {offsets = [0, 96], sizes = [8, 32], strides = [1, 1]} : vector<8x128xbf16> to vector<8x32xbf16>
    %121 = vector.extract_strided_slice %6 {offsets = [0, 96], sizes = [8, 32], strides = [1, 1]} : vector<8x128xbf16> to vector<8x32xbf16>
    %122 = vector.extract_strided_slice %8 {offsets = [0, 96], sizes = [8, 32], strides = [1, 1]} : vector<8x128xbf16> to vector<8x32xbf16>
    %123 = tpu.transpose %121, [1, 0] : vector<8x32xbf16> -> vector<32x8xbf16>
    %cst_72 = arith.constant dense<0.000000e+00> : vector<8x8xf32>
    %124 = tpu.matmul %120, %123, %cst_72 {dimension_numbers = #tpu.dot_dimension_numbers<[1], [0], [0], [1], [0, 0, 1, 1], [], []>} : vector<8x32xbf16>, vector<32x8xbf16>, vector<8x8xf32> -> vector<8x8xf32>
    %c3 = arith.constant 3 : index
    %c0_73 = arith.constant 0 : index
    %c0_74 = arith.constant 0 : index
    %125 = vector.load %arg7[%c3, %c0_73, %c0_74] : memref<4x8x1xf32, #tpu.memory_space<vmem>>, vector<1x8x1xf32>
    %126 = vector.shape_cast %125 : vector<1x8x1xf32> to vector<8x1xf32>
    %cst_75 = arith.constant dense<0xFF800000> : vector<8xf32>
    %127 = vector.multi_reduction <maximumf>, %124, %cst_75 [1] : vector<8x8xf32> to vector<8xf32>
    %128 = vector.shape_cast %127 : vector<8xf32> to vector<8x1xf32>
    %129 = arith.maximumf %126, %128 : vector<8x1xf32>
    %130 = arith.subf %126, %129 : vector<8x1xf32>
    %131 = math.exp %130 : vector<8x1xf32>
    %132 = vector.broadcast %129 : vector<8x1xf32> to vector<8x8xf32>
    %133 = arith.subf %124, %132 : vector<8x8xf32>
    %134 = math.exp %133 : vector<8x8xf32>
    %c3_76 = arith.constant 3 : index
    %c0_77 = arith.constant 0 : index
    %c0_78 = arith.constant 0 : index
    %135 = vector.load %arg8[%c3_76, %c0_77, %c0_78] : memref<4x8x1xf32, #tpu.memory_space<vmem>>, vector<1x8x1xf32>
    %136 = vector.shape_cast %135 : vector<1x8x1xf32> to vector<8x1xf32>
    %137 = arith.mulf %131, %136 : vector<8x1xf32>
    %cst_79 = arith.constant dense<0.000000e+00> : vector<8xf32>
    %138 = vector.multi_reduction <add>, %134, %cst_79 [1] : vector<8x8xf32> to vector<8xf32>
    %139 = vector.shape_cast %138 : vector<8xf32> to vector<8x1xf32>
    %140 = arith.addf %137, %139 : vector<8x1xf32>
    %c3_80 = arith.constant 3 : index
    %c0_81 = arith.constant 0 : index
    %c0_82 = arith.constant 0 : index
    %141 = vector.load %arg8[%c3_80, %c0_81, %c0_82] : memref<4x8x1xf32, #tpu.memory_space<vmem>>, vector<1x8x1xf32>
    %142 = vector.shape_cast %141 : vector<1x8x1xf32> to vector<8x1xf32>
    %143 = vector.shape_cast %140 : vector<8x1xf32> to vector<1x8x1xf32>
    tpu.vector_store %arg8[%c3_80, %c0_81, %c0_82], %143 {strides = array<i32>} : memref<4x8x1xf32, #tpu.memory_space<vmem>>, vector<1x8x1xf32>,
    %c3_83 = arith.constant 3 : index
    %c0_84 = arith.constant 0 : index
    %c0_85 = arith.constant 0 : index
    %144 = vector.load %arg9[%c3_83, %c0_84, %c0_85] : memref<4x8x32xf32, #tpu.memory_space<vmem>>, vector<1x8x32xf32>
    %145 = vector.shape_cast %144 : vector<1x8x32xf32> to vector<8x32xf32>
    %146 = vector.broadcast %131 : vector<8x1xf32> to vector<8x32xf32>
    %147 = arith.mulf %146, %145 : vector<8x32xf32>
    %148 = arith.truncf %134 : vector<8x8xf32> to vector<8x8xbf16>
    %cst_86 = arith.constant dense<0.000000e+00> : vector<8x32xf32>
    %149 = tpu.matmul %148, %122, %cst_86 {dimension_numbers = #tpu.dot_dimension_numbers<[1], [0], [0], [1], [0, 0, 1, 1], [], []>} : vector<8x8xbf16>, vector<8x32xbf16>, vector<8x32xf32> -> vector<8x32xf32>
    %150 = arith.addf %147, %149 : vector<8x32xf32>
    %c3_87 = arith.constant 3 : index
    %c0_88 = arith.constant 0 : index
    %c0_89 = arith.constant 0 : index
    %151 = vector.load %arg9[%c3_87, %c0_88, %c0_89] : memref<4x8x32xf32, #tpu.memory_space<vmem>>, vector<1x8x32xf32>
    %152 = vector.shape_cast %151 : vector<1x8x32xf32> to vector<8x32xf32>
    %153 = vector.shape_cast %150 : vector<8x32xf32> to vector<1x8x32xf32>
    tpu.vector_store %arg9[%c3_87, %c0_88, %c0_89], %153 {strides = array<i32>} : memref<4x8x32xf32, #tpu.memory_space<vmem>>, vector<1x8x32xf32>,
    %c3_90 = arith.constant 3 : index
    %c0_91 = arith.constant 0 : index
    %c0_92 = arith.constant 0 : index
    %154 = vector.load %arg7[%c3_90, %c0_91, %c0_92] : memref<4x8x1xf32, #tpu.memory_space<vmem>>, vector<1x8x1xf32>
    %155 = vector.shape_cast %154 : vector<1x8x1xf32> to vector<8x1xf32>
    %156 = vector.shape_cast %129 : vector<8x1xf32> to vector<1x8x1xf32>
    tpu.vector_store %arg7[%c3_90, %c0_91, %c0_92], %156 {strides = array<i32>} : memref<4x8x1xf32, #tpu.memory_space<vmem>>, vector<1x8x1xf32>,
    %c0_i32_93 = arith.constant 0 : i32
    %157 = arith.cmpi eq, %arg2, %c0_i32_93 : i32
    %158 = arith.extui %157 : i1 to i32
    %c0_i32_94 = arith.constant 0 : i32
    %159 = arith.cmpi ne, %158, %c0_i32_94 : i32
    scf.if %159 {
      %c0_95 = arith.constant 0 : index
      %c0_96 = arith.constant 0 : index
      %c0_97 = arith.constant 0 : index
      %160 = vector.load %arg8[%c0_95, %c0_96, %c0_97] : memref<4x8x1xf32, #tpu.memory_space<vmem>>, vector<1x8x1xf32>
      %161 = vector.shape_cast %160 : vector<1x8x1xf32> to vector<8x1xf32>
      %162 = tpu.reciprocal %161 {approx = true} : vector<8x1xf32> -> vector<8x1xf32>
      %c0_98 = arith.constant 0 : index
      %c0_99 = arith.constant 0 : index
      %c0_100 = arith.constant 0 : index
      %163 = vector.load %arg9[%c0_98, %c0_99, %c0_100] : memref<4x8x32xf32, #tpu.memory_space<vmem>>, vector<1x8x32xf32>
      %164 = vector.shape_cast %163 : vector<1x8x32xf32> to vector<8x32xf32>
      %165 = vector.broadcast %162 : vector<8x1xf32> to vector<8x32xf32>
      %166 = arith.mulf %164, %165 : vector<8x32xf32>
      %167 = arith.truncf %166 : vector<8x32xf32> to vector<8x32xbf16>
      %c0_101 = arith.constant 0 : index
      %c0_102 = arith.constant 0 : index
      %c0_103 = arith.constant 0 : index
      %168 = vector.load %arg6[%c0_101, %c0_102, %c0_103] : memref<1x8x128xbf16, #tpu.memory_space<vmem>>, vector<1x8x32xbf16>
      %169 = vector.shape_cast %168 : vector<1x8x32xbf16> to vector<8x32xbf16>
      %170 = vector.shape_cast %167 : vector<8x32xbf16> to vector<1x8x32xbf16>
      tpu.vector_store %arg6[%c0_101, %c0_102, %c0_103], %170 {strides = array<i32>} : memref<1x8x128xbf16, #tpu.memory_space<vmem>>, vector<1x8x32xbf16>,
      %c1_104 = arith.constant 1 : index
      %c0_105 = arith.constant 0 : index
      %c0_106 = arith.constant 0 : index
      %171 = vector.load %arg8[%c1_104, %c0_105, %c0_106] : memref<4x8x1xf32, #tpu.memory_space<vmem>>, vector<1x8x1xf32>
      %172 = vector.shape_cast %171 : vector<1x8x1xf32> to vector<8x1xf32>
      %173 = tpu.reciprocal %172 {approx = true} : vector<8x1xf32> -> vector<8x1xf32>
      %c1_107 = arith.constant 1 : index
      %c0_108 = arith.constant 0 : index
      %c0_109 = arith.constant 0 : index
      %174 = vector.load %arg9[%c1_107, %c0_108, %c0_109] : memref<4x8x32xf32, #tpu.memory_space<vmem>>, vector<1x8x32xf32>
      %175 = vector.shape_cast %174 : vector<1x8x32xf32> to vector<8x32xf32>
      %176 = vector.broadcast %173 : vector<8x1xf32> to vector<8x32xf32>
      %177 = arith.mulf %175, %176 : vector<8x32xf32>
      %178 = arith.truncf %177 : vector<8x32xf32> to vector<8x32xbf16>
      %c0_110 = arith.constant 0 : index
      %c0_111 = arith.constant 0 : index
      %c32 = arith.constant 32 : index
      %179 = vector.load %arg6[%c0_110, %c0_111, %c32] : memref<1x8x128xbf16, #tpu.memory_space<vmem>>, vector<1x8x32xbf16>
      %180 = vector.shape_cast %179 : vector<1x8x32xbf16> to vector<8x32xbf16>
      %181 = vector.shape_cast %178 : vector<8x32xbf16> to vector<1x8x32xbf16>
      tpu.vector_store %arg6[%c0_110, %c0_111, %c32], %181 {strides = array<i32>} : memref<1x8x128xbf16, #tpu.memory_space<vmem>>, vector<1x8x32xbf16>,
      %c2_112 = arith.constant 2 : index
      %c0_113 = arith.constant 0 : index
      %c0_114 = arith.constant 0 : index
      %182 = vector.load %arg8[%c2_112, %c0_113, %c0_114] : memref<4x8x1xf32, #tpu.memory_space<vmem>>, vector<1x8x1xf32>
      %183 = vector.shape_cast %182 : vector<1x8x1xf32> to vector<8x1xf32>
      %184 = tpu.reciprocal %183 {approx = true} : vector<8x1xf32> -> vector<8x1xf32>
      %c2_115 = arith.constant 2 : index
      %c0_116 = arith.constant 0 : index
      %c0_117 = arith.constant 0 : index
      %185 = vector.load %arg9[%c2_115, %c0_116, %c0_117] : memref<4x8x32xf32, #tpu.memory_space<vmem>>, vector<1x8x32xf32>
      %186 = vector.shape_cast %185 : vector<1x8x32xf32> to vector<8x32xf32>
      %187 = vector.broadcast %184 : vector<8x1xf32> to vector<8x32xf32>
      %188 = arith.mulf %186, %187 : vector<8x32xf32>
      %189 = arith.truncf %188 : vector<8x32xf32> to vector<8x32xbf16>
      %c0_118 = arith.constant 0 : index
      %c0_119 = arith.constant 0 : index
      %c64 = arith.constant 64 : index
      %190 = vector.load %arg6[%c0_118, %c0_119, %c64] : memref<1x8x128xbf16, #tpu.memory_space<vmem>>, vector<1x8x32xbf16>
      %191 = vector.shape_cast %190 : vector<1x8x32xbf16> to vector<8x32xbf16>
      %192 = vector.shape_cast %189 : vector<8x32xbf16> to vector<1x8x32xbf16>
      tpu.vector_store %arg6[%c0_118, %c0_119, %c64], %192 {strides = array<i32>} : memref<1x8x128xbf16, #tpu.memory_space<vmem>>, vector<1x8x32xbf16>,
      %c3_120 = arith.constant 3 : index
      %c0_121 = arith.constant 0 : index
      %c0_122 = arith.constant 0 : index
      %193 = vector.load %arg8[%c3_120, %c0_121, %c0_122] : memref<4x8x1xf32, #tpu.memory_space<vmem>>, vector<1x8x1xf32>
      %194 = vector.shape_cast %193 : vector<1x8x1xf32> to vector<8x1xf32>
      %195 = tpu.reciprocal %194 {approx = true} : vector<8x1xf32> -> vector<8x1xf32>
      %c3_123 = arith.constant 3 : index
      %c0_124 = arith.constant 0 : index
      %c0_125 = arith.constant 0 : index
      %196 = vector.load %arg9[%c3_123, %c0_124, %c0_125] : memref<4x8x32xf32, #tpu.memory_space<vmem>>, vector<1x8x32xf32>
      %197 = vector.shape_cast %196 : vector<1x8x32xf32> to vector<8x32xf32>
      %198 = vector.broadcast %195 : vector<8x1xf32> to vector<8x32xf32>
      %199 = arith.mulf %197, %198 : vector<8x32xf32>
      %200 = arith.truncf %199 : vector<8x32xf32> to vector<8x32xbf16>
      %c0_126 = arith.constant 0 : index
      %c0_127 = arith.constant 0 : index
      %c96 = arith.constant 96 : index
      %201 = vector.load %arg6[%c0_126, %c0_127, %c96] : memref<1x8x128xbf16, #tpu.memory_space<vmem>>, vector<1x8x32xbf16>
      %202 = vector.shape_cast %201 : vector<1x8x32xbf16> to vector<8x32xbf16>
      %203 = vector.shape_cast %200 : vector<8x32xbf16> to vector<1x8x32xbf16>
      tpu.vector_store %arg6[%c0_126, %c0_127, %c96], %203 {strides = array<i32>} : memref<1x8x128xbf16, #tpu.memory_space<vmem>>, vector<1x8x32xbf16>,
    } else {
    }
    return
  }
  func.func @transform_0(%arg0: i32, %arg1: i32, %arg2: i32) -> (i32, i32, i32) {
    %c0_i32 = arith.constant 0 : i32
    %c0_i32_0 = arith.constant 0 : i32
    return %arg0, %arg1, %c0_i32 : i32, i32, i32
  }
  func.func @transform_1(%arg0: i32, %arg1: i32, %arg2: i32) -> (i32, i32, i32) {
    %c1_i32 = arith.constant 1 : i32
    %c0_i32 = arith.constant 0 : i32
    return %arg0, %arg2, %c1_i32 : i32, i32, i32
  }
  func.func @transform_2(%arg0: i32, %arg1: i32, %arg2: i32) -> (i32, i32, i32) {
    %c2_i32 = arith.constant 2 : i32
    %c0_i32 = arith.constant 0 : i32
    return %arg0, %arg2, %c2_i32 : i32, i32, i32
  }
  func.func @transform_3(%arg0: i32, %arg1: i32, %arg2: i32) -> (i32, i32, i32) {
    %c0_i32 = arith.constant 0 : i32
    %c0_i32_0 = arith.constant 0 : i32
    return %arg0, %arg1, %c0_i32 : i32, i32, i32
  }
}

module attributes {stable_mosaic.version = 11 : i64} {
  func.func @_matmul_add_ln_kernel(%arg0: i32, %arg1: i32, %arg2: memref<16x128xbf16, #tpu.memory_space<vmem>>, %arg3: memref<128x128xbf16, #tpu.memory_space<vmem>>, %arg4: memref<1x128xf32, #tpu.memory_space<vmem>>, %arg5: memref<16x128xbf16, #tpu.memory_space<vmem>>, %arg6: memref<1x128xf32, #tpu.memory_space<vmem>>, %arg7: memref<1x128xf32, #tpu.memory_space<vmem>>, %arg8: memref<16x128xbf16, #tpu.memory_space<vmem>>, %arg9: memref<16x128xf32, #tpu.memory_space<vmem>>) attributes {dimension_semantics = [#tpu.dimension_semantics<parallel>, #tpu.dimension_semantics<arbitrary>], iteration_bounds = array<i64: 1, 1>, scalar_prefetch = 0 : i64, scratch_operands = 1 : i64, tpu.core_type = #tpu.core_type<tc>, window_params = [{transform_indices = @transform_0, window_bounds = array<i64: 16, 128>}, {transform_indices = @transform_1, window_bounds = array<i64: 128, 128>}, {pipeline_mode = #tpu.pipeline_mode<synchronous>, transform_indices = @transform_2, window_bounds = array<i64: 1, 128>}, {transform_indices = @transform_3, window_bounds = array<i64: 16, 128>}, {pipeline_mode = #tpu.pipeline_mode<synchronous>, transform_indices = @transform_4, window_bounds = array<i64: 1, 128>}, {pipeline_mode = #tpu.pipeline_mode<synchronous>, transform_indices = @transform_5, window_bounds = array<i64: 1, 128>}, {transform_indices = @transform_6, window_bounds = array<i64: 16, 128>}]} {
    %c0_i32 = arith.constant 0 : i32
    %0 = arith.cmpi eq, %arg1, %c0_i32 : i32
    %1 = arith.extui %0 : i1 to i32
    %c0_i32_0 = arith.constant 0 : i32
    %2 = arith.cmpi ne, %1, %c0_i32_0 : i32
    scf.if %2 {
      %cst_10 = arith.constant 0.000000e+00 : f32
      %12 = vector.broadcast %cst_10 : f32 to vector<16x128xf32>
      %c0_11 = arith.constant 0 : index
      %c0_12 = arith.constant 0 : index
      %13 = vector.load %arg9[%c0_11, %c0_12] : memref<16x128xf32, #tpu.memory_space<vmem>>, vector<16x128xf32>
      tpu.vector_store %arg9[%c0_11, %c0_12], %12 {strides = array<i32>} : memref<16x128xf32, #tpu.memory_space<vmem>>, vector<16x128xf32>,
    } else {
    }
    %c0 = arith.constant 0 : index
    %c0_1 = arith.constant 0 : index
    %3 = vector.load %arg9[%c0, %c0_1] : memref<16x128xf32, #tpu.memory_space<vmem>>, vector<16x128xf32>
    %c0_2 = arith.constant 0 : index
    %c0_3 = arith.constant 0 : index
    %4 = vector.load %arg2[%c0_2, %c0_3] : memref<16x128xbf16, #tpu.memory_space<vmem>>, vector<16x128xbf16>
    %c0_4 = arith.constant 0 : index
    %c0_5 = arith.constant 0 : index
    %5 = vector.load %arg3[%c0_4, %c0_5] : memref<128x128xbf16, #tpu.memory_space<vmem>>, vector<128x128xbf16>
    %cst = arith.constant dense<0.000000e+00> : vector<16x128xf32>
    %6 = tpu.matmul %4, %5, %cst {dimension_numbers = #tpu.dot_dimension_numbers<[1], [0], [0], [1], [0, 0, 1, 1], [], []>} : vector<16x128xbf16>, vector<128x128xbf16>, vector<16x128xf32> -> vector<16x128xf32>
    %7 = arith.addf %3, %6 : vector<16x128xf32>
    %c0_6 = arith.constant 0 : index
    %c0_7 = arith.constant 0 : index
    %8 = vector.load %arg9[%c0_6, %c0_7] : memref<16x128xf32, #tpu.memory_space<vmem>>, vector<16x128xf32>
    tpu.vector_store %arg9[%c0_6, %c0_7], %7 {strides = array<i32>} : memref<16x128xf32, #tpu.memory_space<vmem>>, vector<16x128xf32>,
    %c0_i32_8 = arith.constant 0 : i32
    %9 = arith.cmpi eq, %arg1, %c0_i32_8 : i32
    %10 = arith.extui %9 : i1 to i32
    %c0_i32_9 = arith.constant 0 : i32
    %11 = arith.cmpi ne, %10, %c0_i32_9 : i32
    scf.if %11 {
      %c0_10 = arith.constant 0 : index
      %c0_11 = arith.constant 0 : index
      %12 = vector.load %arg9[%c0_10, %c0_11] : memref<16x128xf32, #tpu.memory_space<vmem>>, vector<16x128xf32>
      %c0_12 = arith.constant 0 : index
      %c0_13 = arith.constant 0 : index
      %13 = vector.load %arg4[%c0_12, %c0_13] : memref<1x128xf32, #tpu.memory_space<vmem>>, vector<1x128xf32>
      %14 = vector.broadcast %13 : vector<1x128xf32> to vector<16x128xf32>
      %15 = arith.addf %12, %14 : vector<16x128xf32>
      %c0_14 = arith.constant 0 : index
      %c0_15 = arith.constant 0 : index
      %16 = vector.load %arg5[%c0_14, %c0_15] : memref<16x128xbf16, #tpu.memory_space<vmem>>, vector<16x128xbf16>
      %17 = arith.extf %16 : vector<16x128xbf16> to vector<16x128xf32>
      %18 = arith.addf %15, %17 : vector<16x128xf32>
      %cst_16 = arith.constant dense<0.000000e+00> : vector<16xf32>
      %19 = vector.multi_reduction <add>, %18, %cst_16 [1] : vector<16x128xf32> to vector<16xf32>
      %20 = vector.shape_cast %19 : vector<16xf32> to vector<16x1xf32>
      %cst_17 = arith.constant 1.280000e+02 : f32
      %21 = vector.broadcast %cst_17 : f32 to vector<16x1xf32>
      %22 = arith.divf %20, %21 : vector<16x1xf32>
      %23 = vector.broadcast %22 : vector<16x1xf32> to vector<16x128xf32>
      %24 = arith.subf %18, %23 : vector<16x128xf32>
      %25 = arith.mulf %24, %24 : vector<16x128xf32>
      %cst_18 = arith.constant dense<0.000000e+00> : vector<16xf32>
      %26 = vector.multi_reduction <add>, %25, %cst_18 [1] : vector<16x128xf32> to vector<16xf32>
      %27 = vector.shape_cast %26 : vector<16xf32> to vector<16x1xf32>
      %cst_19 = arith.constant 1.280000e+02 : f32
      %28 = vector.broadcast %cst_19 : f32 to vector<16x1xf32>
      %29 = arith.divf %27, %28 : vector<16x1xf32>
      %30 = vector.broadcast %22 : vector<16x1xf32> to vector<16x128xf32>
      %31 = arith.subf %18, %30 : vector<16x128xf32>
      %cst_20 = arith.constant 9.99999974E-6 : f32
      %32 = vector.broadcast %cst_20 : f32 to vector<16x1xf32>
      %33 = arith.addf %29, %32 : vector<16x1xf32>
      %34 = math.rsqrt %33 : vector<16x1xf32>
      %35 = vector.broadcast %34 : vector<16x1xf32> to vector<16x128xf32>
      %36 = arith.mulf %31, %35 : vector<16x128xf32>
      %c0_21 = arith.constant 0 : index
      %c0_22 = arith.constant 0 : index
      %37 = vector.load %arg6[%c0_21, %c0_22] : memref<1x128xf32, #tpu.memory_space<vmem>>, vector<1x128xf32>
      %38 = vector.broadcast %37 : vector<1x128xf32> to vector<16x128xf32>
      %39 = arith.mulf %36, %38 : vector<16x128xf32>
      %c0_23 = arith.constant 0 : index
      %c0_24 = arith.constant 0 : index
      %40 = vector.load %arg7[%c0_23, %c0_24] : memref<1x128xf32, #tpu.memory_space<vmem>>, vector<1x128xf32>
      %41 = vector.broadcast %40 : vector<1x128xf32> to vector<16x128xf32>
      %42 = arith.addf %39, %41 : vector<16x128xf32>
      %43 = arith.truncf %42 : vector<16x128xf32> to vector<16x128xbf16>
      %c0_25 = arith.constant 0 : index
      %c0_26 = arith.constant 0 : index
      %44 = vector.load %arg8[%c0_25, %c0_26] : memref<16x128xbf16, #tpu.memory_space<vmem>>, vector<16x128xbf16>
      tpu.vector_store %arg8[%c0_25, %c0_26], %43 {strides = array<i32>} : memref<16x128xbf16, #tpu.memory_space<vmem>>, vector<16x128xbf16>,
    } else {
    }
    return
  }
  func.func @transform_0(%arg0: i32, %arg1: i32) -> (i32, i32) {
    %c0_i32 = arith.constant 0 : i32
    return %arg0, %arg1 : i32, i32
  }
  func.func @transform_1(%arg0: i32, %arg1: i32) -> (i32, i32) {
    %c0_i32 = arith.constant 0 : i32
    %c0_i32_0 = arith.constant 0 : i32
    return %arg1, %c0_i32 : i32, i32
  }
  func.func @transform_2(%arg0: i32, %arg1: i32) -> (i32, i32) {
    %c0_i32 = arith.constant 0 : i32
    %c0_i32_0 = arith.constant 0 : i32
    %c0_i32_1 = arith.constant 0 : i32
    return %c0_i32, %c0_i32_0 : i32, i32
  }
  func.func @transform_3(%arg0: i32, %arg1: i32) -> (i32, i32) {
    %c0_i32 = arith.constant 0 : i32
    %c0_i32_0 = arith.constant 0 : i32
    return %arg0, %c0_i32 : i32, i32
  }
  func.func @transform_4(%arg0: i32, %arg1: i32) -> (i32, i32) {
    %c0_i32 = arith.constant 0 : i32
    %c0_i32_0 = arith.constant 0 : i32
    %c0_i32_1 = arith.constant 0 : i32
    return %c0_i32, %c0_i32_0 : i32, i32
  }
  func.func @transform_5(%arg0: i32, %arg1: i32) -> (i32, i32) {
    %c0_i32 = arith.constant 0 : i32
    %c0_i32_0 = arith.constant 0 : i32
    %c0_i32_1 = arith.constant 0 : i32
    return %c0_i32, %c0_i32_0 : i32, i32
  }
  func.func @transform_6(%arg0: i32, %arg1: i32) -> (i32, i32) {
    %c0_i32 = arith.constant 0 : i32
    %c0_i32_0 = arith.constant 0 : i32
    return %arg0, %c0_i32 : i32, i32
  }
}

module attributes {stable_mosaic.version = 11 : i64} {
  func.func @_matmul_add_ln_kernel(%arg0: i32, %arg1: i32, %arg2: memref<16x128xbf16, #tpu.memory_space<vmem>>, %arg3: memref<128x128xbf16, #tpu.memory_space<vmem>>, %arg4: memref<1x128xf32, #tpu.memory_space<vmem>>, %arg5: memref<16x128xbf16, #tpu.memory_space<vmem>>, %arg6: memref<1x128xf32, #tpu.memory_space<vmem>>, %arg7: memref<1x128xf32, #tpu.memory_space<vmem>>, %arg8: memref<16x128xbf16, #tpu.memory_space<vmem>>, %arg9: memref<16x128xf32, #tpu.memory_space<vmem>>) attributes {dimension_semantics = [#tpu.dimension_semantics<parallel>, #tpu.dimension_semantics<arbitrary>], iteration_bounds = array<i64: 1, 1>, scalar_prefetch = 0 : i64, scratch_operands = 1 : i64, tpu.core_type = #tpu.core_type<tc>, window_params = [{transform_indices = @transform_0, window_bounds = array<i64: 16, 128>}, {transform_indices = @transform_1, window_bounds = array<i64: 128, 128>}, {pipeline_mode = #tpu.pipeline_mode<synchronous>, transform_indices = @transform_2, window_bounds = array<i64: 1, 128>}, {transform_indices = @transform_3, window_bounds = array<i64: 16, 128>}, {pipeline_mode = #tpu.pipeline_mode<synchronous>, transform_indices = @transform_4, window_bounds = array<i64: 1, 128>}, {pipeline_mode = #tpu.pipeline_mode<synchronous>, transform_indices = @transform_5, window_bounds = array<i64: 1, 128>}, {transform_indices = @transform_6, window_bounds = array<i64: 16, 128>}]} {
    %c0_i32 = arith.constant 0 : i32
    %0 = arith.cmpi eq, %arg1, %c0_i32 : i32
    %1 = arith.extui %0 : i1 to i32
    %c0_i32_0 = arith.constant 0 : i32
    %2 = arith.cmpi ne, %1, %c0_i32_0 : i32
    scf.if %2 {
      %cst_10 = arith.constant 0.000000e+00 : f32
      %12 = vector.broadcast %cst_10 : f32 to vector<16x128xf32>
      %c0_11 = arith.constant 0 : index
      %c0_12 = arith.constant 0 : index
      %13 = vector.load %arg9[%c0_11, %c0_12] : memref<16x128xf32, #tpu.memory_space<vmem>>, vector<16x128xf32>
      tpu.vector_store %arg9[%c0_11, %c0_12], %12 {strides = array<i32>} : memref<16x128xf32, #tpu.memory_space<vmem>>, vector<16x128xf32>,
    } else {
    }
    %c0 = arith.constant 0 : index
    %c0_1 = arith.constant 0 : index
    %3 = vector.load %arg9[%c0, %c0_1] : memref<16x128xf32, #tpu.memory_space<vmem>>, vector<16x128xf32>
    %c0_2 = arith.constant 0 : index
    %c0_3 = arith.constant 0 : index
    %4 = vector.load %arg2[%c0_2, %c0_3] : memref<16x128xbf16, #tpu.memory_space<vmem>>, vector<16x128xbf16>
    %c0_4 = arith.constant 0 : index
    %c0_5 = arith.constant 0 : index
    %5 = vector.load %arg3[%c0_4, %c0_5] : memref<128x128xbf16, #tpu.memory_space<vmem>>, vector<128x128xbf16>
    %cst = arith.constant dense<0.000000e+00> : vector<16x128xf32>
    %6 = tpu.matmul %4, %5, %cst {dimension_numbers = #tpu.dot_dimension_numbers<[1], [0], [0], [1], [0, 0, 1, 1], [], []>} : vector<16x128xbf16>, vector<128x128xbf16>, vector<16x128xf32> -> vector<16x128xf32>
    %7 = arith.addf %3, %6 : vector<16x128xf32>
    %c0_6 = arith.constant 0 : index
    %c0_7 = arith.constant 0 : index
    %8 = vector.load %arg9[%c0_6, %c0_7] : memref<16x128xf32, #tpu.memory_space<vmem>>, vector<16x128xf32>
    tpu.vector_store %arg9[%c0_6, %c0_7], %7 {strides = array<i32>} : memref<16x128xf32, #tpu.memory_space<vmem>>, vector<16x128xf32>,
    %c0_i32_8 = arith.constant 0 : i32
    %9 = arith.cmpi eq, %arg1, %c0_i32_8 : i32
    %10 = arith.extui %9 : i1 to i32
    %c0_i32_9 = arith.constant 0 : i32
    %11 = arith.cmpi ne, %10, %c0_i32_9 : i32
    scf.if %11 {
      %c0_10 = arith.constant 0 : index
      %c0_11 = arith.constant 0 : index
      %12 = vector.load %arg9[%c0_10, %c0_11] : memref<16x128xf32, #tpu.memory_space<vmem>>, vector<16x128xf32>
      %c0_12 = arith.constant 0 : index
      %c0_13 = arith.constant 0 : index
      %13 = vector.load %arg4[%c0_12, %c0_13] : memref<1x128xf32, #tpu.memory_space<vmem>>, vector<1x128xf32>
      %14 = vector.broadcast %13 : vector<1x128xf32> to vector<16x128xf32>
      %15 = arith.addf %12, %14 : vector<16x128xf32>
      %c0_14 = arith.constant 0 : index
      %c0_15 = arith.constant 0 : index
      %16 = vector.load %arg5[%c0_14, %c0_15] : memref<16x128xbf16, #tpu.memory_space<vmem>>, vector<16x128xbf16>
      %17 = arith.extf %16 : vector<16x128xbf16> to vector<16x128xf32>
      %18 = arith.addf %15, %17 : vector<16x128xf32>
      %cst_16 = arith.constant dense<0.000000e+00> : vector<16xf32>
      %19 = vector.multi_reduction <add>, %18, %cst_16 [1] : vector<16x128xf32> to vector<16xf32>
      %20 = vector.shape_cast %19 : vector<16xf32> to vector<16x1xf32>
      %cst_17 = arith.constant 1.280000e+02 : f32
      %21 = vector.broadcast %cst_17 : f32 to vector<16x1xf32>
      %22 = arith.divf %20, %21 : vector<16x1xf32>
      %23 = vector.broadcast %22 : vector<16x1xf32> to vector<16x128xf32>
      %24 = arith.subf %18, %23 : vector<16x128xf32>
      %25 = arith.mulf %24, %24 : vector<16x128xf32>
      %cst_18 = arith.constant dense<0.000000e+00> : vector<16xf32>
      %26 = vector.multi_reduction <add>, %25, %cst_18 [1] : vector<16x128xf32> to vector<16xf32>
      %27 = vector.shape_cast %26 : vector<16xf32> to vector<16x1xf32>
      %cst_19 = arith.constant 1.280000e+02 : f32
      %28 = vector.broadcast %cst_19 : f32 to vector<16x1xf32>
      %29 = arith.divf %27, %28 : vector<16x1xf32>
      %30 = vector.broadcast %22 : vector<16x1xf32> to vector<16x128xf32>
      %31 = arith.subf %18, %30 : vector<16x128xf32>
      %cst_20 = arith.constant 9.99999974E-6 : f32
      %32 = vector.broadcast %cst_20 : f32 to vector<16x1xf32>
      %33 = arith.addf %29, %32 : vector<16x1xf32>
      %34 = math.rsqrt %33 : vector<16x1xf32>
      %35 = vector.broadcast %34 : vector<16x1xf32> to vector<16x128xf32>
      %36 = arith.mulf %31, %35 : vector<16x128xf32>
      %c0_21 = arith.constant 0 : index
      %c0_22 = arith.constant 0 : index
      %37 = vector.load %arg6[%c0_21, %c0_22] : memref<1x128xf32, #tpu.memory_space<vmem>>, vector<1x128xf32>
      %38 = vector.broadcast %37 : vector<1x128xf32> to vector<16x128xf32>
      %39 = arith.mulf %36, %38 : vector<16x128xf32>
      %c0_23 = arith.constant 0 : index
      %c0_24 = arith.constant 0 : index
      %40 = vector.load %arg7[%c0_23, %c0_24] : memref<1x128xf32, #tpu.memory_space<vmem>>, vector<1x128xf32>
      %41 = vector.broadcast %40 : vector<1x128xf32> to vector<16x128xf32>
      %42 = arith.addf %39, %41 : vector<16x128xf32>
      %43 = arith.truncf %42 : vector<16x128xf32> to vector<16x128xbf16>
      %c0_25 = arith.constant 0 : index
      %c0_26 = arith.constant 0 : index
      %44 = vector.load %arg8[%c0_25, %c0_26] : memref<16x128xbf16, #tpu.memory_space<vmem>>, vector<16x128xbf16>
      tpu.vector_store %arg8[%c0_25, %c0_26], %43 {strides = array<i32>} : memref<16x128xbf16, #tpu.memory_space<vmem>>, vector<16x128xbf16>,
    } else {
    }
    return
  }
  func.func @transform_0(%arg0: i32, %arg1: i32) -> (i32, i32) {
    %c0_i32 = arith.constant 0 : i32
    return %arg0, %arg1 : i32, i32
  }
  func.func @transform_1(%arg0: i32, %arg1: i32) -> (i32, i32) {
    %c0_i32 = arith.constant 0 : i32
    %c0_i32_0 = arith.constant 0 : i32
    return %arg1, %c0_i32 : i32, i32
  }
  func.func @transform_2(%arg0: i32, %arg1: i32) -> (i32, i32) {
    %c0_i32 = arith.constant 0 : i32
    %c0_i32_0 = arith.constant 0 : i32
    %c0_i32_1 = arith.constant 0 : i32
    return %c0_i32, %c0_i32_0 : i32, i32
  }
  func.func @transform_3(%arg0: i32, %arg1: i32) -> (i32, i32) {
    %c0_i32 = arith.constant 0 : i32
    %c0_i32_0 = arith.constant 0 : i32
    return %arg0, %c0_i32 : i32, i32
  }
  func.func @transform_4(%arg0: i32, %arg1: i32) -> (i32, i32) {
    %c0_i32 = arith.constant 0 : i32
    %c0_i32_0 = arith.constant 0 : i32
    %c0_i32_1 = arith.constant 0 : i32
    return %c0_i32, %c0_i32_0 : i32, i32
  }
  func.func @transform_5(%arg0: i32, %arg1: i32) -> (i32, i32) {
    %c0_i32 = arith.constant 0 : i32
    %c0_i32_0 = arith.constant 0 : i32
    %c0_i32_1 = arith.constant 0 : i32
    return %c0_i32, %c0_i32_0 : i32, i32
  }
  func.func @transform_6(%arg0: i32, %arg1: i32) -> (i32, i32) {
    %c0_i32 = arith.constant 0 : i32
    %c0_i32_0 = arith.constant 0 : i32
    return %arg0, %c0_i32 : i32, i32
  }
}

module attributes {stable_mosaic.version = 11 : i64} {
  func.func @_ffn_add_ln_kernel(%arg0: i32, %arg1: i32, %arg2: memref<16x128xbf16, #tpu.memory_space<vmem>>, %arg3: memref<128x256xbf16, #tpu.memory_space<vmem>>, %arg4: memref<1x256xf32, #tpu.memory_space<vmem>>, %arg5: memref<256x128xbf16, #tpu.memory_space<vmem>>, %arg6: memref<1x128xf32, #tpu.memory_space<vmem>>, %arg7: memref<1x128xf32, #tpu.memory_space<vmem>>, %arg8: memref<1x128xf32, #tpu.memory_space<vmem>>, %arg9: memref<16x128xbf16, #tpu.memory_space<vmem>>, %arg10: memref<16x128xf32, #tpu.memory_space<vmem>>) attributes {dimension_semantics = [#tpu.dimension_semantics<parallel>, #tpu.dimension_semantics<arbitrary>], iteration_bounds = array<i64: 1, 1>, scalar_prefetch = 0 : i64, scratch_operands = 1 : i64, tpu.core_type = #tpu.core_type<tc>, window_params = [{transform_indices = @transform_0, window_bounds = array<i64: 16, 128>}, {transform_indices = @transform_1, window_bounds = array<i64: 128, 256>}, {transform_indices = @transform_2, window_bounds = array<i64: 1, 256>}, {transform_indices = @transform_3, window_bounds = array<i64: 256, 128>}, {pipeline_mode = #tpu.pipeline_mode<synchronous>, transform_indices = @transform_4, window_bounds = array<i64: 1, 128>}, {pipeline_mode = #tpu.pipeline_mode<synchronous>, transform_indices = @transform_5, window_bounds = array<i64: 1, 128>}, {pipeline_mode = #tpu.pipeline_mode<synchronous>, transform_indices = @transform_6, window_bounds = array<i64: 1, 128>}, {transform_indices = @transform_7, window_bounds = array<i64: 16, 128>}]} {
    %c0_i32 = arith.constant 0 : i32
    %0 = arith.cmpi eq, %arg1, %c0_i32 : i32
    %1 = arith.extui %0 : i1 to i32
    %c0_i32_0 = arith.constant 0 : i32
    %2 = arith.cmpi ne, %1, %c0_i32_0 : i32
    scf.if %2 {
      %cst_16 = arith.constant 0.000000e+00 : f32
      %20 = vector.broadcast %cst_16 : f32 to vector<16x128xf32>
      %c0_17 = arith.constant 0 : index
      %c0_18 = arith.constant 0 : index
      %21 = vector.load %arg10[%c0_17, %c0_18] : memref<16x128xf32, #tpu.memory_space<vmem>>, vector<16x128xf32>
      tpu.vector_store %arg10[%c0_17, %c0_18], %20 {strides = array<i32>} : memref<16x128xf32, #tpu.memory_space<vmem>>, vector<16x128xf32>,
    } else {
    }
    %c0 = arith.constant 0 : index
    %c0_1 = arith.constant 0 : index
    %3 = vector.load %arg2[%c0, %c0_1] : memref<16x128xbf16, #tpu.memory_space<vmem>>, vector<16x128xbf16>
    %c0_2 = arith.constant 0 : index
    %c0_3 = arith.constant 0 : index
    %4 = vector.load %arg3[%c0_2, %c0_3] : memref<128x256xbf16, #tpu.memory_space<vmem>>, vector<128x256xbf16>
    %cst = arith.constant dense<0.000000e+00> : vector<16x256xf32>
    %5 = tpu.matmul %3, %4, %cst {dimension_numbers = #tpu.dot_dimension_numbers<[1], [0], [0], [1], [0, 0, 1, 1], [], []>} : vector<16x128xbf16>, vector<128x256xbf16>, vector<16x256xf32> -> vector<16x256xf32>
    %c0_4 = arith.constant 0 : index
    %c0_5 = arith.constant 0 : index
    %6 = vector.load %arg4[%c0_4, %c0_5] : memref<1x256xf32, #tpu.memory_space<vmem>>, vector<1x256xf32>
    %7 = vector.broadcast %6 : vector<1x256xf32> to vector<16x256xf32>
    %8 = arith.addf %5, %7 : vector<16x256xf32>
    %cst_6 = arith.constant 0.000000e+00 : f32
    %9 = vector.broadcast %cst_6 : f32 to vector<16x256xf32>
    %10 = arith.maximumf %8, %9 : vector<16x256xf32>
    %11 = arith.truncf %10 : vector<16x256xf32> to vector<16x256xbf16>
    %c0_7 = arith.constant 0 : index
    %c0_8 = arith.constant 0 : index
    %12 = vector.load %arg10[%c0_7, %c0_8] : memref<16x128xf32, #tpu.memory_space<vmem>>, vector<16x128xf32>
    %c0_9 = arith.constant 0 : index
    %c0_10 = arith.constant 0 : index
    %13 = vector.load %arg5[%c0_9, %c0_10] : memref<256x128xbf16, #tpu.memory_space<vmem>>, vector<256x128xbf16>
    %cst_11 = arith.constant dense<0.000000e+00> : vector<16x128xf32>
    %14 = tpu.matmul %11, %13, %cst_11 {dimension_numbers = #tpu.dot_dimension_numbers<[1], [0], [0], [1], [0, 0, 1, 1], [], []>} : vector<16x256xbf16>, vector<256x128xbf16>, vector<16x128xf32> -> vector<16x128xf32>
    %15 = arith.addf %12, %14 : vector<16x128xf32>
    %c0_12 = arith.constant 0 : index
    %c0_13 = arith.constant 0 : index
    %16 = vector.load %arg10[%c0_12, %c0_13] : memref<16x128xf32, #tpu.memory_space<vmem>>, vector<16x128xf32>
    tpu.vector_store %arg10[%c0_12, %c0_13], %15 {strides = array<i32>} : memref<16x128xf32, #tpu.memory_space<vmem>>, vector<16x128xf32>,
    %c0_i32_14 = arith.constant 0 : i32
    %17 = arith.cmpi eq, %arg1, %c0_i32_14 : i32
    %18 = arith.extui %17 : i1 to i32
    %c0_i32_15 = arith.constant 0 : i32
    %19 = arith.cmpi ne, %18, %c0_i32_15 : i32
    scf.if %19 {
      %c0_16 = arith.constant 0 : index
      %c0_17 = arith.constant 0 : index
      %20 = vector.load %arg10[%c0_16, %c0_17] : memref<16x128xf32, #tpu.memory_space<vmem>>, vector<16x128xf32>
      %c0_18 = arith.constant 0 : index
      %c0_19 = arith.constant 0 : index
      %21 = vector.load %arg6[%c0_18, %c0_19] : memref<1x128xf32, #tpu.memory_space<vmem>>, vector<1x128xf32>
      %22 = vector.broadcast %21 : vector<1x128xf32> to vector<16x128xf32>
      %23 = arith.addf %20, %22 : vector<16x128xf32>
      %c0_20 = arith.constant 0 : index
      %c0_21 = arith.constant 0 : index
      %24 = vector.load %arg2[%c0_20, %c0_21] : memref<16x128xbf16, #tpu.memory_space<vmem>>, vector<16x128xbf16>
      %25 = arith.extf %24 : vector<16x128xbf16> to vector<16x128xf32>
      %26 = arith.addf %23, %25 : vector<16x128xf32>
      %cst_22 = arith.constant dense<0.000000e+00> : vector<16xf32>
      %27 = vector.multi_reduction <add>, %26, %cst_22 [1] : vector<16x128xf32> to vector<16xf32>
      %28 = vector.shape_cast %27 : vector<16xf32> to vector<16x1xf32>
      %cst_23 = arith.constant 1.280000e+02 : f32
      %29 = vector.broadcast %cst_23 : f32 to vector<16x1xf32>
      %30 = arith.divf %28, %29 : vector<16x1xf32>
      %31 = vector.broadcast %30 : vector<16x1xf32> to vector<16x128xf32>
      %32 = arith.subf %26, %31 : vector<16x128xf32>
      %33 = arith.mulf %32, %32 : vector<16x128xf32>
      %cst_24 = arith.constant dense<0.000000e+00> : vector<16xf32>
      %34 = vector.multi_reduction <add>, %33, %cst_24 [1] : vector<16x128xf32> to vector<16xf32>
      %35 = vector.shape_cast %34 : vector<16xf32> to vector<16x1xf32>
      %cst_25 = arith.constant 1.280000e+02 : f32
      %36 = vector.broadcast %cst_25 : f32 to vector<16x1xf32>
      %37 = arith.divf %35, %36 : vector<16x1xf32>
      %38 = vector.broadcast %30 : vector<16x1xf32> to vector<16x128xf32>
      %39 = arith.subf %26, %38 : vector<16x128xf32>
      %cst_26 = arith.constant 9.99999974E-6 : f32
      %40 = vector.broadcast %cst_26 : f32 to vector<16x1xf32>
      %41 = arith.addf %37, %40 : vector<16x1xf32>
      %42 = math.rsqrt %41 : vector<16x1xf32>
      %43 = vector.broadcast %42 : vector<16x1xf32> to vector<16x128xf32>
      %44 = arith.mulf %39, %43 : vector<16x128xf32>
      %c0_27 = arith.constant 0 : index
      %c0_28 = arith.constant 0 : index
      %45 = vector.load %arg7[%c0_27, %c0_28] : memref<1x128xf32, #tpu.memory_space<vmem>>, vector<1x128xf32>
      %46 = vector.broadcast %45 : vector<1x128xf32> to vector<16x128xf32>
      %47 = arith.mulf %44, %46 : vector<16x128xf32>
      %c0_29 = arith.constant 0 : index
      %c0_30 = arith.constant 0 : index
      %48 = vector.load %arg8[%c0_29, %c0_30] : memref<1x128xf32, #tpu.memory_space<vmem>>, vector<1x128xf32>
      %49 = vector.broadcast %48 : vector<1x128xf32> to vector<16x128xf32>
      %50 = arith.addf %47, %49 : vector<16x128xf32>
      %51 = arith.truncf %50 : vector<16x128xf32> to vector<16x128xbf16>
      %c0_31 = arith.constant 0 : index
      %c0_32 = arith.constant 0 : index
      %52 = vector.load %arg9[%c0_31, %c0_32] : memref<16x128xbf16, #tpu.memory_space<vmem>>, vector<16x128xbf16>
      tpu.vector_store %arg9[%c0_31, %c0_32], %51 {strides = array<i32>} : memref<16x128xbf16, #tpu.memory_space<vmem>>, vector<16x128xbf16>,
    } else {
    }
    return
  }
  func.func @transform_0(%arg0: i32, %arg1: i32) -> (i32, i32) {
    %c0_i32 = arith.constant 0 : i32
    %c0_i32_0 = arith.constant 0 : i32
    return %arg0, %c0_i32 : i32, i32
  }
  func.func @transform_1(%arg0: i32, %arg1: i32) -> (i32, i32) {
    %c0_i32 = arith.constant 0 : i32
    %c0_i32_0 = arith.constant 0 : i32
    return %c0_i32, %arg1 : i32, i32
  }
  func.func @transform_2(%arg0: i32, %arg1: i32) -> (i32, i32) {
    %c0_i32 = arith.constant 0 : i32
    %c0_i32_0 = arith.constant 0 : i32
    return %c0_i32, %arg1 : i32, i32
  }
  func.func @transform_3(%arg0: i32, %arg1: i32) -> (i32, i32) {
    %c0_i32 = arith.constant 0 : i32
    %c0_i32_0 = arith.constant 0 : i32
    return %arg1, %c0_i32 : i32, i32
  }
  func.func @transform_4(%arg0: i32, %arg1: i32) -> (i32, i32) {
    %c0_i32 = arith.constant 0 : i32
    %c0_i32_0 = arith.constant 0 : i32
    %c0_i32_1 = arith.constant 0 : i32
    return %c0_i32, %c0_i32_0 : i32, i32
  }
  func.func @transform_5(%arg0: i32, %arg1: i32) -> (i32, i32) {
    %c0_i32 = arith.constant 0 : i32
    %c0_i32_0 = arith.constant 0 : i32
    %c0_i32_1 = arith.constant 0 : i32
    return %c0_i32, %c0_i32_0 : i32, i32
  }
  func.func @transform_6(%arg0: i32, %arg1: i32) -> (i32, i32) {
    %c0_i32 = arith.constant 0 : i32
    %c0_i32_0 = arith.constant 0 : i32
    %c0_i32_1 = arith.constant 0 : i32
    return %c0_i32, %c0_i32_0 : i32, i32
  }
  func.func @transform_7(%arg0: i32, %arg1: i32) -> (i32, i32) {
    %c0_i32 = arith.constant 0 : i32
    %c0_i32_0 = arith.constant 0 : i32
    return %arg0, %c0_i32 : i32, i32
  }
}

module attributes {stable_mosaic.version = 11 : i64} {
  func.func @_ffn_add_ln_kernel(%arg0: i32, %arg1: i32, %arg2: memref<16x128xbf16, #tpu.memory_space<vmem>>, %arg3: memref<128x256xbf16, #tpu.memory_space<vmem>>, %arg4: memref<1x256xf32, #tpu.memory_space<vmem>>, %arg5: memref<256x128xbf16, #tpu.memory_space<vmem>>, %arg6: memref<1x128xf32, #tpu.memory_space<vmem>>, %arg7: memref<1x128xf32, #tpu.memory_space<vmem>>, %arg8: memref<1x128xf32, #tpu.memory_space<vmem>>, %arg9: memref<16x128xbf16, #tpu.memory_space<vmem>>, %arg10: memref<16x128xf32, #tpu.memory_space<vmem>>) attributes {dimension_semantics = [#tpu.dimension_semantics<parallel>, #tpu.dimension_semantics<arbitrary>], iteration_bounds = array<i64: 1, 1>, scalar_prefetch = 0 : i64, scratch_operands = 1 : i64, tpu.core_type = #tpu.core_type<tc>, window_params = [{transform_indices = @transform_0, window_bounds = array<i64: 16, 128>}, {transform_indices = @transform_1, window_bounds = array<i64: 128, 256>}, {transform_indices = @transform_2, window_bounds = array<i64: 1, 256>}, {transform_indices = @transform_3, window_bounds = array<i64: 256, 128>}, {pipeline_mode = #tpu.pipeline_mode<synchronous>, transform_indices = @transform_4, window_bounds = array<i64: 1, 128>}, {pipeline_mode = #tpu.pipeline_mode<synchronous>, transform_indices = @transform_5, window_bounds = array<i64: 1, 128>}, {pipeline_mode = #tpu.pipeline_mode<synchronous>, transform_indices = @transform_6, window_bounds = array<i64: 1, 128>}, {transform_indices = @transform_7, window_bounds = array<i64: 16, 128>}]} {
    %c0_i32 = arith.constant 0 : i32
    %0 = arith.cmpi eq, %arg1, %c0_i32 : i32
    %1 = arith.extui %0 : i1 to i32
    %c0_i32_0 = arith.constant 0 : i32
    %2 = arith.cmpi ne, %1, %c0_i32_0 : i32
    scf.if %2 {
      %cst_16 = arith.constant 0.000000e+00 : f32
      %20 = vector.broadcast %cst_16 : f32 to vector<16x128xf32>
      %c0_17 = arith.constant 0 : index
      %c0_18 = arith.constant 0 : index
      %21 = vector.load %arg10[%c0_17, %c0_18] : memref<16x128xf32, #tpu.memory_space<vmem>>, vector<16x128xf32>
      tpu.vector_store %arg10[%c0_17, %c0_18], %20 {strides = array<i32>} : memref<16x128xf32, #tpu.memory_space<vmem>>, vector<16x128xf32>,
    } else {
    }
    %c0 = arith.constant 0 : index
    %c0_1 = arith.constant 0 : index
    %3 = vector.load %arg2[%c0, %c0_1] : memref<16x128xbf16, #tpu.memory_space<vmem>>, vector<16x128xbf16>
    %c0_2 = arith.constant 0 : index
    %c0_3 = arith.constant 0 : index
    %4 = vector.load %arg3[%c0_2, %c0_3] : memref<128x256xbf16, #tpu.memory_space<vmem>>, vector<128x256xbf16>
    %cst = arith.constant dense<0.000000e+00> : vector<16x256xf32>
    %5 = tpu.matmul %3, %4, %cst {dimension_numbers = #tpu.dot_dimension_numbers<[1], [0], [0], [1], [0, 0, 1, 1], [], []>} : vector<16x128xbf16>, vector<128x256xbf16>, vector<16x256xf32> -> vector<16x256xf32>
    %c0_4 = arith.constant 0 : index
    %c0_5 = arith.constant 0 : index
    %6 = vector.load %arg4[%c0_4, %c0_5] : memref<1x256xf32, #tpu.memory_space<vmem>>, vector<1x256xf32>
    %7 = vector.broadcast %6 : vector<1x256xf32> to vector<16x256xf32>
    %8 = arith.addf %5, %7 : vector<16x256xf32>
    %cst_6 = arith.constant 0.000000e+00 : f32
    %9 = vector.broadcast %cst_6 : f32 to vector<16x256xf32>
    %10 = arith.maximumf %8, %9 : vector<16x256xf32>
    %11 = arith.truncf %10 : vector<16x256xf32> to vector<16x256xbf16>
    %c0_7 = arith.constant 0 : index
    %c0_8 = arith.constant 0 : index
    %12 = vector.load %arg10[%c0_7, %c0_8] : memref<16x128xf32, #tpu.memory_space<vmem>>, vector<16x128xf32>
    %c0_9 = arith.constant 0 : index
    %c0_10 = arith.constant 0 : index
    %13 = vector.load %arg5[%c0_9, %c0_10] : memref<256x128xbf16, #tpu.memory_space<vmem>>, vector<256x128xbf16>
    %cst_11 = arith.constant dense<0.000000e+00> : vector<16x128xf32>
    %14 = tpu.matmul %11, %13, %cst_11 {dimension_numbers = #tpu.dot_dimension_numbers<[1], [0], [0], [1], [0, 0, 1, 1], [], []>} : vector<16x256xbf16>, vector<256x128xbf16>, vector<16x128xf32> -> vector<16x128xf32>
    %15 = arith.addf %12, %14 : vector<16x128xf32>
    %c0_12 = arith.constant 0 : index
    %c0_13 = arith.constant 0 : index
    %16 = vector.load %arg10[%c0_12, %c0_13] : memref<16x128xf32, #tpu.memory_space<vmem>>, vector<16x128xf32>
    tpu.vector_store %arg10[%c0_12, %c0_13], %15 {strides = array<i32>} : memref<16x128xf32, #tpu.memory_space<vmem>>, vector<16x128xf32>,
    %c0_i32_14 = arith.constant 0 : i32
    %17 = arith.cmpi eq, %arg1, %c0_i32_14 : i32
    %18 = arith.extui %17 : i1 to i32
    %c0_i32_15 = arith.constant 0 : i32
    %19 = arith.cmpi ne, %18, %c0_i32_15 : i32
    scf.if %19 {
      %c0_16 = arith.constant 0 : index
      %c0_17 = arith.constant 0 : index
      %20 = vector.load %arg10[%c0_16, %c0_17] : memref<16x128xf32, #tpu.memory_space<vmem>>, vector<16x128xf32>
      %c0_18 = arith.constant 0 : index
      %c0_19 = arith.constant 0 : index
      %21 = vector.load %arg6[%c0_18, %c0_19] : memref<1x128xf32, #tpu.memory_space<vmem>>, vector<1x128xf32>
      %22 = vector.broadcast %21 : vector<1x128xf32> to vector<16x128xf32>
      %23 = arith.addf %20, %22 : vector<16x128xf32>
      %c0_20 = arith.constant 0 : index
      %c0_21 = arith.constant 0 : index
      %24 = vector.load %arg2[%c0_20, %c0_21] : memref<16x128xbf16, #tpu.memory_space<vmem>>, vector<16x128xbf16>
      %25 = arith.extf %24 : vector<16x128xbf16> to vector<16x128xf32>
      %26 = arith.addf %23, %25 : vector<16x128xf32>
      %cst_22 = arith.constant dense<0.000000e+00> : vector<16xf32>
      %27 = vector.multi_reduction <add>, %26, %cst_22 [1] : vector<16x128xf32> to vector<16xf32>
      %28 = vector.shape_cast %27 : vector<16xf32> to vector<16x1xf32>
      %cst_23 = arith.constant 1.280000e+02 : f32
      %29 = vector.broadcast %cst_23 : f32 to vector<16x1xf32>
      %30 = arith.divf %28, %29 : vector<16x1xf32>
      %31 = vector.broadcast %30 : vector<16x1xf32> to vector<16x128xf32>
      %32 = arith.subf %26, %31 : vector<16x128xf32>
      %33 = arith.mulf %32, %32 : vector<16x128xf32>
      %cst_24 = arith.constant dense<0.000000e+00> : vector<16xf32>
      %34 = vector.multi_reduction <add>, %33, %cst_24 [1] : vector<16x128xf32> to vector<16xf32>
      %35 = vector.shape_cast %34 : vector<16xf32> to vector<16x1xf32>
      %cst_25 = arith.constant 1.280000e+02 : f32
      %36 = vector.broadcast %cst_25 : f32 to vector<16x1xf32>
      %37 = arith.divf %35, %36 : vector<16x1xf32>
      %38 = vector.broadcast %30 : vector<16x1xf32> to vector<16x128xf32>
      %39 = arith.subf %26, %38 : vector<16x128xf32>
      %cst_26 = arith.constant 9.99999974E-6 : f32
      %40 = vector.broadcast %cst_26 : f32 to vector<16x1xf32>
      %41 = arith.addf %37, %40 : vector<16x1xf32>
      %42 = math.rsqrt %41 : vector<16x1xf32>
      %43 = vector.broadcast %42 : vector<16x1xf32> to vector<16x128xf32>
      %44 = arith.mulf %39, %43 : vector<16x128xf32>
      %c0_27 = arith.constant 0 : index
      %c0_28 = arith.constant 0 : index
      %45 = vector.load %arg7[%c0_27, %c0_28] : memref<1x128xf32, #tpu.memory_space<vmem>>, vector<1x128xf32>
      %46 = vector.broadcast %45 : vector<1x128xf32> to vector<16x128xf32>
      %47 = arith.mulf %44, %46 : vector<16x128xf32>
      %c0_29 = arith.constant 0 : index
      %c0_30 = arith.constant 0 : index
      %48 = vector.load %arg8[%c0_29, %c0_30] : memref<1x128xf32, #tpu.memory_space<vmem>>, vector<1x128xf32>
      %49 = vector.broadcast %48 : vector<1x128xf32> to vector<16x128xf32>
      %50 = arith.addf %47, %49 : vector<16x128xf32>
      %51 = arith.truncf %50 : vector<16x128xf32> to vector<16x128xbf16>
      %c0_31 = arith.constant 0 : index
      %c0_32 = arith.constant 0 : index
      %52 = vector.load %arg9[%c0_31, %c0_32] : memref<16x128xbf16, #tpu.memory_space<vmem>>, vector<16x128xbf16>
      tpu.vector_store %arg9[%c0_31, %c0_32], %51 {strides = array<i32>} : memref<16x128xbf16, #tpu.memory_space<vmem>>, vector<16x128xbf16>,
    } else {
    }
    return
  }
  func.func @transform_0(%arg0: i32, %arg1: i32) -> (i32, i32) {
    %c0_i32 = arith.constant 0 : i32
    %c0_i32_0 = arith.constant 0 : i32
    return %arg0, %c0_i32 : i32, i32
  }
  func.func @transform_1(%arg0: i32, %arg1: i32) -> (i32, i32) {
    %c0_i32 = arith.constant 0 : i32
    %c0_i32_0 = arith.constant 0 : i32
    return %c0_i32, %arg1 : i32, i32
  }
  func.func @transform_2(%arg0: i32, %arg1: i32) -> (i32, i32) {
    %c0_i32 = arith.constant 0 : i32
    %c0_i32_0 = arith.constant 0 : i32
    return %c0_i32, %arg1 : i32, i32
  }
  func.func @transform_3(%arg0: i32, %arg1: i32) -> (i32, i32) {
    %c0_i32 = arith.constant 0 : i32
    %c0_i32_0 = arith.constant 0 : i32
    return %arg1, %c0_i32 : i32, i32
  }
  func.func @transform_4(%arg0: i32, %arg1: i32) -> (i32, i32) {
    %c0_i32 = arith.constant 0 : i32
    %c0_i32_0 = arith.constant 0 : i32
    %c0_i32_1 = arith.constant 0 : i32
    return %c0_i32, %c0_i32_0 : i32, i32
  }
  func.func @transform_5(%arg0: i32, %arg1: i32) -> (i32, i32) {
    %c0_i32 = arith.constant 0 : i32
    %c0_i32_0 = arith.constant 0 : i32
    %c0_i32_1 = arith.constant 0 : i32
    return %c0_i32, %c0_i32_0 : i32, i32
  }
  func.func @transform_6(%arg0: i32, %arg1: i32) -> (i32, i32) {
    %c0_i32 = arith.constant 0 : i32
    %c0_i32_0 = arith.constant 0 : i32
    %c0_i32_1 = arith.constant 0 : i32
    return %c0_i32, %c0_i32_0 : i32, i32
  }
  func.func @transform_7(%arg0: i32, %arg1: i32) -> (i32, i32) {
    %c0_i32 = arith.constant 0 : i32
    %c0_i32_0 = arith.constant 0 : i32
    return %arg0, %c0_i32 : i32, i32
  }
}

module attributes {stable_mosaic.version = 11 : i64} {
  func.func @_matmul_kernel(%arg0: i32, %arg1: i32, %arg2: i32, %arg3: memref<16x128xbf16, #tpu.memory_space<vmem>>, %arg4: memref<128x256xbf16, #tpu.memory_space<vmem>>, %arg5: memref<1x256xf32, #tpu.memory_space<vmem>>, %arg6: memref<16x256xbf16, #tpu.memory_space<vmem>>, %arg7: memref<16x256xf32, #tpu.memory_space<vmem>>) attributes {dimension_semantics = [#tpu.dimension_semantics<parallel>, #tpu.dimension_semantics<parallel>, #tpu.dimension_semantics<arbitrary>], iteration_bounds = array<i64: 1, 1, 1>, scalar_prefetch = 0 : i64, scratch_operands = 1 : i64, tpu.core_type = #tpu.core_type<tc>, window_params = [{transform_indices = @transform_0, window_bounds = array<i64: 16, 128>}, {transform_indices = @transform_1, window_bounds = array<i64: 128, 256>}, {transform_indices = @transform_2, window_bounds = array<i64: 1, 256>}, {transform_indices = @transform_3, window_bounds = array<i64: 16, 256>}]} {
    %c0_i32 = arith.constant 0 : i32
    %0 = arith.cmpi eq, %arg2, %c0_i32 : i32
    %1 = arith.extui %0 : i1 to i32
    %c0_i32_0 = arith.constant 0 : i32
    %2 = arith.cmpi ne, %1, %c0_i32_0 : i32
    scf.if %2 {
      %cst_10 = arith.constant 0.000000e+00 : f32
      %12 = vector.broadcast %cst_10 : f32 to vector<16x256xf32>
      %c0_11 = arith.constant 0 : index
      %c0_12 = arith.constant 0 : index
      %13 = vector.load %arg7[%c0_11, %c0_12] : memref<16x256xf32, #tpu.memory_space<vmem>>, vector<16x256xf32>
      tpu.vector_store %arg7[%c0_11, %c0_12], %12 {strides = array<i32>} : memref<16x256xf32, #tpu.memory_space<vmem>>, vector<16x256xf32>,
    } else {
    }
    %c0 = arith.constant 0 : index
    %c0_1 = arith.constant 0 : index
    %3 = vector.load %arg7[%c0, %c0_1] : memref<16x256xf32, #tpu.memory_space<vmem>>, vector<16x256xf32>
    %c0_2 = arith.constant 0 : index
    %c0_3 = arith.constant 0 : index
    %4 = vector.load %arg3[%c0_2, %c0_3] : memref<16x128xbf16, #tpu.memory_space<vmem>>, vector<16x128xbf16>
    %c0_4 = arith.constant 0 : index
    %c0_5 = arith.constant 0 : index
    %5 = vector.load %arg4[%c0_4, %c0_5] : memref<128x256xbf16, #tpu.memory_space<vmem>>, vector<128x256xbf16>
    %cst = arith.constant dense<0.000000e+00> : vector<16x256xf32>
    %6 = tpu.matmul %4, %5, %cst {dimension_numbers = #tpu.dot_dimension_numbers<[1], [0], [0], [1], [0, 0, 1, 1], [], []>} : vector<16x128xbf16>, vector<128x256xbf16>, vector<16x256xf32> -> vector<16x256xf32>
    %7 = arith.addf %3, %6 : vector<16x256xf32>
    %c0_6 = arith.constant 0 : index
    %c0_7 = arith.constant 0 : index
    %8 = vector.load %arg7[%c0_6, %c0_7] : memref<16x256xf32, #tpu.memory_space<vmem>>, vector<16x256xf32>
    tpu.vector_store %arg7[%c0_6, %c0_7], %7 {strides = array<i32>} : memref<16x256xf32, #tpu.memory_space<vmem>>, vector<16x256xf32>,
    %c0_i32_8 = arith.constant 0 : i32
    %9 = arith.cmpi eq, %arg2, %c0_i32_8 : i32
    %10 = arith.extui %9 : i1 to i32
    %c0_i32_9 = arith.constant 0 : i32
    %11 = arith.cmpi ne, %10, %c0_i32_9 : i32
    scf.if %11 {
      %c0_10 = arith.constant 0 : index
      %c0_11 = arith.constant 0 : index
      %12 = vector.load %arg7[%c0_10, %c0_11] : memref<16x256xf32, #tpu.memory_space<vmem>>, vector<16x256xf32>
      %c0_12 = arith.constant 0 : index
      %c0_13 = arith.constant 0 : index
      %13 = vector.load %arg5[%c0_12, %c0_13] : memref<1x256xf32, #tpu.memory_space<vmem>>, vector<1x256xf32>
      %14 = vector.broadcast %13 : vector<1x256xf32> to vector<16x256xf32>
      %15 = arith.addf %12, %14 : vector<16x256xf32>
      %16 = arith.truncf %15 : vector<16x256xf32> to vector<16x256xbf16>
      %c0_14 = arith.constant 0 : index
      %c0_15 = arith.constant 0 : index
      %17 = vector.load %arg6[%c0_14, %c0_15] : memref<16x256xbf16, #tpu.memory_space<vmem>>, vector<16x256xbf16>
      tpu.vector_store %arg6[%c0_14, %c0_15], %16 {strides = array<i32>} : memref<16x256xbf16, #tpu.memory_space<vmem>>, vector<16x256xbf16>,
    } else {
    }
    return
  }
  func.func @transform_0(%arg0: i32, %arg1: i32, %arg2: i32) -> (i32, i32) {
    %c0_i32 = arith.constant 0 : i32
    return %arg0, %arg2 : i32, i32
  }
  func.func @transform_1(%arg0: i32, %arg1: i32, %arg2: i32) -> (i32, i32) {
    %c0_i32 = arith.constant 0 : i32
    return %arg2, %arg1 : i32, i32
  }
  func.func @transform_2(%arg0: i32, %arg1: i32, %arg2: i32) -> (i32, i32) {
    %c0_i32 = arith.constant 0 : i32
    %c0_i32_0 = arith.constant 0 : i32
    return %c0_i32, %arg1 : i32, i32
  }
  func.func @transform_3(%arg0: i32, %arg1: i32, %arg2: i32) -> (i32, i32) {
    %c0_i32 = arith.constant 0 : i32
    return %arg0, %arg1 : i32, i32
  }
}

module attributes {stable_mosaic.version = 11 : i64} {
  func.func @_matmul_kernel(%arg0: i32, %arg1: i32, %arg2: i32, %arg3: memref<16x128xbf16, #tpu.memory_space<vmem>>, %arg4: memref<128x128xbf16, #tpu.memory_space<vmem>>, %arg5: memref<1x128xf32, #tpu.memory_space<vmem>>, %arg6: memref<16x128xbf16, #tpu.memory_space<vmem>>, %arg7: memref<16x128xf32, #tpu.memory_space<vmem>>) attributes {dimension_semantics = [#tpu.dimension_semantics<parallel>, #tpu.dimension_semantics<parallel>, #tpu.dimension_semantics<arbitrary>], iteration_bounds = array<i64: 1, 1, 1>, scalar_prefetch = 0 : i64, scratch_operands = 1 : i64, tpu.core_type = #tpu.core_type<tc>, window_params = [{transform_indices = @transform_0, window_bounds = array<i64: 16, 128>}, {transform_indices = @transform_1, window_bounds = array<i64: 128, 128>}, {transform_indices = @transform_2, window_bounds = array<i64: 1, 128>}, {transform_indices = @transform_3, window_bounds = array<i64: 16, 128>}]} {
    %c0_i32 = arith.constant 0 : i32
    %0 = arith.cmpi eq, %arg2, %c0_i32 : i32
    %1 = arith.extui %0 : i1 to i32
    %c0_i32_0 = arith.constant 0 : i32
    %2 = arith.cmpi ne, %1, %c0_i32_0 : i32
    scf.if %2 {
      %cst_10 = arith.constant 0.000000e+00 : f32
      %12 = vector.broadcast %cst_10 : f32 to vector<16x128xf32>
      %c0_11 = arith.constant 0 : index
      %c0_12 = arith.constant 0 : index
      %13 = vector.load %arg7[%c0_11, %c0_12] : memref<16x128xf32, #tpu.memory_space<vmem>>, vector<16x128xf32>
      tpu.vector_store %arg7[%c0_11, %c0_12], %12 {strides = array<i32>} : memref<16x128xf32, #tpu.memory_space<vmem>>, vector<16x128xf32>,
    } else {
    }
    %c0 = arith.constant 0 : index
    %c0_1 = arith.constant 0 : index
    %3 = vector.load %arg7[%c0, %c0_1] : memref<16x128xf32, #tpu.memory_space<vmem>>, vector<16x128xf32>
    %c0_2 = arith.constant 0 : index
    %c0_3 = arith.constant 0 : index
    %4 = vector.load %arg3[%c0_2, %c0_3] : memref<16x128xbf16, #tpu.memory_space<vmem>>, vector<16x128xbf16>
    %c0_4 = arith.constant 0 : index
    %c0_5 = arith.constant 0 : index
    %5 = vector.load %arg4[%c0_4, %c0_5] : memref<128x128xbf16, #tpu.memory_space<vmem>>, vector<128x128xbf16>
    %cst = arith.constant dense<0.000000e+00> : vector<16x128xf32>
    %6 = tpu.matmul %4, %5, %cst {dimension_numbers = #tpu.dot_dimension_numbers<[1], [0], [0], [1], [0, 0, 1, 1], [], []>} : vector<16x128xbf16>, vector<128x128xbf16>, vector<16x128xf32> -> vector<16x128xf32>
    %7 = arith.addf %3, %6 : vector<16x128xf32>
    %c0_6 = arith.constant 0 : index
    %c0_7 = arith.constant 0 : index
    %8 = vector.load %arg7[%c0_6, %c0_7] : memref<16x128xf32, #tpu.memory_space<vmem>>, vector<16x128xf32>
    tpu.vector_store %arg7[%c0_6, %c0_7], %7 {strides = array<i32>} : memref<16x128xf32, #tpu.memory_space<vmem>>, vector<16x128xf32>,
    %c0_i32_8 = arith.constant 0 : i32
    %9 = arith.cmpi eq, %arg2, %c0_i32_8 : i32
    %10 = arith.extui %9 : i1 to i32
    %c0_i32_9 = arith.constant 0 : i32
    %11 = arith.cmpi ne, %10, %c0_i32_9 : i32
    scf.if %11 {
      %c0_10 = arith.constant 0 : index
      %c0_11 = arith.constant 0 : index
      %12 = vector.load %arg7[%c0_10, %c0_11] : memref<16x128xf32, #tpu.memory_space<vmem>>, vector<16x128xf32>
      %c0_12 = arith.constant 0 : index
      %c0_13 = arith.constant 0 : index
      %13 = vector.load %arg5[%c0_12, %c0_13] : memref<1x128xf32, #tpu.memory_space<vmem>>, vector<1x128xf32>
      %14 = vector.broadcast %13 : vector<1x128xf32> to vector<16x128xf32>
      %15 = arith.addf %12, %14 : vector<16x128xf32>
      %16 = arith.truncf %15 : vector<16x128xf32> to vector<16x128xbf16>
      %c0_14 = arith.constant 0 : index
      %c0_15 = arith.constant 0 : index
      %17 = vector.load %arg6[%c0_14, %c0_15] : memref<16x128xbf16, #tpu.memory_space<vmem>>, vector<16x128xbf16>
      tpu.vector_store %arg6[%c0_14, %c0_15], %16 {strides = array<i32>} : memref<16x128xbf16, #tpu.memory_space<vmem>>, vector<16x128xbf16>,
    } else {
    }
    return
  }
  func.func @transform_0(%arg0: i32, %arg1: i32, %arg2: i32) -> (i32, i32) {
    %c0_i32 = arith.constant 0 : i32
    return %arg0, %arg2 : i32, i32
  }
  func.func @transform_1(%arg0: i32, %arg1: i32, %arg2: i32) -> (i32, i32) {
    %c0_i32 = arith.constant 0 : i32
    return %arg2, %arg1 : i32, i32
  }
  func.func @transform_2(%arg0: i32, %arg1: i32, %arg2: i32) -> (i32, i32) {
    %c0_i32 = arith.constant 0 : i32
    %c0_i32_0 = arith.constant 0 : i32
    return %c0_i32, %arg1 : i32, i32
  }
  func.func @transform_3(%arg0: i32, %arg1: i32, %arg2: i32) -> (i32, i32) {
    %c0_i32 = arith.constant 0 : i32
    return %arg0, %arg1 : i32, i32
  }
}

module attributes {stable_mosaic.version = 11 : i64} {
  func.func @kernel(%arg0: i32, %arg1: i32, %arg2: i32, %arg3: memref<1x8x128xbf16, #tpu.memory_space<vmem>>, %arg4: memref<1x8x128xbf16, #tpu.memory_space<vmem>>, %arg5: memref<1x8x128xbf16, #tpu.memory_space<vmem>>, %arg6: memref<1x8x128xbf16, #tpu.memory_space<vmem>>, %arg7: memref<4x8x1xf32, #tpu.memory_space<vmem>>, %arg8: memref<4x8x1xf32, #tpu.memory_space<vmem>>, %arg9: memref<4x8x32xf32, #tpu.memory_space<vmem>>) attributes {dimension_semantics = [#tpu.dimension_semantics<parallel>, #tpu.dimension_semantics<parallel>, #tpu.dimension_semantics<arbitrary>], iteration_bounds = array<i64: 2, 1, 1>, scalar_prefetch = 0 : i64, scratch_operands = 3 : i64, tpu.core_type = #tpu.core_type<tc>, window_params = [{transform_indices = @transform_0, window_bounds = array<i64: 1, 8, 128>}, {transform_indices = @transform_1, window_bounds = array<i64: 1, 8, 128>}, {transform_indices = @transform_2, window_bounds = array<i64: 1, 8, 128>}, {transform_indices = @transform_3, window_bounds = array<i64: 1, 8, 128>}]} {
    %c0_i32 = arith.constant 0 : i32
    %0 = arith.cmpi eq, %arg2, %c0_i32 : i32
    %1 = arith.extui %0 : i1 to i32
    %c0_i32_0 = arith.constant 0 : i32
    %2 = arith.cmpi ne, %1, %c0_i32_0 : i32
    scf.if %2 {
      %cst_95 = arith.constant 0xFF800000 : f32
      %160 = vector.broadcast %cst_95 : f32 to vector<4x8x1xf32>
      %c0_96 = arith.constant 0 : index
      %c0_97 = arith.constant 0 : index
      %c0_98 = arith.constant 0 : index
      %161 = vector.load %arg7[%c0_96, %c0_97, %c0_98] : memref<4x8x1xf32, #tpu.memory_space<vmem>>, vector<4x8x1xf32>
      tpu.vector_store %arg7[%c0_96, %c0_97, %c0_98], %160 {strides = array<i32>} : memref<4x8x1xf32, #tpu.memory_space<vmem>>, vector<4x8x1xf32>,
      %cst_99 = arith.constant 0.000000e+00 : f32
      %162 = vector.broadcast %cst_99 : f32 to vector<4x8x1xf32>
      %c0_100 = arith.constant 0 : index
      %c0_101 = arith.constant 0 : index
      %c0_102 = arith.constant 0 : index
      %163 = vector.load %arg8[%c0_100, %c0_101, %c0_102] : memref<4x8x1xf32, #tpu.memory_space<vmem>>, vector<4x8x1xf32>
      tpu.vector_store %arg8[%c0_100, %c0_101, %c0_102], %162 {strides = array<i32>} : memref<4x8x1xf32, #tpu.memory_space<vmem>>, vector<4x8x1xf32>,
      %cst_103 = arith.constant 0.000000e+00 : f32
      %164 = vector.broadcast %cst_103 : f32 to vector<4x8x32xf32>
      %c0_104 = arith.constant 0 : index
      %c0_105 = arith.constant 0 : index
      %c0_106 = arith.constant 0 : index
      %165 = vector.load %arg9[%c0_104, %c0_105, %c0_106] : memref<4x8x32xf32, #tpu.memory_space<vmem>>, vector<4x8x32xf32>
      tpu.vector_store %arg9[%c0_104, %c0_105, %c0_106], %164 {strides = array<i32>} : memref<4x8x32xf32, #tpu.memory_space<vmem>>, vector<4x8x32xf32>,
    } else {
    }
    %c0 = arith.constant 0 : index
    %c0_1 = arith.constant 0 : index
    %c0_2 = arith.constant 0 : index
    %3 = vector.load %arg3[%c0, %c0_1, %c0_2] : memref<1x8x128xbf16, #tpu.memory_space<vmem>>, vector<1x8x128xbf16>
    %4 = vector.shape_cast %3 : vector<1x8x128xbf16> to vector<8x128xbf16>
    %c0_3 = arith.constant 0 : index
    %c0_4 = arith.constant 0 : index
    %c0_5 = arith.constant 0 : index
    %5 = vector.load %arg4[%c0_3, %c0_4, %c0_5] : memref<1x8x128xbf16, #tpu.memory_space<vmem>>, vector<1x8x128xbf16>
    %6 = vector.shape_cast %5 : vector<1x8x128xbf16> to vector<8x128xbf16>
    %c0_6 = arith.constant 0 : index
    %c0_7 = arith.constant 0 : index
    %c0_8 = arith.constant 0 : index
    %7 = vector.load %arg5[%c0_6, %c0_7, %c0_8] : memref<1x8x128xbf16, #tpu.memory_space<vmem>>, vector<1x8x128xbf16>
    %8 = vector.shape_cast %7 : vector<1x8x128xbf16> to vector<8x128xbf16>
    %9 = vector.extract_strided_slice %4 {offsets = [0, 0], sizes = [8, 32], strides = [1, 1]} : vector<8x128xbf16> to vector<8x32xbf16>
    %10 = vector.extract_strided_slice %6 {offsets = [0, 0], sizes = [8, 32], strides = [1, 1]} : vector<8x128xbf16> to vector<8x32xbf16>
    %11 = vector.extract_strided_slice %8 {offsets = [0, 0], sizes = [8, 32], strides = [1, 1]} : vector<8x128xbf16> to vector<8x32xbf16>
    %12 = tpu.transpose %10, [1, 0] : vector<8x32xbf16> -> vector<32x8xbf16>
    %cst = arith.constant dense<0.000000e+00> : vector<8x8xf32>
    %13 = tpu.matmul %9, %12, %cst {dimension_numbers = #tpu.dot_dimension_numbers<[1], [0], [0], [1], [0, 0, 1, 1], [], []>} : vector<8x32xbf16>, vector<32x8xbf16>, vector<8x8xf32> -> vector<8x8xf32>
    %c0_9 = arith.constant 0 : index
    %c0_10 = arith.constant 0 : index
    %c0_11 = arith.constant 0 : index
    %14 = vector.load %arg7[%c0_9, %c0_10, %c0_11] : memref<4x8x1xf32, #tpu.memory_space<vmem>>, vector<1x8x1xf32>
    %15 = vector.shape_cast %14 : vector<1x8x1xf32> to vector<8x1xf32>
    %cst_12 = arith.constant dense<0xFF800000> : vector<8xf32>
    %16 = vector.multi_reduction <maximumf>, %13, %cst_12 [1] : vector<8x8xf32> to vector<8xf32>
    %17 = vector.shape_cast %16 : vector<8xf32> to vector<8x1xf32>
    %18 = arith.maximumf %15, %17 : vector<8x1xf32>
    %19 = arith.subf %15, %18 : vector<8x1xf32>
    %20 = math.exp %19 : vector<8x1xf32>
    %21 = vector.broadcast %18 : vector<8x1xf32> to vector<8x8xf32>
    %22 = arith.subf %13, %21 : vector<8x8xf32>
    %23 = math.exp %22 : vector<8x8xf32>
    %c0_13 = arith.constant 0 : index
    %c0_14 = arith.constant 0 : index
    %c0_15 = arith.constant 0 : index
    %24 = vector.load %arg8[%c0_13, %c0_14, %c0_15] : memref<4x8x1xf32, #tpu.memory_space<vmem>>, vector<1x8x1xf32>
    %25 = vector.shape_cast %24 : vector<1x8x1xf32> to vector<8x1xf32>
    %26 = arith.mulf %20, %25 : vector<8x1xf32>
    %cst_16 = arith.constant dense<0.000000e+00> : vector<8xf32>
    %27 = vector.multi_reduction <add>, %23, %cst_16 [1] : vector<8x8xf32> to vector<8xf32>
    %28 = vector.shape_cast %27 : vector<8xf32> to vector<8x1xf32>
    %29 = arith.addf %26, %28 : vector<8x1xf32>
    %c0_17 = arith.constant 0 : index
    %c0_18 = arith.constant 0 : index
    %c0_19 = arith.constant 0 : index
    %30 = vector.load %arg8[%c0_17, %c0_18, %c0_19] : memref<4x8x1xf32, #tpu.memory_space<vmem>>, vector<1x8x1xf32>
    %31 = vector.shape_cast %30 : vector<1x8x1xf32> to vector<8x1xf32>
    %32 = vector.shape_cast %29 : vector<8x1xf32> to vector<1x8x1xf32>
    tpu.vector_store %arg8[%c0_17, %c0_18, %c0_19], %32 {strides = array<i32>} : memref<4x8x1xf32, #tpu.memory_space<vmem>>, vector<1x8x1xf32>,
    %c0_20 = arith.constant 0 : index
    %c0_21 = arith.constant 0 : index
    %c0_22 = arith.constant 0 : index
    %33 = vector.load %arg9[%c0_20, %c0_21, %c0_22] : memref<4x8x32xf32, #tpu.memory_space<vmem>>, vector<1x8x32xf32>
    %34 = vector.shape_cast %33 : vector<1x8x32xf32> to vector<8x32xf32>
    %35 = vector.broadcast %20 : vector<8x1xf32> to vector<8x32xf32>
    %36 = arith.mulf %35, %34 : vector<8x32xf32>
    %37 = arith.truncf %23 : vector<8x8xf32> to vector<8x8xbf16>
    %cst_23 = arith.constant dense<0.000000e+00> : vector<8x32xf32>
    %38 = tpu.matmul %37, %11, %cst_23 {dimension_numbers = #tpu.dot_dimension_numbers<[1], [0], [0], [1], [0, 0, 1, 1], [], []>} : vector<8x8xbf16>, vector<8x32xbf16>, vector<8x32xf32> -> vector<8x32xf32>
    %39 = arith.addf %36, %38 : vector<8x32xf32>
    %c0_24 = arith.constant 0 : index
    %c0_25 = arith.constant 0 : index
    %c0_26 = arith.constant 0 : index
    %40 = vector.load %arg9[%c0_24, %c0_25, %c0_26] : memref<4x8x32xf32, #tpu.memory_space<vmem>>, vector<1x8x32xf32>
    %41 = vector.shape_cast %40 : vector<1x8x32xf32> to vector<8x32xf32>
    %42 = vector.shape_cast %39 : vector<8x32xf32> to vector<1x8x32xf32>
    tpu.vector_store %arg9[%c0_24, %c0_25, %c0_26], %42 {strides = array<i32>} : memref<4x8x32xf32, #tpu.memory_space<vmem>>, vector<1x8x32xf32>,
    %c0_27 = arith.constant 0 : index
    %c0_28 = arith.constant 0 : index
    %c0_29 = arith.constant 0 : index
    %43 = vector.load %arg7[%c0_27, %c0_28, %c0_29] : memref<4x8x1xf32, #tpu.memory_space<vmem>>, vector<1x8x1xf32>
    %44 = vector.shape_cast %43 : vector<1x8x1xf32> to vector<8x1xf32>
    %45 = vector.shape_cast %18 : vector<8x1xf32> to vector<1x8x1xf32>
    tpu.vector_store %arg7[%c0_27, %c0_28, %c0_29], %45 {strides = array<i32>} : memref<4x8x1xf32, #tpu.memory_space<vmem>>, vector<1x8x1xf32>,
    %46 = vector.extract_strided_slice %4 {offsets = [0, 32], sizes = [8, 32], strides = [1, 1]} : vector<8x128xbf16> to vector<8x32xbf16>
    %47 = vector.extract_strided_slice %6 {offsets = [0, 32], sizes = [8, 32], strides = [1, 1]} : vector<8x128xbf16> to vector<8x32xbf16>
    %48 = vector.extract_strided_slice %8 {offsets = [0, 32], sizes = [8, 32], strides = [1, 1]} : vector<8x128xbf16> to vector<8x32xbf16>
    %49 = tpu.transpose %47, [1, 0] : vector<8x32xbf16> -> vector<32x8xbf16>
    %cst_30 = arith.constant dense<0.000000e+00> : vector<8x8xf32>
    %50 = tpu.matmul %46, %49, %cst_30 {dimension_numbers = #tpu.dot_dimension_numbers<[1], [0], [0], [1], [0, 0, 1, 1], [], []>} : vector<8x32xbf16>, vector<32x8xbf16>, vector<8x8xf32> -> vector<8x8xf32>
    %c1 = arith.constant 1 : index
    %c0_31 = arith.constant 0 : index
    %c0_32 = arith.constant 0 : index
    %51 = vector.load %arg7[%c1, %c0_31, %c0_32] : memref<4x8x1xf32, #tpu.memory_space<vmem>>, vector<1x8x1xf32>
    %52 = vector.shape_cast %51 : vector<1x8x1xf32> to vector<8x1xf32>
    %cst_33 = arith.constant dense<0xFF800000> : vector<8xf32>
    %53 = vector.multi_reduction <maximumf>, %50, %cst_33 [1] : vector<8x8xf32> to vector<8xf32>
    %54 = vector.shape_cast %53 : vector<8xf32> to vector<8x1xf32>
    %55 = arith.maximumf %52, %54 : vector<8x1xf32>
    %56 = arith.subf %52, %55 : vector<8x1xf32>
    %57 = math.exp %56 : vector<8x1xf32>
    %58 = vector.broadcast %55 : vector<8x1xf32> to vector<8x8xf32>
    %59 = arith.subf %50, %58 : vector<8x8xf32>
    %60 = math.exp %59 : vector<8x8xf32>
    %c1_34 = arith.constant 1 : index
    %c0_35 = arith.constant 0 : index
    %c0_36 = arith.constant 0 : index
    %61 = vector.load %arg8[%c1_34, %c0_35, %c0_36] : memref<4x8x1xf32, #tpu.memory_space<vmem>>, vector<1x8x1xf32>
    %62 = vector.shape_cast %61 : vector<1x8x1xf32> to vector<8x1xf32>
    %63 = arith.mulf %57, %62 : vector<8x1xf32>
    %cst_37 = arith.constant dense<0.000000e+00> : vector<8xf32>
    %64 = vector.multi_reduction <add>, %60, %cst_37 [1] : vector<8x8xf32> to vector<8xf32>
    %65 = vector.shape_cast %64 : vector<8xf32> to vector<8x1xf32>
    %66 = arith.addf %63, %65 : vector<8x1xf32>
    %c1_38 = arith.constant 1 : index
    %c0_39 = arith.constant 0 : index
    %c0_40 = arith.constant 0 : index
    %67 = vector.load %arg8[%c1_38, %c0_39, %c0_40] : memref<4x8x1xf32, #tpu.memory_space<vmem>>, vector<1x8x1xf32>
    %68 = vector.shape_cast %67 : vector<1x8x1xf32> to vector<8x1xf32>
    %69 = vector.shape_cast %66 : vector<8x1xf32> to vector<1x8x1xf32>
    tpu.vector_store %arg8[%c1_38, %c0_39, %c0_40], %69 {strides = array<i32>} : memref<4x8x1xf32, #tpu.memory_space<vmem>>, vector<1x8x1xf32>,
    %c1_41 = arith.constant 1 : index
    %c0_42 = arith.constant 0 : index
    %c0_43 = arith.constant 0 : index
    %70 = vector.load %arg9[%c1_41, %c0_42, %c0_43] : memref<4x8x32xf32, #tpu.memory_space<vmem>>, vector<1x8x32xf32>
    %71 = vector.shape_cast %70 : vector<1x8x32xf32> to vector<8x32xf32>
    %72 = vector.broadcast %57 : vector<8x1xf32> to vector<8x32xf32>
    %73 = arith.mulf %72, %71 : vector<8x32xf32>
    %74 = arith.truncf %60 : vector<8x8xf32> to vector<8x8xbf16>
    %cst_44 = arith.constant dense<0.000000e+00> : vector<8x32xf32>
    %75 = tpu.matmul %74, %48, %cst_44 {dimension_numbers = #tpu.dot_dimension_numbers<[1], [0], [0], [1], [0, 0, 1, 1], [], []>} : vector<8x8xbf16>, vector<8x32xbf16>, vector<8x32xf32> -> vector<8x32xf32>
    %76 = arith.addf %73, %75 : vector<8x32xf32>
    %c1_45 = arith.constant 1 : index
    %c0_46 = arith.constant 0 : index
    %c0_47 = arith.constant 0 : index
    %77 = vector.load %arg9[%c1_45, %c0_46, %c0_47] : memref<4x8x32xf32, #tpu.memory_space<vmem>>, vector<1x8x32xf32>
    %78 = vector.shape_cast %77 : vector<1x8x32xf32> to vector<8x32xf32>
    %79 = vector.shape_cast %76 : vector<8x32xf32> to vector<1x8x32xf32>
    tpu.vector_store %arg9[%c1_45, %c0_46, %c0_47], %79 {strides = array<i32>} : memref<4x8x32xf32, #tpu.memory_space<vmem>>, vector<1x8x32xf32>,
    %c1_48 = arith.constant 1 : index
    %c0_49 = arith.constant 0 : index
    %c0_50 = arith.constant 0 : index
    %80 = vector.load %arg7[%c1_48, %c0_49, %c0_50] : memref<4x8x1xf32, #tpu.memory_space<vmem>>, vector<1x8x1xf32>
    %81 = vector.shape_cast %80 : vector<1x8x1xf32> to vector<8x1xf32>
    %82 = vector.shape_cast %55 : vector<8x1xf32> to vector<1x8x1xf32>
    tpu.vector_store %arg7[%c1_48, %c0_49, %c0_50], %82 {strides = array<i32>} : memref<4x8x1xf32, #tpu.memory_space<vmem>>, vector<1x8x1xf32>,
    %83 = vector.extract_strided_slice %4 {offsets = [0, 64], sizes = [8, 32], strides = [1, 1]} : vector<8x128xbf16> to vector<8x32xbf16>
    %84 = vector.extract_strided_slice %6 {offsets = [0, 64], sizes = [8, 32], strides = [1, 1]} : vector<8x128xbf16> to vector<8x32xbf16>
    %85 = vector.extract_strided_slice %8 {offsets = [0, 64], sizes = [8, 32], strides = [1, 1]} : vector<8x128xbf16> to vector<8x32xbf16>
    %86 = tpu.transpose %84, [1, 0] : vector<8x32xbf16> -> vector<32x8xbf16>
    %cst_51 = arith.constant dense<0.000000e+00> : vector<8x8xf32>
    %87 = tpu.matmul %83, %86, %cst_51 {dimension_numbers = #tpu.dot_dimension_numbers<[1], [0], [0], [1], [0, 0, 1, 1], [], []>} : vector<8x32xbf16>, vector<32x8xbf16>, vector<8x8xf32> -> vector<8x8xf32>
    %c2 = arith.constant 2 : index
    %c0_52 = arith.constant 0 : index
    %c0_53 = arith.constant 0 : index
    %88 = vector.load %arg7[%c2, %c0_52, %c0_53] : memref<4x8x1xf32, #tpu.memory_space<vmem>>, vector<1x8x1xf32>
    %89 = vector.shape_cast %88 : vector<1x8x1xf32> to vector<8x1xf32>
    %cst_54 = arith.constant dense<0xFF800000> : vector<8xf32>
    %90 = vector.multi_reduction <maximumf>, %87, %cst_54 [1] : vector<8x8xf32> to vector<8xf32>
    %91 = vector.shape_cast %90 : vector<8xf32> to vector<8x1xf32>
    %92 = arith.maximumf %89, %91 : vector<8x1xf32>
    %93 = arith.subf %89, %92 : vector<8x1xf32>
    %94 = math.exp %93 : vector<8x1xf32>
    %95 = vector.broadcast %92 : vector<8x1xf32> to vector<8x8xf32>
    %96 = arith.subf %87, %95 : vector<8x8xf32>
    %97 = math.exp %96 : vector<8x8xf32>
    %c2_55 = arith.constant 2 : index
    %c0_56 = arith.constant 0 : index
    %c0_57 = arith.constant 0 : index
    %98 = vector.load %arg8[%c2_55, %c0_56, %c0_57] : memref<4x8x1xf32, #tpu.memory_space<vmem>>, vector<1x8x1xf32>
    %99 = vector.shape_cast %98 : vector<1x8x1xf32> to vector<8x1xf32>
    %100 = arith.mulf %94, %99 : vector<8x1xf32>
    %cst_58 = arith.constant dense<0.000000e+00> : vector<8xf32>
    %101 = vector.multi_reduction <add>, %97, %cst_58 [1] : vector<8x8xf32> to vector<8xf32>
    %102 = vector.shape_cast %101 : vector<8xf32> to vector<8x1xf32>
    %103 = arith.addf %100, %102 : vector<8x1xf32>
    %c2_59 = arith.constant 2 : index
    %c0_60 = arith.constant 0 : index
    %c0_61 = arith.constant 0 : index
    %104 = vector.load %arg8[%c2_59, %c0_60, %c0_61] : memref<4x8x1xf32, #tpu.memory_space<vmem>>, vector<1x8x1xf32>
    %105 = vector.shape_cast %104 : vector<1x8x1xf32> to vector<8x1xf32>
    %106 = vector.shape_cast %103 : vector<8x1xf32> to vector<1x8x1xf32>
    tpu.vector_store %arg8[%c2_59, %c0_60, %c0_61], %106 {strides = array<i32>} : memref<4x8x1xf32, #tpu.memory_space<vmem>>, vector<1x8x1xf32>,
    %c2_62 = arith.constant 2 : index
    %c0_63 = arith.constant 0 : index
    %c0_64 = arith.constant 0 : index
    %107 = vector.load %arg9[%c2_62, %c0_63, %c0_64] : memref<4x8x32xf32, #tpu.memory_space<vmem>>, vector<1x8x32xf32>
    %108 = vector.shape_cast %107 : vector<1x8x32xf32> to vector<8x32xf32>
    %109 = vector.broadcast %94 : vector<8x1xf32> to vector<8x32xf32>
    %110 = arith.mulf %109, %108 : vector<8x32xf32>
    %111 = arith.truncf %97 : vector<8x8xf32> to vector<8x8xbf16>
    %cst_65 = arith.constant dense<0.000000e+00> : vector<8x32xf32>
    %112 = tpu.matmul %111, %85, %cst_65 {dimension_numbers = #tpu.dot_dimension_numbers<[1], [0], [0], [1], [0, 0, 1, 1], [], []>} : vector<8x8xbf16>, vector<8x32xbf16>, vector<8x32xf32> -> vector<8x32xf32>
    %113 = arith.addf %110, %112 : vector<8x32xf32>
    %c2_66 = arith.constant 2 : index
    %c0_67 = arith.constant 0 : index
    %c0_68 = arith.constant 0 : index
    %114 = vector.load %arg9[%c2_66, %c0_67, %c0_68] : memref<4x8x32xf32, #tpu.memory_space<vmem>>, vector<1x8x32xf32>
    %115 = vector.shape_cast %114 : vector<1x8x32xf32> to vector<8x32xf32>
    %116 = vector.shape_cast %113 : vector<8x32xf32> to vector<1x8x32xf32>
    tpu.vector_store %arg9[%c2_66, %c0_67, %c0_68], %116 {strides = array<i32>} : memref<4x8x32xf32, #tpu.memory_space<vmem>>, vector<1x8x32xf32>,
    %c2_69 = arith.constant 2 : index
    %c0_70 = arith.constant 0 : index
    %c0_71 = arith.constant 0 : index
    %117 = vector.load %arg7[%c2_69, %c0_70, %c0_71] : memref<4x8x1xf32, #tpu.memory_space<vmem>>, vector<1x8x1xf32>
    %118 = vector.shape_cast %117 : vector<1x8x1xf32> to vector<8x1xf32>
    %119 = vector.shape_cast %92 : vector<8x1xf32> to vector<1x8x1xf32>
    tpu.vector_store %arg7[%c2_69, %c0_70, %c0_71], %119 {strides = array<i32>} : memref<4x8x1xf32, #tpu.memory_space<vmem>>, vector<1x8x1xf32>,
    %120 = vector.extract_strided_slice %4 {offsets = [0, 96], sizes = [8, 32], strides = [1, 1]} : vector<8x128xbf16> to vector<8x32xbf16>
    %121 = vector.extract_strided_slice %6 {offsets = [0, 96], sizes = [8, 32], strides = [1, 1]} : vector<8x128xbf16> to vector<8x32xbf16>
    %122 = vector.extract_strided_slice %8 {offsets = [0, 96], sizes = [8, 32], strides = [1, 1]} : vector<8x128xbf16> to vector<8x32xbf16>
    %123 = tpu.transpose %121, [1, 0] : vector<8x32xbf16> -> vector<32x8xbf16>
    %cst_72 = arith.constant dense<0.000000e+00> : vector<8x8xf32>
    %124 = tpu.matmul %120, %123, %cst_72 {dimension_numbers = #tpu.dot_dimension_numbers<[1], [0], [0], [1], [0, 0, 1, 1], [], []>} : vector<8x32xbf16>, vector<32x8xbf16>, vector<8x8xf32> -> vector<8x8xf32>
    %c3 = arith.constant 3 : index
    %c0_73 = arith.constant 0 : index
    %c0_74 = arith.constant 0 : index
    %125 = vector.load %arg7[%c3, %c0_73, %c0_74] : memref<4x8x1xf32, #tpu.memory_space<vmem>>, vector<1x8x1xf32>
    %126 = vector.shape_cast %125 : vector<1x8x1xf32> to vector<8x1xf32>
    %cst_75 = arith.constant dense<0xFF800000> : vector<8xf32>
    %127 = vector.multi_reduction <maximumf>, %124, %cst_75 [1] : vector<8x8xf32> to vector<8xf32>
    %128 = vector.shape_cast %127 : vector<8xf32> to vector<8x1xf32>
    %129 = arith.maximumf %126, %128 : vector<8x1xf32>
    %130 = arith.subf %126, %129 : vector<8x1xf32>
    %131 = math.exp %130 : vector<8x1xf32>
    %132 = vector.broadcast %129 : vector<8x1xf32> to vector<8x8xf32>
    %133 = arith.subf %124, %132 : vector<8x8xf32>
    %134 = math.exp %133 : vector<8x8xf32>
    %c3_76 = arith.constant 3 : index
    %c0_77 = arith.constant 0 : index
    %c0_78 = arith.constant 0 : index
    %135 = vector.load %arg8[%c3_76, %c0_77, %c0_78] : memref<4x8x1xf32, #tpu.memory_space<vmem>>, vector<1x8x1xf32>
    %136 = vector.shape_cast %135 : vector<1x8x1xf32> to vector<8x1xf32>
    %137 = arith.mulf %131, %136 : vector<8x1xf32>
    %cst_79 = arith.constant dense<0.000000e+00> : vector<8xf32>
    %138 = vector.multi_reduction <add>, %134, %cst_79 [1] : vector<8x8xf32> to vector<8xf32>
    %139 = vector.shape_cast %138 : vector<8xf32> to vector<8x1xf32>
    %140 = arith.addf %137, %139 : vector<8x1xf32>
    %c3_80 = arith.constant 3 : index
    %c0_81 = arith.constant 0 : index
    %c0_82 = arith.constant 0 : index
    %141 = vector.load %arg8[%c3_80, %c0_81, %c0_82] : memref<4x8x1xf32, #tpu.memory_space<vmem>>, vector<1x8x1xf32>
    %142 = vector.shape_cast %141 : vector<1x8x1xf32> to vector<8x1xf32>
    %143 = vector.shape_cast %140 : vector<8x1xf32> to vector<1x8x1xf32>
    tpu.vector_store %arg8[%c3_80, %c0_81, %c0_82], %143 {strides = array<i32>} : memref<4x8x1xf32, #tpu.memory_space<vmem>>, vector<1x8x1xf32>,
    %c3_83 = arith.constant 3 : index
    %c0_84 = arith.constant 0 : index
    %c0_85 = arith.constant 0 : index
    %144 = vector.load %arg9[%c3_83, %c0_84, %c0_85] : memref<4x8x32xf32, #tpu.memory_space<vmem>>, vector<1x8x32xf32>
    %145 = vector.shape_cast %144 : vector<1x8x32xf32> to vector<8x32xf32>
    %146 = vector.broadcast %131 : vector<8x1xf32> to vector<8x32xf32>
    %147 = arith.mulf %146, %145 : vector<8x32xf32>
    %148 = arith.truncf %134 : vector<8x8xf32> to vector<8x8xbf16>
    %cst_86 = arith.constant dense<0.000000e+00> : vector<8x32xf32>
    %149 = tpu.matmul %148, %122, %cst_86 {dimension_numbers = #tpu.dot_dimension_numbers<[1], [0], [0], [1], [0, 0, 1, 1], [], []>} : vector<8x8xbf16>, vector<8x32xbf16>, vector<8x32xf32> -> vector<8x32xf32>
    %150 = arith.addf %147, %149 : vector<8x32xf32>
    %c3_87 = arith.constant 3 : index
    %c0_88 = arith.constant 0 : index
    %c0_89 = arith.constant 0 : index
    %151 = vector.load %arg9[%c3_87, %c0_88, %c0_89] : memref<4x8x32xf32, #tpu.memory_space<vmem>>, vector<1x8x32xf32>
    %152 = vector.shape_cast %151 : vector<1x8x32xf32> to vector<8x32xf32>
    %153 = vector.shape_cast %150 : vector<8x32xf32> to vector<1x8x32xf32>
    tpu.vector_store %arg9[%c3_87, %c0_88, %c0_89], %153 {strides = array<i32>} : memref<4x8x32xf32, #tpu.memory_space<vmem>>, vector<1x8x32xf32>,
    %c3_90 = arith.constant 3 : index
    %c0_91 = arith.constant 0 : index
    %c0_92 = arith.constant 0 : index
    %154 = vector.load %arg7[%c3_90, %c0_91, %c0_92] : memref<4x8x1xf32, #tpu.memory_space<vmem>>, vector<1x8x1xf32>
    %155 = vector.shape_cast %154 : vector<1x8x1xf32> to vector<8x1xf32>
    %156 = vector.shape_cast %129 : vector<8x1xf32> to vector<1x8x1xf32>
    tpu.vector_store %arg7[%c3_90, %c0_91, %c0_92], %156 {strides = array<i32>} : memref<4x8x1xf32, #tpu.memory_space<vmem>>, vector<1x8x1xf32>,
    %c0_i32_93 = arith.constant 0 : i32
    %157 = arith.cmpi eq, %arg2, %c0_i32_93 : i32
    %158 = arith.extui %157 : i1 to i32
    %c0_i32_94 = arith.constant 0 : i32
    %159 = arith.cmpi ne, %158, %c0_i32_94 : i32
    scf.if %159 {
      %c0_95 = arith.constant 0 : index
      %c0_96 = arith.constant 0 : index
      %c0_97 = arith.constant 0 : index
      %160 = vector.load %arg8[%c0_95, %c0_96, %c0_97] : memref<4x8x1xf32, #tpu.memory_space<vmem>>, vector<1x8x1xf32>
      %161 = vector.shape_cast %160 : vector<1x8x1xf32> to vector<8x1xf32>
      %162 = tpu.reciprocal %161 {approx = true} : vector<8x1xf32> -> vector<8x1xf32>
      %c0_98 = arith.constant 0 : index
      %c0_99 = arith.constant 0 : index
      %c0_100 = arith.constant 0 : index
      %163 = vector.load %arg9[%c0_98, %c0_99, %c0_100] : memref<4x8x32xf32, #tpu.memory_space<vmem>>, vector<1x8x32xf32>
      %164 = vector.shape_cast %163 : vector<1x8x32xf32> to vector<8x32xf32>
      %165 = vector.broadcast %162 : vector<8x1xf32> to vector<8x32xf32>
      %166 = arith.mulf %164, %165 : vector<8x32xf32>
      %167 = arith.truncf %166 : vector<8x32xf32> to vector<8x32xbf16>
      %c0_101 = arith.constant 0 : index
      %c0_102 = arith.constant 0 : index
      %c0_103 = arith.constant 0 : index
      %168 = vector.load %arg6[%c0_101, %c0_102, %c0_103] : memref<1x8x128xbf16, #tpu.memory_space<vmem>>, vector<1x8x32xbf16>
      %169 = vector.shape_cast %168 : vector<1x8x32xbf16> to vector<8x32xbf16>
      %170 = vector.shape_cast %167 : vector<8x32xbf16> to vector<1x8x32xbf16>
      tpu.vector_store %arg6[%c0_101, %c0_102, %c0_103], %170 {strides = array<i32>} : memref<1x8x128xbf16, #tpu.memory_space<vmem>>, vector<1x8x32xbf16>,
      %c1_104 = arith.constant 1 : index
      %c0_105 = arith.constant 0 : index
      %c0_106 = arith.constant 0 : index
      %171 = vector.load %arg8[%c1_104, %c0_105, %c0_106] : memref<4x8x1xf32, #tpu.memory_space<vmem>>, vector<1x8x1xf32>
      %172 = vector.shape_cast %171 : vector<1x8x1xf32> to vector<8x1xf32>
      %173 = tpu.reciprocal %172 {approx = true} : vector<8x1xf32> -> vector<8x1xf32>
      %c1_107 = arith.constant 1 : index
      %c0_108 = arith.constant 0 : index
      %c0_109 = arith.constant 0 : index
      %174 = vector.load %arg9[%c1_107, %c0_108, %c0_109] : memref<4x8x32xf32, #tpu.memory_space<vmem>>, vector<1x8x32xf32>
      %175 = vector.shape_cast %174 : vector<1x8x32xf32> to vector<8x32xf32>
      %176 = vector.broadcast %173 : vector<8x1xf32> to vector<8x32xf32>
      %177 = arith.mulf %175, %176 : vector<8x32xf32>
      %178 = arith.truncf %177 : vector<8x32xf32> to vector<8x32xbf16>
      %c0_110 = arith.constant 0 : index
      %c0_111 = arith.constant 0 : index
      %c32 = arith.constant 32 : index
      %179 = vector.load %arg6[%c0_110, %c0_111, %c32] : memref<1x8x128xbf16, #tpu.memory_space<vmem>>, vector<1x8x32xbf16>
      %180 = vector.shape_cast %179 : vector<1x8x32xbf16> to vector<8x32xbf16>
      %181 = vector.shape_cast %178 : vector<8x32xbf16> to vector<1x8x32xbf16>
      tpu.vector_store %arg6[%c0_110, %c0_111, %c32], %181 {strides = array<i32>} : memref<1x8x128xbf16, #tpu.memory_space<vmem>>, vector<1x8x32xbf16>,
      %c2_112 = arith.constant 2 : index
      %c0_113 = arith.constant 0 : index
      %c0_114 = arith.constant 0 : index
      %182 = vector.load %arg8[%c2_112, %c0_113, %c0_114] : memref<4x8x1xf32, #tpu.memory_space<vmem>>, vector<1x8x1xf32>
      %183 = vector.shape_cast %182 : vector<1x8x1xf32> to vector<8x1xf32>
      %184 = tpu.reciprocal %183 {approx = true} : vector<8x1xf32> -> vector<8x1xf32>
      %c2_115 = arith.constant 2 : index
      %c0_116 = arith.constant 0 : index
      %c0_117 = arith.constant 0 : index
      %185 = vector.load %arg9[%c2_115, %c0_116, %c0_117] : memref<4x8x32xf32, #tpu.memory_space<vmem>>, vector<1x8x32xf32>
      %186 = vector.shape_cast %185 : vector<1x8x32xf32> to vector<8x32xf32>
      %187 = vector.broadcast %184 : vector<8x1xf32> to vector<8x32xf32>
      %188 = arith.mulf %186, %187 : vector<8x32xf32>
      %189 = arith.truncf %188 : vector<8x32xf32> to vector<8x32xbf16>
      %c0_118 = arith.constant 0 : index
      %c0_119 = arith.constant 0 : index
      %c64 = arith.constant 64 : index
      %190 = vector.load %arg6[%c0_118, %c0_119, %c64] : memref<1x8x128xbf16, #tpu.memory_space<vmem>>, vector<1x8x32xbf16>
      %191 = vector.shape_cast %190 : vector<1x8x32xbf16> to vector<8x32xbf16>
      %192 = vector.shape_cast %189 : vector<8x32xbf16> to vector<1x8x32xbf16>
      tpu.vector_store %arg6[%c0_118, %c0_119, %c64], %192 {strides = array<i32>} : memref<1x8x128xbf16, #tpu.memory_space<vmem>>, vector<1x8x32xbf16>,
      %c3_120 = arith.constant 3 : index
      %c0_121 = arith.constant 0 : index
      %c0_122 = arith.constant 0 : index
      %193 = vector.load %arg8[%c3_120, %c0_121, %c0_122] : memref<4x8x1xf32, #tpu.memory_space<vmem>>, vector<1x8x1xf32>
      %194 = vector.shape_cast %193 : vector<1x8x1xf32> to vector<8x1xf32>
      %195 = tpu.reciprocal %194 {approx = true} : vector<8x1xf32> -> vector<8x1xf32>
      %c3_123 = arith.constant 3 : index
      %c0_124 = arith.constant 0 : index
      %c0_125 = arith.constant 0 : index
      %196 = vector.load %arg9[%c3_123, %c0_124, %c0_125] : memref<4x8x32xf32, #tpu.memory_space<vmem>>, vector<1x8x32xf32>
      %197 = vector.shape_cast %196 : vector<1x8x32xf32> to vector<8x32xf32>
      %198 = vector.broadcast %195 : vector<8x1xf32> to vector<8x32xf32>
      %199 = arith.mulf %197, %198 : vector<8x32xf32>
      %200 = arith.truncf %199 : vector<8x32xf32> to vector<8x32xbf16>
      %c0_126 = arith.constant 0 : index
      %c0_127 = arith.constant 0 : index
      %c96 = arith.constant 96 : index
      %201 = vector.load %arg6[%c0_126, %c0_127, %c96] : memref<1x8x128xbf16, #tpu.memory_space<vmem>>, vector<1x8x32xbf16>
      %202 = vector.shape_cast %201 : vector<1x8x32xbf16> to vector<8x32xbf16>
      %203 = vector.shape_cast %200 : vector<8x32xbf16> to vector<1x8x32xbf16>
      tpu.vector_store %arg6[%c0_126, %c0_127, %c96], %203 {strides = array<i32>} : memref<1x8x128xbf16, #tpu.memory_space<vmem>>, vector<1x8x32xbf16>,
    } else {
    }
    return
  }
  func.func @transform_0(%arg0: i32, %arg1: i32, %arg2: i32) -> (i32, i32, i32) {
    %c0_i32 = arith.constant 0 : i32
    %c0_i32_0 = arith.constant 0 : i32
    return %arg0, %arg1, %c0_i32 : i32, i32, i32
  }
  func.func @transform_1(%arg0: i32, %arg1: i32, %arg2: i32) -> (i32, i32, i32) {
    %c0_i32 = arith.constant 0 : i32
    %c0_i32_0 = arith.constant 0 : i32
    return %arg0, %arg2, %c0_i32 : i32, i32, i32
  }
  func.func @transform_2(%arg0: i32, %arg1: i32, %arg2: i32) -> (i32, i32, i32) {
    %c1_i32 = arith.constant 1 : i32
    %c0_i32 = arith.constant 0 : i32
    return %arg0, %arg2, %c1_i32 : i32, i32, i32
  }
  func.func @transform_3(%arg0: i32, %arg1: i32, %arg2: i32) -> (i32, i32, i32) {
    %c0_i32 = arith.constant 0 : i32
    %c0_i32_0 = arith.constant 0 : i32
    return %arg0, %arg1, %c0_i32 : i32, i32, i32
  }
}

module attributes {stable_mosaic.version = 11 : i64} {
  func.func @_cls_softmax_kernel(%arg0: i32, %arg1: memref<16x128xbf16, #tpu.memory_space<vmem>>, %arg2: memref<128x3xf32, #tpu.memory_space<vmem>>, %arg3: memref<1x3xf32, #tpu.memory_space<vmem>>, %arg4: memref<16x3xf32, #tpu.memory_space<vmem>>) attributes {dimension_semantics = [#tpu.dimension_semantics<parallel>], iteration_bounds = array<i64: 1>, scalar_prefetch = 0 : i64, scratch_operands = 0 : i64, tpu.core_type = #tpu.core_type<tc>, window_params = [{transform_indices = @transform_0, window_bounds = array<i64: 16, 128>}, {pipeline_mode = #tpu.pipeline_mode<synchronous>, transform_indices = @transform_1, window_bounds = array<i64: 128, 3>}, {pipeline_mode = #tpu.pipeline_mode<synchronous>, transform_indices = @transform_2, window_bounds = array<i64: 1, 3>}, {transform_indices = @transform_3, window_bounds = array<i64: 16, 3>}]} {
    %c0 = arith.constant 0 : index
    %c0_0 = arith.constant 0 : index
    %0 = vector.load %arg1[%c0, %c0_0] : memref<16x128xbf16, #tpu.memory_space<vmem>>, vector<16x128xbf16>
    %1 = arith.extf %0 : vector<16x128xbf16> to vector<16x128xf32>
    %c0_1 = arith.constant 0 : index
    %c0_2 = arith.constant 0 : index
    %2 = vector.load %arg2[%c0_1, %c0_2] : memref<128x3xf32, #tpu.memory_space<vmem>>, vector<128x3xf32>
    %cst = arith.constant dense<0.000000e+00> : vector<16x3xf32>
    %3 = tpu.matmul %1, %2, %cst {dimension_numbers = #tpu.dot_dimension_numbers<[1], [0], [0], [1], [0, 0, 1, 1], [], []>} : vector<16x128xf32>, vector<128x3xf32>, vector<16x3xf32> -> vector<16x3xf32>
    %c0_3 = arith.constant 0 : index
    %c0_4 = arith.constant 0 : index
    %4 = vector.load %arg3[%c0_3, %c0_4] : memref<1x3xf32, #tpu.memory_space<vmem>>, vector<1x3xf32>
    %5 = vector.broadcast %4 : vector<1x3xf32> to vector<16x3xf32>
    %6 = arith.addf %3, %5 : vector<16x3xf32>
    %cst_5 = arith.constant dense<0xFF800000> : vector<16xf32>
    %7 = vector.multi_reduction <maximumf>, %6, %cst_5 [1] : vector<16x3xf32> to vector<16xf32>
    %8 = vector.shape_cast %7 : vector<16xf32> to vector<16x1xf32>
    %9 = vector.broadcast %8 : vector<16x1xf32> to vector<16x3xf32>
    %10 = arith.subf %6, %9 : vector<16x3xf32>
    %11 = math.exp %10 : vector<16x3xf32>
    %cst_6 = arith.constant dense<0.000000e+00> : vector<16xf32>
    %12 = vector.multi_reduction <add>, %11, %cst_6 [1] : vector<16x3xf32> to vector<16xf32>
    %13 = vector.shape_cast %12 : vector<16xf32> to vector<16x1xf32>
    %14 = vector.broadcast %13 : vector<16x1xf32> to vector<16x3xf32>
    %15 = arith.divf %11, %14 : vector<16x3xf32>
    %c0_7 = arith.constant 0 : index
    %c0_8 = arith.constant 0 : index
    %16 = vector.load %arg4[%c0_7, %c0_8] : memref<16x3xf32, #tpu.memory_space<vmem>>, vector<16x3xf32>
    tpu.vector_store %arg4[%c0_7, %c0_8], %15 {strides = array<i32>} : memref<16x3xf32, #tpu.memory_space<vmem>>, vector<16x3xf32>,
    return
  }
  func.func @transform_0(%arg0: i32) -> (i32, i32) {
    %c0_i32 = arith.constant 0 : i32
    %c0_i32_0 = arith.constant 0 : i32
    return %arg0, %c0_i32 : i32, i32
  }
  func.func @transform_1(%arg0: i32) -> (i32, i32) {
    %c0_i32 = arith.constant 0 : i32
    %c0_i32_0 = arith.constant 0 : i32
    %c0_i32_1 = arith.constant 0 : i32
    return %c0_i32, %c0_i32_0 : i32, i32
  }
  func.func @transform_2(%arg0: i32) -> (i32, i32) {
    %c0_i32 = arith.constant 0 : i32
    %c0_i32_0 = arith.constant 0 : i32
    %c0_i32_1 = arith.constant 0 : i32
    return %c0_i32, %c0_i32_0 : i32, i32
  }
  func.func @transform_3(%arg0: i32) -> (i32, i32) {
    %c0_i32 = arith.constant 0 : i32
    %c0_i32_0 = arith.constant 0 : i32
    return %arg0, %c0_i32 : i32, i32
  }
}

module attributes {stable_mosaic.version = 11 : i64} {
  func.func @_matmul_kernel(%arg0: i32, %arg1: i32, %arg2: i32, %arg3: memref<16x128xbf16, #tpu.memory_space<vmem>>, %arg4: memref<128x384xbf16, #tpu.memory_space<vmem>>, %arg5: memref<1x384xf32, #tpu.memory_space<vmem>>, %arg6: memref<16x384xbf16, #tpu.memory_space<vmem>>, %arg7: memref<16x384xf32, #tpu.memory_space<vmem>>) attributes {dimension_semantics = [#tpu.dimension_semantics<parallel>, #tpu.dimension_semantics<parallel>, #tpu.dimension_semantics<arbitrary>], iteration_bounds = array<i64: 1, 1, 1>, scalar_prefetch = 0 : i64, scratch_operands = 1 : i64, tpu.core_type = #tpu.core_type<tc>, window_params = [{transform_indices = @transform_0, window_bounds = array<i64: 16, 128>}, {transform_indices = @transform_1, window_bounds = array<i64: 128, 384>}, {transform_indices = @transform_2, window_bounds = array<i64: 1, 384>}, {transform_indices = @transform_3, window_bounds = array<i64: 16, 384>}]} {
    %c0_i32 = arith.constant 0 : i32
    %0 = arith.cmpi eq, %arg2, %c0_i32 : i32
    %1 = arith.extui %0 : i1 to i32
    %c0_i32_0 = arith.constant 0 : i32
    %2 = arith.cmpi ne, %1, %c0_i32_0 : i32
    scf.if %2 {
      %cst_10 = arith.constant 0.000000e+00 : f32
      %12 = vector.broadcast %cst_10 : f32 to vector<16x384xf32>
      %c0_11 = arith.constant 0 : index
      %c0_12 = arith.constant 0 : index
      %13 = vector.load %arg7[%c0_11, %c0_12] : memref<16x384xf32, #tpu.memory_space<vmem>>, vector<16x384xf32>
      tpu.vector_store %arg7[%c0_11, %c0_12], %12 {strides = array<i32>} : memref<16x384xf32, #tpu.memory_space<vmem>>, vector<16x384xf32>,
    } else {
    }
    %c0 = arith.constant 0 : index
    %c0_1 = arith.constant 0 : index
    %3 = vector.load %arg7[%c0, %c0_1] : memref<16x384xf32, #tpu.memory_space<vmem>>, vector<16x384xf32>
    %c0_2 = arith.constant 0 : index
    %c0_3 = arith.constant 0 : index
    %4 = vector.load %arg3[%c0_2, %c0_3] : memref<16x128xbf16, #tpu.memory_space<vmem>>, vector<16x128xbf16>
    %c0_4 = arith.constant 0 : index
    %c0_5 = arith.constant 0 : index
    %5 = vector.load %arg4[%c0_4, %c0_5] : memref<128x384xbf16, #tpu.memory_space<vmem>>, vector<128x384xbf16>
    %cst = arith.constant dense<0.000000e+00> : vector<16x384xf32>
    %6 = tpu.matmul %4, %5, %cst {dimension_numbers = #tpu.dot_dimension_numbers<[1], [0], [0], [1], [0, 0, 1, 1], [], []>} : vector<16x128xbf16>, vector<128x384xbf16>, vector<16x384xf32> -> vector<16x384xf32>
    %7 = arith.addf %3, %6 : vector<16x384xf32>
    %c0_6 = arith.constant 0 : index
    %c0_7 = arith.constant 0 : index
    %8 = vector.load %arg7[%c0_6, %c0_7] : memref<16x384xf32, #tpu.memory_space<vmem>>, vector<16x384xf32>
    tpu.vector_store %arg7[%c0_6, %c0_7], %7 {strides = array<i32>} : memref<16x384xf32, #tpu.memory_space<vmem>>, vector<16x384xf32>,
    %c0_i32_8 = arith.constant 0 : i32
    %9 = arith.cmpi eq, %arg2, %c0_i32_8 : i32
    %10 = arith.extui %9 : i1 to i32
    %c0_i32_9 = arith.constant 0 : i32
    %11 = arith.cmpi ne, %10, %c0_i32_9 : i32
    scf.if %11 {
      %c0_10 = arith.constant 0 : index
      %c0_11 = arith.constant 0 : index
      %12 = vector.load %arg7[%c0_10, %c0_11] : memref<16x384xf32, #tpu.memory_space<vmem>>, vector<16x384xf32>
      %c0_12 = arith.constant 0 : index
      %c0_13 = arith.constant 0 : index
      %13 = vector.load %arg5[%c0_12, %c0_13] : memref<1x384xf32, #tpu.memory_space<vmem>>, vector<1x384xf32>
      %14 = vector.broadcast %13 : vector<1x384xf32> to vector<16x384xf32>
      %15 = arith.addf %12, %14 : vector<16x384xf32>
      %16 = arith.truncf %15 : vector<16x384xf32> to vector<16x384xbf16>
      %c0_14 = arith.constant 0 : index
      %c0_15 = arith.constant 0 : index
      %17 = vector.load %arg6[%c0_14, %c0_15] : memref<16x384xbf16, #tpu.memory_space<vmem>>, vector<16x384xbf16>
      tpu.vector_store %arg6[%c0_14, %c0_15], %16 {strides = array<i32>} : memref<16x384xbf16, #tpu.memory_space<vmem>>, vector<16x384xbf16>,
    } else {
    }
    return
  }
  func.func @transform_0(%arg0: i32, %arg1: i32, %arg2: i32) -> (i32, i32) {
    %c0_i32 = arith.constant 0 : i32
    return %arg0, %arg2 : i32, i32
  }
  func.func @transform_1(%arg0: i32, %arg1: i32, %arg2: i32) -> (i32, i32) {
    %c0_i32 = arith.constant 0 : i32
    return %arg2, %arg1 : i32, i32
  }
  func.func @transform_2(%arg0: i32, %arg1: i32, %arg2: i32) -> (i32, i32) {
    %c0_i32 = arith.constant 0 : i32
    %c0_i32_0 = arith.constant 0 : i32
    return %c0_i32, %arg1 : i32, i32
  }
  func.func @transform_3(%arg0: i32, %arg1: i32, %arg2: i32) -> (i32, i32) {
    %c0_i32 = arith.constant 0 : i32
    return %arg0, %arg1 : i32, i32
  }
}

</mosaic_0001>

<llo_original>
// kernel: transformer_forward.25
$region0: #{transformer_forward.25}
  #allocation0 [shape = 'u32[]', space=smem, size = 0x4, offset = 0x4, fixed_abs, tag = 'smem constant byte address 0x4 - core index']
  #allocation1 [shape = 'u32[72,128]{1,0:T(1,128)}', space=vmem, size = 0x9000, scoped, tag = 'internal scratch']
  #allocation2 [shape = 'f32[16,384]{1,0:T(8,128)}', space=vmem, size = 0x6000, scoped, tag = 'scratch operand']
  %s0 = inlined_call_operand.vmem [shape: bf16[16,128], index: 0, kind: input, shape index: {}]
  %s1 = inlined_call_operand.vmem [shape: bf16[128,384], index: 1, kind: input, shape index: {}]
  %s2 = inlined_call_operand.vmem [shape: f32[1,384], index: 2, kind: input, shape index: {}]
  %s3 = inlined_call_operand.vmem [shape: bf16[16,384], index: 3, kind: output, shape index: {}]
  %s4 = sld [smem:[#allocation0]]
  $region30: #{transformer_forward.25} parent=0
    _
  %s6 = ssub.s32 1, %s4
  %s7 = scalar_select 0, %s6, %s4
  // Predicated region
  $region2: #{transformer_forward.25} parent=0 // pred_check
    _
  $region3: #{transformer_forward.25} parent=0 // pred_check_branch
    %9 = sbr.rel (0) target = $region5
  $region4: #{transformer_forward.25} parent=0 // pred_region
    _
  $region5: #{transformer_forward.25} parent=0 // pred_fallthru
    _
  // Predicated region
  $region6: #{transformer_forward.25} parent=0 // pred_check
    _
  $region7: #{transformer_forward.25} parent=0 // pred_check_branch
    %11 = sbr.rel (0) target = $region9
  $region8: #{transformer_forward.25} parent=0 // pred_region
    _
  $region9: #{transformer_forward.25} parent=0 // pred_fallthru
    _
  // Predicated region
  $region10: #{transformer_forward.25} parent=0 // pred_check
    _
  $region11: #{transformer_forward.25} parent=0 // pred_check_branch
    %13 = sbr.rel (0) target = $region13
  $region12: #{transformer_forward.25} parent=0 // pred_region
    _
  $region13: #{transformer_forward.25} parent=0 // pred_fallthru
    _
  %p14 = scmp.eq.s32.totalorder 0, 0
  // Predicated region
  $region14: #{transformer_forward.25} parent=0 // pred_check
    %p15 = pneg %p14
  $region15: #{transformer_forward.25} parent=0 // pred_check_branch
    %17 = sbr.rel (%p15) target = $region17
  $region16: #{transformer_forward.25} parent=0 // pred_region
    %18 = vst [vmem:[#allocation2] sm:$0xff] 0.0
    %19 = vst [vmem:[#allocation2 + $0x8] sm:$0xff] 0.0
    %20 = vst [vmem:[#allocation2 + $0x10] sm:$0xff] 0.0
    %21 = vst [vmem:[#allocation2 + $0x18] sm:$0xff] 0.0
    %22 = vst [vmem:[#allocation2 + $0x20] sm:$0xff] 0.0
    %23 = vst [vmem:[#allocation2 + $0x28] sm:$0xff] 0.0
  $region17: #{transformer_forward.25} parent=0 // pred_fallthru
    _
  %v24 = vld [vmem:[#allocation2] sm:$0xff]
  %v25 = vld [vmem:[#allocation2 + $0x8] sm:$0xff]
  %v26 = vld [vmem:[#allocation2 + $0x10] sm:$0xff]
  %v27 = vld [vmem:[#allocation2 + $0x18] sm:$0xff]
  %v28 = vld [vmem:[#allocation2 + $0x20] sm:$0xff]
  %v29 = vld [vmem:[#allocation2 + $0x28] sm:$0xff]
  %v30 = vld [vmem:[%s0] sm:$0xf]
  %v31 = vld [vmem:[%s0 + $0x4] sm:$0xf]
  %v32 = vld [vmem:[%s1] sm:$0xff]
  %v33 = vld [vmem:[%s1 + $0x8] sm:$0xf]
  %v34 = vld [vmem:[%s1 + $0xc] sm:$0xff]
  %v35 = vld [vmem:[%s1 + $0x14] sm:$0xf]
  %v36 = vld [vmem:[%s1 + $0x18] sm:$0xff]
  %v37 = vld [vmem:[%s1 + $0x20] sm:$0xf]
  %v38 = vld [vmem:[%s1 + $0x24] sm:$0xff]
  %v39 = vld [vmem:[%s1 + $0x2c] sm:$0xf]
  %v40 = vld [vmem:[%s1 + $0x30] sm:$0xff]
  %v41 = vld [vmem:[%s1 + $0x38] sm:$0xf]
  %v42 = vld [vmem:[%s1 + $0x3c] sm:$0xff]
  %v43 = vld [vmem:[%s1 + $0x44] sm:$0xf]
  %v44 = vld [vmem:[%s1 + $0x48] sm:$0xff]
  %v45 = vld [vmem:[%s1 + $0x50] sm:$0xf]
  %v46 = vld [vmem:[%s1 + $0x54] sm:$0xff]
  %v47 = vld [vmem:[%s1 + $0x5c] sm:$0xf]
  %v48 = vld [vmem:[%s1 + $0x60] sm:$0xff]
  %v49 = vld [vmem:[%s1 + $0x68] sm:$0xf]
  %v50 = vld [vmem:[%s1 + $0x6c] sm:$0xff]
  %v51 = vld [vmem:[%s1 + $0x74] sm:$0xf]
  %v52 = vld [vmem:[%s1 + $0x78] sm:$0xff]
  %v53 = vld [vmem:[%s1 + $0x80] sm:$0xf]
  %v54 = vld [vmem:[%s1 + $0x84] sm:$0xff]
  %v55 = vld [vmem:[%s1 + $0x8c] sm:$0xf]
  %v56 = vld [vmem:[%s1 + $0x90] sm:$0xff]
  %v57 = vld [vmem:[%s1 + $0x98] sm:$0xf]
  %v58 = vld [vmem:[%s1 + $0x9c] sm:$0xff]
  %v59 = vld [vmem:[%s1 + $0xa4] sm:$0xf]
  %v60 = vld [vmem:[%s1 + $0xa8] sm:$0xff]
  %v61 = vld [vmem:[%s1 + $0xb0] sm:$0xf]
  %v62 = vld [vmem:[%s1 + $0xb4] sm:$0xff]
  %v63 = vld [vmem:[%s1 + $0xbc] sm:$0xf]
  %v66 = vunpack.c.l.b16 %v30
  %v67 = vunpack.c.l.b16 %v31
  %v68 = vpack.c.b16 %v67, %v66
  %v102 = vunpack.c.l.b16 %v32
  %v103 = vunpack.c.h.b16 %v32
  %v104 = vunpack.c.l.b16 %v33
  %v105 = vunpack.c.l.b16 %v34
  %v106 = vunpack.c.h.b16 %v34
  %v107 = vunpack.c.l.b16 %v35
  %v108 = vunpack.c.l.b16 %v36
  %v109 = vunpack.c.h.b16 %v36
  %v110 = vunpack.c.l.b16 %v37
  %v111 = vunpack.c.l.b16 %v38
  %v112 = vunpack.c.h.b16 %v38
  %v113 = vunpack.c.l.b16 %v39
  %v114 = vunpack.c.l.b16 %v40
  %v115 = vunpack.c.h.b16 %v40
  %v116 = vunpack.c.l.b16 %v41
  %v117 = vunpack.c.l.b16 %v42
  %v118 = vunpack.c.h.b16 %v42
  %v119 = vunpack.c.l.b16 %v43
  %v120 = vunpack.c.l.b16 %v44
  %v121 = vunpack.c.h.b16 %v44
  %v122 = vunpack.c.l.b16 %v45
  %v123 = vunpack.c.l.b16 %v46
  %v124 = vunpack.c.h.b16 %v46
  %v125 = vunpack.c.l.b16 %v47
  %v126 = vunpack.c.l.b16 %v48
  %v127 = vunpack.c.h.b16 %v48
  %v128 = vunpack.c.l.b16 %v49
  %v129 = vunpack.c.l.b16 %v50
  %v130 = vunpack.c.h.b16 %v50
  %v131 = vunpack.c.l.b16 %v51
  %v132 = vunpack.c.l.b16 %v52
  %v133 = vunpack.c.h.b16 %v52
  %v134 = vunpack.c.l.b16 %v53
  %v135 = vunpack.c.l.b16 %v54
  %v136 = vunpack.c.h.b16 %v54
  %v137 = vunpack.c.l.b16 %v55
  %v138 = vunpack.c.l.b16 %v56
  %v139 = vunpack.c.h.b16 %v56
  %v140 = vunpack.c.l.b16 %v57
  %v141 = vunpack.c.l.b16 %v58
  %v142 = vunpack.c.h.b16 %v58
  %v143 = vunpack.c.l.b16 %v59
  %v144 = vunpack.c.l.b16 %v60
  %v145 = vunpack.c.h.b16 %v60
  %v146 = vunpack.c.l.b16 %v61
  %v147 = vunpack.c.l.b16 %v62
  %v148 = vunpack.c.h.b16 %v62
  %v149 = vunpack.c.l.b16 %v63
  %v150 = vpack.c.b16 %v105, %v102
  %v151 = vpack.c.b16 %v106, %v103
  %v152 = vpack.c.b16 %v107, %v104
  %v153 = vpack.c.b16 %v111, %v108
  %v154 = vpack.c.b16 %v112, %v109
  %v155 = vpack.c.b16 %v113, %v110
  %v156 = vpack.c.b16 %v117, %v114
  %v157 = vpack.c.b16 %v118, %v115
  %v158 = vpack.c.b16 %v119, %v116
  %v159 = vpack.c.b16 %v123, %v120
  %v160 = vpack.c.b16 %v124, %v121
  %v161 = vpack.c.b16 %v125, %v122
  %v162 = vpack.c.b16 %v129, %v126
  %v163 = vpack.c.b16 %v130, %v127
  %v164 = vpack.c.b16 %v131, %v128
  %v165 = vpack.c.b16 %v135, %v132
  %v166 = vpack.c.b16 %v136, %v133
  %v167 = vpack.c.b16 %v137, %v134
  %v168 = vpack.c.b16 %v141, %v138
  %v169 = vpack.c.b16 %v142, %v139
  %v170 = vpack.c.b16 %v143, %v140
  %v171 = vpack.c.b16 %v147, %v144
  %v172 = vpack.c.b16 %v148, %v145
  %v173 = vpack.c.b16 %v149, %v146
  %198 = vmatpush.bf16.msra.mxu0 %v171
  %199 = vmatpush.bf16.msra.mxu0 %v168
  %200 = vmatpush.bf16.msra.mxu0 %v165
  %201 = vmatpush.bf16.msra.mxu0 %v162
  %202 = vmatpush.bf16.msra.mxu0 %v159
  %203 = vmatpush.bf16.msra.mxu0 %v156
  %204 = vmatpush.bf16.msra.mxu0 %v153
  %205 = vmatpush.bf16.msra.mxu0 %v150
  %206 = vmatmul.bf16.gmra.mxu0 %v68
  %v207 = vpop.f32.mrf.mxu0
  %v208 = vadd.f32 0.0, %v207
  %v209 = vpop.f32.mrf.mxu0
  %v210 = vadd.f32 0.0, %v209
  %211 = vdwg.mxu0
  %212 = vmatpush.bf16.msra.mxu0 %v172
  %213 = vmatpush.bf16.msra.mxu0 %v169
  %214 = vmatpush.bf16.msra.mxu0 %v166
  %215 = vmatpush.bf16.msra.mxu0 %v163
  %216 = vmatpush.bf16.msra.mxu0 %v160
  %217 = vmatpush.bf16.msra.mxu0 %v157
  %218 = vmatpush.bf16.msra.mxu0 %v154
  %219 = vmatpush.bf16.msra.mxu0 %v151
  %220 = vmatmul.bf16.gmra.mxu0 %v68
  %v221 = vpop.f32.mrf.mxu0
  %v222 = vadd.f32 0.0, %v221
  %v223 = vpop.f32.mrf.mxu0
  %v224 = vadd.f32 0.0, %v223
  %225 = vdwg.mxu0
  %226 = vmatpush.bf16.msra.mxu0 %v173
  %227 = vmatpush.bf16.msra.mxu0 %v170
  %228 = vmatpush.bf16.msra.mxu0 %v167
  %229 = vmatpush.bf16.msra.mxu0 %v164
  %230 = vmatpush.bf16.msra.mxu0 %v161
  %231 = vmatpush.bf16.msra.mxu0 %v158
  %232 = vmatpush.bf16.msra.mxu0 %v155
  %233 = vmatpush.bf16.msra.mxu0 %v152
  %234 = vmatmul.bf16.gmra.mxu0 %v68
  %v235 = vpop.f32.mrf.mxu0
  %v236 = vadd.f32 0.0, %v235
  %v237 = vpop.f32.mrf.mxu0
  %v238 = vadd.f32 0.0, %v237
  %239 = vdwg.mxu0
  %v240 = vadd.f32 %v24, %v208
  %v241 = vadd.f32 %v25, %v222
  %v242 = vadd.f32 %v26, %v236
  %v243 = vadd.f32 %v27, %v210
  %v244 = vadd.f32 %v28, %v224
  %v245 = vadd.f32 %v29, %v238
  %246 = vst [vmem:[#allocation2] sm:$0xff] %v240
  %247 = vst [vmem:[#allocation2 + $0x8] sm:$0xff] %v241
  %248 = vst [vmem:[#allocation2 + $0x10] sm:$0xff] %v242
  %249 = vst [vmem:[#allocation2 + $0x18] sm:$0xff] %v243
  %250 = vst [vmem:[#allocation2 + $0x20] sm:$0xff] %v244
  %251 = vst [vmem:[#allocation2 + $0x28] sm:$0xff] %v245
  // Predicated region
  $region18: #{transformer_forward.25} parent=0 // pred_check
    %p252 = pneg %p14
  $region19: #{transformer_forward.25} parent=0 // pred_check_branch
    %254 = sbr.rel (%p252) target = $region21
  $region20: #{transformer_forward.25} parent=0 // pred_region
    %v255 = vld [vmem:[#allocation2] sm:$0xff]
    %v256 = vld [vmem:[#allocation2 + $0x8] sm:$0xff]
    %v257 = vld [vmem:[#allocation2 + $0x10] sm:$0xff]
    %v258 = vld [vmem:[#allocation2 + $0x18] sm:$0xff]
    %v259 = vld [vmem:[#allocation2 + $0x20] sm:$0xff]
    %v260 = vld [vmem:[#allocation2 + $0x28] sm:$0xff]
    %v261 = vld [vmem:[%s2] sm:$0x7]
    %v263 = vperm.slane %v261, 0
    %v264 = vperm.slane %v261, 1
    %v265 = vperm.slane %v261, 2
    %v269 = vadd.f32 %v255, %v263
    %v270 = vadd.f32 %v256, %v264
    %v271 = vadd.f32 %v257, %v265
    %v272 = vadd.f32 %v258, %v263
    %v273 = vadd.f32 %v259, %v264
    %v274 = vadd.f32 %v260, %v265
    %v275 = vpack.c.bf16 %v270, %v269
    %v276 = vpack.c.bf16 %v271, %v271
    %v277 = vpack.c.bf16 %v273, %v272
    %v278 = vpack.c.bf16 %v274, %v274
    %279 = vst [vmem:[%s3] sm:$0xff] %v275
    %280 = vst [vmem:[%s3 + $0x8] sm:$0xf] %v276
    %281 = vst [vmem:[%s3 + $0xc] sm:$0xff] %v277
    %282 = vst [vmem:[%s3 + $0x14] sm:$0xf] %v278
  $region21: #{transformer_forward.25} parent=0 // pred_fallthru
    _
  // Predicated region
  $region22: #{transformer_forward.25} parent=0 // pred_check
    _
  $region23: #{transformer_forward.25} parent=0 // pred_check_branch
    %284 = sbr.rel (0) target = $region25
  $region24: #{transformer_forward.25} parent=0 // pred_region
    _
  $region25: #{transformer_forward.25} parent=0 // pred_fallthru
    _
  // Predicated region
  $region26: #{transformer_forward.25} parent=0 // pred_check
    _
  $region27: #{transformer_forward.25} parent=0 // pred_check_branch
    %286 = sbr.rel (0) target = $region29
  $region28: #{transformer_forward.25} parent=0 // pred_region
    _
  $region29: #{transformer_forward.25} parent=0 // pred_fallthru
    _

// kernel: transformer_forward.26
$region0: #{transformer_forward.26}
  #allocation0 [shape = 'u32[]', space=smem, size = 0x4, offset = 0x4, fixed_abs, tag = 'smem constant byte address 0x4 - core index']
  #allocation1 [shape = 'u32[72,128]{1,0:T(1,128)}', space=vmem, size = 0x9000, scoped, tag = 'internal scratch']
  #allocation2 [shape = 'f32[4,8,1]{2,1,0:T(8,128)}', space=vmem, size = 0x4000, scoped, tag = 'scratch operand']
  #allocation3 [shape = 'f32[4,8,1]{2,1,0:T(8,128)}', space=vmem, size = 0x4000, scoped, tag = 'scratch operand']
  #allocation4 [shape = 'f32[4,8,32]{2,1,0:T(8,128)}', space=vmem, size = 0x4000, scoped, tag = 'scratch operand']
  %s0 = inlined_call_operand.vmem [shape: bf16[2,8,384], index: 0, kind: input, shape index: {}, may-alias: {0,1,2}]
  %s1 = inlined_call_operand.vmem [shape: bf16[2,8,384], index: 1, kind: input, shape index: {}, may-alias: {0,1,2}]
  %s2 = inlined_call_operand.vmem [shape: bf16[2,8,384], index: 2, kind: input, shape index: {}, may-alias: {0,1,2}]
  %s3 = inlined_call_operand.vmem [shape: bf16[2,8,128], index: 3, kind: output, shape index: {}]
  %s4 = sld [smem:[#allocation0]]
  $region53: #{transformer_forward.26} parent=0
    _
  %s6 = ssub.s32 1, %s4
  %s7 = scalar_select 0, %s6, %s4
  loop: start=0, step=1, limit=4
  $region2: #{transformer_forward.26} parent=0 // loop_pre_header
    _
  $region3: #{transformer_forward.26} parent=0 // loop_header
    %s9 = sphi 0, %s13
    %p10 = scmp.ge.s32.totalorder %s9, 4
    %s16 = sphi 0, %s35
    %s17 = sphi 0, %s31
    %s18 = sphi 0, %s27
    %s19 = sphi 0, %s16
    %s20 = sphi 0, %s17
    %s21 = sphi 0, %s18
    %s22 = sphi 0, %s19
    %s23 = sphi 0, %s20
    %s24 = sphi 0, %s21
    %s40 = sphi 0, %s42
    %s43 = sphi 0, %s40
    %s44 = sphi 0, %s43
    %s60 = sphi 0, %s44
    %s68 = sphi 0, %s70
    %s71 = sphi 0, %s68
    %s72 = sphi 0, %s71
    %s88 = sphi 0, %s72
    %s96 = sphi 0, %s98
    %s99 = sphi 0, %s96
    %s100 = sphi 0, %s99
    %s116 = sphi 0, %s100
    %s124 = sphi 0, %s126
    %s127 = sphi 0, %s124
    %s128 = sphi 0, %s127
    %s144 = sphi 0, %s128
  $region4: #{transformer_forward.26} parent=0 // loop_header_branch
    %12 = sbr.rel (%p10) target = $region8
  $region5: #{transformer_forward.26} parent=0 // loop_body
    %s14 = ssub.s32 %s9, 1
    %s15 = ssub.s32 %s9, 2
    %s25 = sadd.s32 1, %s18
    %p26 = scmp.ge.s32.totalorder %s25, 1
    %s27 = scalar_select %p26, 0, %s25
    %s28 = sadd.s32 1, %s17
    %s29 = scalar_select %p26, %s28, %s17
    %p30 = scmp.ge.s32.totalorder %s29, 1
    %s31 = scalar_select %p30, 0, %s29
    %s32 = sadd.s32 1, %s16
    %s33 = scalar_select %p30, %s32, %s16
    %p34 = scmp.ge.s32.totalorder %s33, 2
    %s35 = scalar_select %p34, 0, %s33
    %s36 = ssub.s32 %s16, %s35
    %s37 = ssub.s32 %s17, %s31
    %s38 = sor.u32 %s36, %s37
    %p39 = scmp.eq.s32.totalorder %s38, 0
    %s41 = sadd.s32 %s40, 1
    %s42 = scalar_select %p39, %s40, %s41
    %p45 = pneg %p39
    %p46 = scmp.eq.s32.totalorder %s9, 1
    %p47 = por %p45, %p46
    %p48 = scmp.ne.s32.totalorder %s40, %s43
    %p49 = scmp.eq.s32.totalorder %s9, 0
    %p50 = por %p48, %p49
    %p51 = scmp.ne.s32.totalorder %s40, %s43
    %p52 = scmp.eq.s32.totalorder %s14, 1
    %p53 = por %p51, %p52
    %p54 = scmp.ne.s32.totalorder %s43, %s44
    %p55 = scmp.eq.s32.totalorder %s14, 0
    %p56 = por %p54, %p55
    %p57 = scmp.ne.s32.totalorder %s43, %s44
    %p58 = scmp.eq.s32.totalorder %s15, 1
    %p59 = por %p57, %p58
    %p61 = scmp.ne.s32.totalorder %s44, %s60
    %p62 = scmp.eq.s32.totalorder %s15, 0
    %p63 = por %p61, %p62
    %s64 = ssub.s32 %s16, %s35
    %s65 = ssub.s32 %s18, %s27
    %s66 = sor.u32 %s64, %s65
    %p67 = scmp.eq.s32.totalorder %s66, 0
    %s69 = sadd.s32 %s68, 1
    %s70 = scalar_select %p67, %s68, %s69
    %p73 = pneg %p67
    %p74 = scmp.eq.s32.totalorder %s9, 1
    %p75 = por %p73, %p74
    %p76 = scmp.ne.s32.totalorder %s68, %s71
    %p77 = scmp.eq.s32.totalorder %s9, 0
    %p78 = por %p76, %p77
    %p79 = scmp.ne.s32.totalorder %s68, %s71
    %p80 = scmp.eq.s32.totalorder %s14, 1
    %p81 = por %p79, %p80
    %p82 = scmp.ne.s32.totalorder %s71, %s72
    %p83 = scmp.eq.s32.totalorder %s14, 0
    %p84 = por %p82, %p83
    %p85 = scmp.ne.s32.totalorder %s71, %s72
    %p86 = scmp.eq.s32.totalorder %s15, 1
    %p87 = por %p85, %p86
    %p89 = scmp.ne.s32.totalorder %s72, %s88
    %p90 = scmp.eq.s32.totalorder %s15, 0
    %p91 = por %p89, %p90
    %s92 = ssub.s32 %s16, %s35
    %s93 = ssub.s32 %s18, %s27
    %s94 = sor.u32 %s92, %s93
    %p95 = scmp.eq.s32.totalorder %s94, 0
    %s97 = sadd.s32 %s96, 1
    %s98 = scalar_select %p95, %s96, %s97
    %p101 = pneg %p95
    %p102 = scmp.eq.s32.totalorder %s9, 1
    %p103 = por %p101, %p102
    %p104 = scmp.ne.s32.totalorder %s96, %s99
    %p105 = scmp.eq.s32.totalorder %s9, 0
    %p106 = por %p104, %p105
    %p107 = scmp.ne.s32.totalorder %s96, %s99
    %p108 = scmp.eq.s32.totalorder %s14, 1
    %p109 = por %p107, %p108
    %p110 = scmp.ne.s32.totalorder %s99, %s100
    %p111 = scmp.eq.s32.totalorder %s14, 0
    %p112 = por %p110, %p111
    %p113 = scmp.ne.s32.totalorder %s99, %s100
    %p114 = scmp.eq.s32.totalorder %s15, 1
    %p115 = por %p113, %p114
    %p117 = scmp.ne.s32.totalorder %s100, %s116
    %p118 = scmp.eq.s32.totalorder %s15, 0
    %p119 = por %p117, %p118
    %s120 = ssub.s32 %s16, %s35
    %s121 = ssub.s32 %s17, %s31
    %s122 = sor.u32 %s120, %s121
    %p123 = scmp.eq.s32.totalorder %s122, 0
    %s125 = sadd.s32 %s124, 1
    %s126 = scalar_select %p123, %s124, %s125
    %p129 = pneg %p123
    %p130 = scmp.eq.s32.totalorder %s9, 1
    %p131 = por %p129, %p130
    %p132 = scmp.ne.s32.totalorder %s124, %s127
    %p133 = scmp.eq.s32.totalorder %s9, 0
    %p134 = por %p132, %p133
    %p135 = scmp.ne.s32.totalorder %s124, %s127
    %p136 = scmp.eq.s32.totalorder %s14, 1
    %p137 = por %p135, %p136
    %p138 = scmp.ne.s32.totalorder %s127, %s128
    %p139 = scmp.eq.s32.totalorder %s14, 0
    %p140 = por %p138, %p139
    %p141 = scmp.ne.s32.totalorder %s127, %s128
    %p142 = scmp.eq.s32.totalorder %s15, 1
    %p143 = por %p141, %p142
    %p145 = scmp.ne.s32.totalorder %s128, %s144
    %p146 = scmp.eq.s32.totalorder %s15, 0
    %p147 = por %p145, %p146
    %p148 = scmp.le.s32.totalorder 1, %s9
    %p149 = scmp.lt.s32.totalorder %s9, 3
    %p150 = pnand %p148, %p149
    %p151 = pneg %p150
    // Predicated region
    $region9: #{transformer_forward.26} parent=5 // pred_check
      _
    $region10: #{transformer_forward.26} parent=5 // pred_check_branch
      %153 = sbr.rel (%p150) target = $region12
    $region11: #{transformer_forward.26} parent=5 // pred_region
      %s154 = ssub.s32 %s9, 1
    $region12: #{transformer_forward.26} parent=5 // pred_fallthru
      _
    %p155 = scmp.lt.s32.totalorder %s9, 2
    // Predicated region
    $region13: #{transformer_forward.26} parent=5 // pred_check
      %p156 = pneg %p155
    $region14: #{transformer_forward.26} parent=5 // pred_check_branch
      %158 = sbr.rel (%p156) target = $region16
    $region15: #{transformer_forward.26} parent=5 // pred_region
      // Predicated region
      $region17: #{transformer_forward.26} parent=15 // pred_check
        %p159 = pneg %p50
      $region18: #{transformer_forward.26} parent=15 // pred_check_branch
        %161 = sbr.rel (%p159) target = $region20
      $region19: #{transformer_forward.26} parent=15 // pred_region
        %p162 = scmp.lt.s32.totalorder %s16, 1
        %s163 = scalar_select %p162, %s16, 1
        %p164 = scmp.lt.s32.totalorder %s17, 0
        %s165 = scalar_select %p164, %s17, 0
        %s166 = smul.addr %s165, 3
        %s167 = smul.addr %s163, 3
        %s168 = sadd.s32 %s166, %s167
        %s169 = smul.addr %s168, 4
        %s170 = scalar_lea.vmem %s0, %s169
      $region20: #{transformer_forward.26} parent=15 // pred_fallthru
        _
      // Predicated region
      $region21: #{transformer_forward.26} parent=15 // pred_check
        %p171 = pneg %p78
      $region22: #{transformer_forward.26} parent=15 // pred_check_branch
        %173 = sbr.rel (%p171) target = $region24
      $region23: #{transformer_forward.26} parent=15 // pred_region
        %p174 = scmp.lt.s32.totalorder %s16, 1
        %s175 = scalar_select %p174, %s16, 1
        %p176 = scmp.lt.s32.totalorder %s18, 0
        %s177 = scalar_select %p176, %s18, 0
        %s178 = smul.addr %s177, 3
        %s179 = sadd.s32 1, %s178
        %s180 = smul.addr %s175, 3
        %s181 = sadd.s32 %s179, %s180
        %s182 = smul.addr %s181, 4
        %s183 = scalar_lea.vmem %s1, %s182
      $region24: #{transformer_forward.26} parent=15 // pred_fallthru
        _
      // Predicated region
      $region25: #{transformer_forward.26} parent=15 // pred_check
        %p184 = pneg %p106
      $region26: #{transformer_forward.26} parent=15 // pred_check_branch
        %186 = sbr.rel (%p184) target = $region28
      $region27: #{transformer_forward.26} parent=15 // pred_region
        %p187 = scmp.lt.s32.totalorder %s16, 1
        %s188 = scalar_select %p187, %s16, 1
        %p189 = scmp.lt.s32.totalorder %s18, 0
        %s190 = scalar_select %p189, %s18, 0
        %s191 = smul.addr %s190, 3
        %s192 = sadd.s32 2, %s191
        %s193 = smul.addr %s188, 3
        %s194 = sadd.s32 %s192, %s193
        %s195 = smul.addr %s194, 4
        %s196 = scalar_lea.vmem %s2, %s195
      $region28: #{transformer_forward.26} parent=15 // pred_fallthru
        _
    $region16: #{transformer_forward.26} parent=5 // pred_fallthru
      _
    %p197 = scmp.le.s32.totalorder 1, %s9
    %p198 = scmp.lt.s32.totalorder %s9, 3
    %p199 = pnand %p197, %p198
    %p200 = pneg %p199
    // Predicated region
    $region29: #{transformer_forward.26} parent=5 // pred_check
      _
    $region30: #{transformer_forward.26} parent=5 // pred_check_branch
      %202 = sbr.rel (%p199) target = $region32
    $region31: #{transformer_forward.26} parent=5 // pred_region
      %s203 = ssub.s32 %s9, 1
      %p204 = scmp.lt.s32.totalorder %s19, 1
      %s205 = scalar_select %p204, %s19, 1
      %p206 = scmp.lt.s32.totalorder %s20, 0
      %s207 = scalar_select %p206, %s20, 0
      %s208 = smul.addr %s207, 3
      %s209 = smul.addr %s205, 3
      %s210 = sadd.s32 %s208, %s209
      %s211 = smul.addr %s210, 4
      %s212 = scalar_lea.vmem %s0, %s211
      %p213 = pneg %p56
      %p214 = pneg %p53
      %p215 = scmp.lt.s32.totalorder %s19, 1
      %s216 = scalar_select %p215, %s19, 1
      %p217 = scmp.lt.s32.totalorder %s21, 0
      %s218 = scalar_select %p217, %s21, 0
      %s219 = smul.addr %s218, 3
      %s220 = sadd.s32 1, %s219
      %s221 = smul.addr %s216, 3
      %s222 = sadd.s32 %s220, %s221
      %s223 = smul.addr %s222, 4
      %s224 = scalar_lea.vmem %s1, %s223
      %p225 = pneg %p84
      %p226 = pneg %p81
      %p227 = scmp.lt.s32.totalorder %s19, 1
      %s228 = scalar_select %p227, %s19, 1
      %p229 = scmp.lt.s32.totalorder %s21, 0
      %s230 = scalar_select %p229, %s21, 0
      %s231 = smul.addr %s230, 3
      %s232 = sadd.s32 2, %s231
      %s233 = smul.addr %s228, 3
      %s234 = sadd.s32 %s232, %s233
      %s235 = smul.addr %s234, 4
      %s236 = scalar_lea.vmem %s2, %s235
      %p237 = pneg %p112
      %p238 = pneg %p109
      %p239 = pneg %p140
      %p240 = pneg %p137
      %p241 = scmp.lt.s32.totalorder %s19, 1
      %s242 = scalar_select %p241, %s19, 1
      %p243 = scmp.lt.s32.totalorder %s20, 0
      %s244 = scalar_select %p243, %s20, 0
      %s245 = sadd.s32 %s244, %s242
      %s246 = smul.addr %s245, 4
      %s247 = scalar_lea.vmem %s3, %s246
      %p248 = scmp.lt.s32.totalorder %s19, 1
      %s249 = scalar_select %p248, %s19, 1
      %p250 = scmp.lt.s32.totalorder %s20, 0
      %s251 = scalar_select %p250, %s20, 0
      %s252 = smul.addr %s251, 3
      %s253 = smul.addr %s249, 3
      %s254 = sadd.s32 %s252, %s253
      %s255 = smul.addr %s254, 4
      %s256 = scalar_lea.vmem %s0, %s255
      %p257 = scmp.lt.s32.totalorder %s19, 1
      %s258 = scalar_select %p257, %s19, 1
      %p259 = scmp.lt.s32.totalorder %s21, 0
      %s260 = scalar_select %p259, %s21, 0
      %s261 = smul.addr %s260, 3
      %s262 = sadd.s32 1, %s261
      %s263 = smul.addr %s258, 3
      %s264 = sadd.s32 %s262, %s263
      %s265 = smul.addr %s264, 4
      %s266 = scalar_lea.vmem %s1, %s265
      %p267 = scmp.lt.s32.totalorder %s19, 1
      %s268 = scalar_select %p267, %s19, 1
      %p269 = scmp.lt.s32.totalorder %s21, 0
      %s270 = scalar_select %p269, %s21, 0
      %s271 = smul.addr %s270, 3
      %s272 = sadd.s32 2, %s271
      %s273 = smul.addr %s268, 3
      %s274 = sadd.s32 %s272, %s273
      %s275 = smul.addr %s274, 4
      %s276 = scalar_lea.vmem %s2, %s275
      %p277 = scmp.lt.s32.totalorder %s19, 1
      %s278 = scalar_select %p277, %s19, 1
      %p279 = scmp.lt.s32.totalorder %s20, 0
      %s280 = scalar_select %p279, %s20, 0
      %s281 = sadd.s32 %s280, %s278
      %s282 = smul.addr %s281, 4
      %s283 = scalar_lea.vmem %s3, %s282
      %p285 = scmp.eq.s32.totalorder %s21, 0
      // Predicated region
      $region33: #{transformer_forward.26} parent=31 // pred_check
        %p286 = pneg %p285
      $region34: #{transformer_forward.26} parent=31 // pred_check_branch
        %288 = sbr.rel (%p286) target = $region36
      $region35: #{transformer_forward.26} parent=31 // pred_region
        %vm289 = vcmask 7168
        %290 = vst.msk [vmem:[#allocation2] sm:$0xff] %vm289, -inf
        %291 = vst.msk [vmem:[#allocation2 + $0x8] sm:$0xff] %vm289, -inf
        %292 = vst.msk [vmem:[#allocation2 + $0x10] sm:$0xff] %vm289, -inf
        %293 = vst.msk [vmem:[#allocation2 + $0x18] sm:$0xff] %vm289, -inf
        %294 = vst.msk [vmem:[#allocation3] sm:$0xff] %vm289, 0.0
        %295 = vst.msk [vmem:[#allocation3 + $0x8] sm:$0xff] %vm289, 0.0
        %296 = vst.msk [vmem:[#allocation3 + $0x10] sm:$0xff] %vm289, 0.0
        %297 = vst.msk [vmem:[#allocation3 + $0x18] sm:$0xff] %vm289, 0.0
        %vm298 = vcmask 261120
        %299 = vst.msk [vmem:[#allocation4] sm:$0xff] %vm298, 0.0
        %300 = vst.msk [vmem:[#allocation4 + $0x8] sm:$0xff] %vm298, 0.0
        %301 = vst.msk [vmem:[#allocation4 + $0x10] sm:$0xff] %vm298, 0.0
        %302 = vst.msk [vmem:[#allocation4 + $0x18] sm:$0xff] %vm298, 0.0
      $region36: #{transformer_forward.26} parent=31 // pred_fallthru
        _
      %v303 = vld [vmem:[%s256] sm:$0xf]
      %v304 = vld [vmem:[%s266] sm:$0xf]
      %v305 = vld [vmem:[%s276] sm:$0xf]
      %vm306 = vcmask 261120
      %v308 = vsel %vm306, %v303, 0
      %v311 = vsel %vm306, %v304, 0
      %313 = vmatpush.bf16.xpose.msra.mxu0 0
      %314 = vmatpush.bf16.xpose.msra.mxu0 0
      %315 = vmatpush.bf16.xpose.msra.mxu0 0
      %316 = vmatpush.bf16.xpose.msra.mxu0 0
      %317 = vmatpush.bf16.xpose.msra.mxu0 0
      %318 = vmatpush.bf16.xpose.msra.mxu0 0
      %319 = vmatpush.bf16.xpose.msra.mxu0 0
      %320 = vmatpush.bf16.xpose.msra.mxu0 %v311
      %321 = vmatmul.bf16.gmra.mxu0 %v308
      %v322 = vpop.f32.mrf.mxu0
      %v323 = vadd.f32 0.0, %v322
      %v324 = vpop.f32.mrf.mxu0
      %325 = vdwg.mxu0
      %v326 = vld [vmem:[#allocation2] sm:$0xff]
      %vm327 = vcmask 64512
      %v328 = vsel %vm327, %v323, -inf
      %329 = vmax.xlane.f32.xlu0 %v328
      %v330 = vpop.xlane.xlu0 %329
      %v331 = vmax.f32 %v326, %v330
      %v332 = vsub.f32 %v326, %v331
      %v333 = vmul.f32 %v332, 1.442695
      %v334 = vpow.pop %v333
      %336 = vset.pattern.permute.xlu0 0
      %337 = vperm.xlu0 %336, %v331
      %v338 = vpop.permute.xlu0 %337
      %v340 = vsub.f32 %v323, %v338
      %v341 = vmul.f32 %v340, 1.442695
      %v342 = vpow.pop %v341
      %v343 = vld [vmem:[#allocation3] sm:$0xff]
      %v344 = vmul.f32 %v334, %v343
      %v345 = vsel %vm327, %v342, 0.0
      %346 = vadd.xlane.f32.xlu0 %v345
      %v347 = vpop.xlane.xlu0 %346
      %v348 = vadd.f32 %v344, %v347
      %vm349 = vcmask 7168
      %350 = vst.msk [vmem:[#allocation3] sm:$0xff] %vm349, %v348
      %v351 = vld [vmem:[#allocation4] sm:$0xff]
      %353 = vset.pattern.permute.xlu0 0
      %354 = vperm.xlu0 %353, %v334
      %v355 = vpop.permute.xlu0 %354
      %v357 = vmul.f32 %v355, %v351
      %v358 = vpack.c.bf16 %v342, %v342
      %v360 = vsel %vm327, %v358, 0
      %vm362 = vcmask 1043456
      %v364 = vsel %vm362, %v305, 0
      %366 = vmatpush.bf16.msra.mxu0 0
      %367 = vmatpush.bf16.msra.mxu0 0
      %368 = vmatpush.bf16.msra.mxu0 0
      %369 = vmatpush.bf16.msra.mxu0 0
      %370 = vmatpush.bf16.msra.mxu0 0
      %371 = vmatpush.bf16.msra.mxu0 0
      %372 = vmatpush.bf16.msra.mxu0 0
      %373 = vmatpush.bf16.msra.mxu0 %v364
      %374 = vmatmul.bf16.gmra.mxu0 %v360
      %v375 = vpop.f32.mrf.mxu0
      %v376 = vadd.f32 0.0, %v375
      %v377 = vpop.f32.mrf.mxu0
      %378 = vdwg.mxu0
      %v379 = vadd.f32 %v357, %v376
      %380 = vst.msk [vmem:[#allocation4] sm:$0xff] %vm306, %v379
      %381 = vst.msk [vmem:[#allocation2] sm:$0xff] %vm349, %v331
      %v383 = vunpack.c.l.b16 %v303
      %v384 = vpack.c.b16 %v383, %v383
      %385 = vrot.lane.b32.xlu0 %v384, 96
      %v386 = vpop.permute.xlu0 %385
      %v388 = vunpack.c.l.b16 %v304
      %v389 = vpack.c.b16 %v388, %v388
      %390 = vrot.lane.b32.xlu0 %v389, 96
      %v391 = vpop.permute.xlu0 %390
      %v393 = vsel %vm306, %v386, 0
      %v396 = vsel %vm306, %v391, 0
      %398 = vmatpush.bf16.xpose.msra.mxu0 0
      %399 = vmatpush.bf16.xpose.msra.mxu0 0
      %400 = vmatpush.bf16.xpose.msra.mxu0 0
      %401 = vmatpush.bf16.xpose.msra.mxu0 0
      %402 = vmatpush.bf16.xpose.msra.mxu0 0
      %403 = vmatpush.bf16.xpose.msra.mxu0 0
      %404 = vmatpush.bf16.xpose.msra.mxu0 0
      %405 = vmatpush.bf16.xpose.msra.mxu0 %v396
      %406 = vmatmul.bf16.gmra.mxu0 %v393
      %v407 = vpop.f32.mrf.mxu0
      %v408 = vadd.f32 0.0, %v407
      %v409 = vpop.f32.mrf.mxu0
      %410 = vdwg.mxu0
      %s411 = scalar_lea.vmem [#allocation2], 8
      %v412 = vld [vmem:[%s411] sm:$0xff]
      %v413 = vsel %vm327, %v408, -inf
      %414 = vmax.xlane.f32.xlu0 %v413
      %v415 = vpop.xlane.xlu0 %414
      %v416 = vmax.f32 %v412, %v415
      %v417 = vsub.f32 %v412, %v416
      %v418 = vmul.f32 %v417, 1.442695
      %v419 = vpow.pop %v418
      %421 = vset.pattern.permute.xlu0 0
      %422 = vperm.xlu0 %421, %v416
      %v423 = vpop.permute.xlu0 %422
      %v425 = vsub.f32 %v408, %v423
      %v426 = vmul.f32 %v425, 1.442695
      %v427 = vpow.pop %v426
      %s428 = scalar_lea.vmem [#allocation3], 8
      %v429 = vld [vmem:[%s428] sm:$0xff]
      %v430 = vmul.f32 %v419, %v429
      %v431 = vsel %vm327, %v427, 0.0
      %432 = vadd.xlane.f32.xlu0 %v431
      %v433 = vpop.xlane.xlu0 %432
      %v434 = vadd.f32 %v430, %v433
      %435 = vst.msk [vmem:[%s428] sm:$0xff] %vm349, %v434
      %s436 = scalar_lea.vmem [#allocation4], 8
      %v437 = vld [vmem:[%s436] sm:$0xff]
      %439 = vset.pattern.permute.xlu0 0
      %440 = vperm.xlu0 %439, %v419
      %v441 = vpop.permute.xlu0 %440
      %v443 = vmul.f32 %v441, %v437
      %v444 = vpack.c.bf16 %v427, %v427
      %v446 = vunpack.c.l.b16 %v305
      %v447 = vpack.c.b16 %v446, %v446
      %448 = vrot.lane.b32.xlu0 %v447, 96
      %v449 = vpop.permute.xlu0 %448
      %v451 = vsel %vm327, %v444, 0
      %v454 = vsel %vm362, %v449, 0
      %456 = vmatpush.bf16.msra.mxu0 0
      %457 = vmatpush.bf16.msra.mxu0 0
      %458 = vmatpush.bf16.msra.mxu0 0
      %459 = vmatpush.bf16.msra.mxu0 0
      %460 = vmatpush.bf16.msra.mxu0 0
      %461 = vmatpush.bf16.msra.mxu0 0
      %462 = vmatpush.bf16.msra.mxu0 0
      %463 = vmatpush.bf16.msra.mxu0 %v454
      %464 = vmatmul.bf16.gmra.mxu0 %v451
      %v465 = vpop.f32.mrf.mxu0
      %v466 = vadd.f32 0.0, %v465
      %v467 = vpop.f32.mrf.mxu0
      %468 = vdwg.mxu0
      %v469 = vadd.f32 %v443, %v466
      %470 = vst.msk [vmem:[%s436] sm:$0xff] %vm306, %v469
      %471 = vst.msk [vmem:[%s411] sm:$0xff] %vm349, %v416
      %472 = vrot.lane.b32.xlu0 %v384, 64
      %v473 = vpop.permute.xlu0 %472
      %474 = vrot.lane.b32.xlu0 %v389, 64
      %v475 = vpop.permute.xlu0 %474
      %v477 = vsel %vm306, %v473, 0
      %v480 = vsel %vm306, %v475, 0
      %482 = vmatpush.bf16.xpose.msra.mxu0 0
      %483 = vmatpush.bf16.xpose.msra.mxu0 0
      %484 = vmatpush.bf16.xpose.msra.mxu0 0
      %485 = vmatpush.bf16.xpose.msra.mxu0 0
      %486 = vmatpush.bf16.xpose.msra.mxu0 0
      %487 = vmatpush.bf16.xpose.msra.mxu0 0
      %488 = vmatpush.bf16.xpose.msra.mxu0 0
      %489 = vmatpush.bf16.xpose.msra.mxu0 %v480
      %490 = vmatmul.bf16.gmra.mxu0 %v477
      %v491 = vpop.f32.mrf.mxu0
      %v492 = vadd.f32 0.0, %v491
      %v493 = vpop.f32.mrf.mxu0
      %494 = vdwg.mxu0
      %s495 = scalar_lea.vmem [#allocation2], 16
      %v496 = vld [vmem:[%s495] sm:$0xff]
      %v497 = vsel %vm327, %v492, -inf
      %498 = vmax.xlane.f32.xlu0 %v497
      %v499 = vpop.xlane.xlu0 %498
      %v500 = vmax.f32 %v496, %v499
      %v501 = vsub.f32 %v496, %v500
      %v502 = vmul.f32 %v501, 1.442695
      %v503 = vpow.pop %v502
      %505 = vset.pattern.permute.xlu0 0
      %506 = vperm.xlu0 %505, %v500
      %v507 = vpop.permute.xlu0 %506
      %v509 = vsub.f32 %v492, %v507
      %v510 = vmul.f32 %v509, 1.442695
      %v511 = vpow.pop %v510
      %s512 = scalar_lea.vmem [#allocation3], 16
      %v513 = vld [vmem:[%s512] sm:$0xff]
      %v514 = vmul.f32 %v503, %v513
      %v515 = vsel %vm327, %v511, 0.0
      %516 = vadd.xlane.f32.xlu0 %v515
      %v517 = vpop.xlane.xlu0 %516
      %v518 = vadd.f32 %v514, %v517
      %519 = vst.msk [vmem:[%s512] sm:$0xff] %vm349, %v518
      %s520 = scalar_lea.vmem [#allocation4], 16
      %v521 = vld [vmem:[%s520] sm:$0xff]
      %523 = vset.pattern.permute.xlu0 0
      %524 = vperm.xlu0 %523, %v503
      %v525 = vpop.permute.xlu0 %524
      %v527 = vmul.f32 %v525, %v521
      %v528 = vpack.c.bf16 %v511, %v511
      %529 = vrot.lane.b32.xlu0 %v447, 64
      %v530 = vpop.permute.xlu0 %529
      %v532 = vsel %vm327, %v528, 0
      %v535 = vsel %vm362, %v530, 0
      %537 = vmatpush.bf16.msra.mxu0 0
      %538 = vmatpush.bf16.msra.mxu0 0
      %539 = vmatpush.bf16.msra.mxu0 0
      %540 = vmatpush.bf16.msra.mxu0 0
      %541 = vmatpush.bf16.msra.mxu0 0
      %542 = vmatpush.bf16.msra.mxu0 0
      %543 = vmatpush.bf16.msra.mxu0 0
      %544 = vmatpush.bf16.msra.mxu0 %v535
      %545 = vmatmul.bf16.gmra.mxu0 %v532
      %v546 = vpop.f32.mrf.mxu0
      %v547 = vadd.f32 0.0, %v546
      %v548 = vpop.f32.mrf.mxu0
      %549 = vdwg.mxu0
      %v550 = vadd.f32 %v527, %v547
      %551 = vst.msk [vmem:[%s520] sm:$0xff] %vm306, %v550
      %552 = vst.msk [vmem:[%s495] sm:$0xff] %vm349, %v500
      %553 = vrot.lane.b32.xlu0 %v384, 32
      %v554 = vpop.permute.xlu0 %553
      %555 = vrot.lane.b32.xlu0 %v389, 32
      %v556 = vpop.permute.xlu0 %555
      %v558 = vsel %vm306, %v554, 0
      %v561 = vsel %vm306, %v556, 0
      %563 = vmatpush.bf16.xpose.msra.mxu0 0
      %564 = vmatpush.bf16.xpose.msra.mxu0 0
      %565 = vmatpush.bf16.xpose.msra.mxu0 0
      %566 = vmatpush.bf16.xpose.msra.mxu0 0
      %567 = vmatpush.bf16.xpose.msra.mxu0 0
      %568 = vmatpush.bf16.xpose.msra.mxu0 0
      %569 = vmatpush.bf16.xpose.msra.mxu0 0
      %570 = vmatpush.bf16.xpose.msra.mxu0 %v561
      %571 = vmatmul.bf16.gmra.mxu0 %v558
      %v572 = vpop.f32.mrf.mxu0
      %v573 = vadd.f32 0.0, %v572
      %v574 = vpop.f32.mrf.mxu0
      %575 = vdwg.mxu0
      %s576 = scalar_lea.vmem [#allocation2], 24
      %v577 = vld [vmem:[%s576] sm:$0xff]
      %v578 = vsel %vm327, %v573, -inf
      %579 = vmax.xlane.f32.xlu0 %v578
      %v580 = vpop.xlane.xlu0 %579
      %v581 = vmax.f32 %v577, %v580
      %v582 = vsub.f32 %v577, %v581
      %v583 = vmul.f32 %v582, 1.442695
      %v584 = vpow.pop %v583
      %586 = vset.pattern.permute.xlu0 0
      %587 = vperm.xlu0 %586, %v581
      %v588 = vpop.permute.xlu0 %587
      %v590 = vsub.f32 %v573, %v588
      %v591 = vmul.f32 %v590, 1.442695
      %v592 = vpow.pop %v591
      %s593 = scalar_lea.vmem [#allocation3], 24
      %v594 = vld [vmem:[%s593] sm:$0xff]
      %v595 = vmul.f32 %v584, %v594
      %v596 = vsel %vm327, %v592, 0.0
      %597 = vadd.xlane.f32.xlu0 %v596
      %v598 = vpop.xlane.xlu0 %597
      %v599 = vadd.f32 %v595, %v598
      %600 = vst.msk [vmem:[%s593] sm:$0xff] %vm349, %v599
      %s601 = scalar_lea.vmem [#allocation4], 24
      %v602 = vld [vmem:[%s601] sm:$0xff]
      %604 = vset.pattern.permute.xlu0 0
      %605 = vperm.xlu0 %604, %v584
      %v606 = vpop.permute.xlu0 %605
      %v608 = vmul.f32 %v606, %v602
      %v609 = vpack.c.bf16 %v592, %v592
      %610 = vrot.lane.b32.xlu0 %v447, 32
      %v611 = vpop.permute.xlu0 %610
      %v613 = vsel %vm327, %v609, 0
      %v616 = vsel %vm362, %v611, 0
      %618 = vmatpush.bf16.msra.mxu0 0
      %619 = vmatpush.bf16.msra.mxu0 0
      %620 = vmatpush.bf16.msra.mxu0 0
      %621 = vmatpush.bf16.msra.mxu0 0
      %622 = vmatpush.bf16.msra.mxu0 0
      %623 = vmatpush.bf16.msra.mxu0 0
      %624 = vmatpush.bf16.msra.mxu0 0
      %625 = vmatpush.bf16.msra.mxu0 %v616
      %626 = vmatmul.bf16.gmra.mxu0 %v613
      %v627 = vpop.f32.mrf.mxu0
      %v628 = vadd.f32 0.0, %v627
      %v629 = vpop.f32.mrf.mxu0
      %630 = vdwg.mxu0
      %v631 = vadd.f32 %v608, %v628
      %632 = vst.msk [vmem:[%s601] sm:$0xff] %vm306, %v631
      %633 = vst.msk [vmem:[%s576] sm:$0xff] %vm349, %v581
      // Predicated region
      $region37: #{transformer_forward.26} parent=31 // pred_check
        %p634 = pneg %p285
      $region38: #{transformer_forward.26} parent=31 // pred_check_branch
        %636 = sbr.rel (%p634) target = $region40
      $region39: #{transformer_forward.26} parent=31 // pred_region
        %v637 = vld [vmem:[#allocation3] sm:$0xff]
        %v638 = vrcp.pop %v637
        %v639 = vld [vmem:[#allocation4] sm:$0xff]
        %641 = vset.pattern.permute.xlu0 0
        %642 = vperm.xlu0 %641, %v638
        %v643 = vpop.permute.xlu0 %642
        %v645 = vmul.f32 %v639, %v643
        %v646 = vpack.c.bf16 %v645, %v645
        %vm647 = vcmask 257024
        %648 = vst.msk [vmem:[%s283] sm:$0xf] %vm647, %v646
        %v649 = vld [vmem:[%s428] sm:$0xff]
        %v650 = vrcp.pop %v649
        %v651 = vld [vmem:[%s436] sm:$0xff]
        %653 = vset.pattern.permute.xlu0 0
        %654 = vperm.xlu0 %653, %v650
        %v655 = vpop.permute.xlu0 %654
        %v657 = vmul.f32 %v651, %v655
        %v658 = vpack.c.bf16 %v657, %v657
        %660 = vrot.lane.b32.xlu0 %v658, 32
        %v661 = vpop.permute.xlu0 %660
        %vm663 = vcmask 519424
        %664 = vst.msk [vmem:[%s283] sm:$0xf] %vm663, %v661
        %v665 = vld [vmem:[%s512] sm:$0xff]
        %v666 = vrcp.pop %v665
        %v667 = vld [vmem:[%s520] sm:$0xff]
        %669 = vset.pattern.permute.xlu0 0
        %670 = vperm.xlu0 %669, %v666
        %v671 = vpop.permute.xlu0 %670
        %v673 = vmul.f32 %v667, %v671
        %v674 = vpack.c.bf16 %v673, %v673
        %676 = vrot.lane.b32.xlu0 %v674, 64
        %v677 = vpop.permute.xlu0 %676
        %vm679 = vcmask 781824
        %680 = vst.msk [vmem:[%s283] sm:$0xf] %vm679, %v677
        %v681 = vld [vmem:[%s593] sm:$0xff]
        %v682 = vrcp.pop %v681
        %v683 = vld [vmem:[%s601] sm:$0xff]
        %685 = vset.pattern.permute.xlu0 0
        %686 = vperm.xlu0 %685, %v682
        %v687 = vpop.permute.xlu0 %686
        %v689 = vmul.f32 %v683, %v687
        %v690 = vpack.c.bf16 %v689, %v689
        %692 = vrot.lane.b32.xlu0 %v690, 96
        %v693 = vpop.permute.xlu0 %692
        %vm695 = vcmask 1044224
        %696 = vst.msk [vmem:[%s283] sm:$0xf] %vm695, %v693
      $region40: #{transformer_forward.26} parent=31 // pred_fallthru
        _
      %p697 = scmp.lt.s32.totalorder %s19, 1
      %s698 = scalar_select %p697, %s19, 1
      %p699 = scmp.lt.s32.totalorder %s20, 0
      %s700 = scalar_select %p699, %s20, 0
      %s701 = sadd.s32 %s700, %s698
      %s702 = smul.addr %s701, 4
      %s703 = scalar_lea.vmem %s3, %s702
      // Predicated region
      $region41: #{transformer_forward.26} parent=31 // pred_check
        %p704 = pneg %p137
      $region42: #{transformer_forward.26} parent=31 // pred_check_branch
        %706 = sbr.rel (%p704) target = $region44
      $region43: #{transformer_forward.26} parent=31 // pred_region
        _
      $region44: #{transformer_forward.26} parent=31 // pred_fallthru
        _
    $region32: #{transformer_forward.26} parent=5 // pred_fallthru
      _
    %p707 = scmp.le.s32.totalorder 2, %s9
    // Predicated region
    $region45: #{transformer_forward.26} parent=5 // pred_check
      %p708 = pneg %p707
    $region46: #{transformer_forward.26} parent=5 // pred_check_branch
      %710 = sbr.rel (%p708) target = $region48
    $region47: #{transformer_forward.26} parent=5 // pred_region
      %s711 = ssub.s32 %s9, 2
      // Predicated region
      $region49: #{transformer_forward.26} parent=47 // pred_check
        %p712 = pneg %p143
      $region50: #{transformer_forward.26} parent=47 // pred_check_branch
        %714 = sbr.rel (%p712) target = $region52
      $region51: #{transformer_forward.26} parent=47 // pred_region
        %p715 = scmp.lt.s32.totalorder %s22, 1
        %s716 = scalar_select %p715, %s22, 1
        %p717 = scmp.lt.s32.totalorder %s23, 0
        %s718 = scalar_select %p717, %s23, 0
        %s719 = sadd.s32 %s718, %s716
        %s720 = smul.addr %s719, 4
        %s721 = scalar_lea.vmem %s3, %s720
      $region52: #{transformer_forward.26} parent=47 // pred_fallthru
        _
    $region48: #{transformer_forward.26} parent=5 // pred_fallthru
      _
  $region6: #{transformer_forward.26} parent=0 // loop_footer
    %s13 = sadd.s32 1, %s9
  $region7: #{transformer_forward.26} parent=0 // loop_footer_branch
    %8 = sbr.rel target = $region3
  $region8: #{transformer_forward.26} parent=0 // loop_exit
    _

// kernel: transformer_forward.31
$region0: #{transformer_forward.31}
  #allocation0 [shape = 'u32[]', space=smem, size = 0x4, offset = 0x4, fixed_abs, tag = 'smem constant byte address 0x4 - core index']
  #allocation1 [shape = 'u32[72,128]{1,0:T(1,128)}', space=vmem, size = 0x9000, scoped, tag = 'internal scratch']
  #allocation2 [shape = 'f32[16,128]{1,0:T(8,128)}', space=vmem, size = 0x2000, scoped, tag = 'scratch operand']
  %s0 = inlined_call_operand.vmem [shape: bf16[16,128], index: 0, kind: input, shape index: {}]
  %s1 = inlined_call_operand.hbm [shape: bf16[128,128], index: 1, kind: input, shape index: {}]
  %s2 = inlined_call_operand.vmem [shape: f32[1,128], index: 2, kind: input, shape index: {}]
  %s3 = inlined_call_operand.vmem [shape: bf16[16,128], index: 3, kind: input, shape index: {}]
  %s4 = inlined_call_operand.vmem [shape: f32[1,128], index: 4, kind: input, shape index: {}]
  %s5 = inlined_call_operand.vmem [shape: f32[1,128], index: 5, kind: input, shape index: {}]
  %s6 = inlined_call_operand.vmem [shape: bf16[16,128], index: 6, kind: output, shape index: {}]
  %s7 = sld [smem:[#allocation0]]
  $region46: #{transformer_forward.31} parent=0
    _
  %s9 = ssub.s32 1, %s7
  %s10 = scalar_select 0, %s9, %s7
  $region1: #{transformer_forward.31} parent=0
    #allocation3 [shape = 'u8[32768]{0}', space=vmem, size = 0x8000, scoped, tag = 'input window, operand 1, single buffered']
    #allocation4 [shape = 's32[1]{0}', space=sflag, size = 0x4, scoped, tag = 'scoped memory for transformer_forward.31']
    %11 = vsyncpa [#allocation4], 0
    // Predicated region
    $region2: #{transformer_forward.31} parent=1 // pred_check
      _
    $region3: #{transformer_forward.31} parent=1 // pred_check_branch
      %13 = sbr.rel (0) target = $region5
    $region4: #{transformer_forward.31} parent=1 // pred_region
      _
    $region5: #{transformer_forward.31} parent=1 // pred_fallthru
      _
    // Predicated region
    $region6: #{transformer_forward.31} parent=1 // pred_check
      _
    $region7: #{transformer_forward.31} parent=1 // pred_check_branch
      %15 = sbr.rel (0) target = $region9
    $region8: #{transformer_forward.31} parent=1 // pred_region
      %17 = vsyncadd [#allocation4], 0
      %s18 = sshll.u32 %s1, 4
      %s19 = int_to_ptr.hbm [resolvable:$true] %s18
      %s20 = sshll.u32 [#allocation3], 4
      %s21 = int_to_ptr.vmem [resolvable:$true] %s20
      %26 = dma.hbm_to_vmem [thread:$0]  %s19, 1024, %s21, [#allocation4], 64, 64, 4
    $region9: #{transformer_forward.31} parent=1 // pred_fallthru
      _
    // Predicated region
    $region10: #{transformer_forward.31} parent=1 // pred_check
      _
    $region11: #{transformer_forward.31} parent=1 // pred_check_branch
      %28 = sbr.rel (0) target = $region13
    $region12: #{transformer_forward.31} parent=1 // pred_region
      _
    $region13: #{transformer_forward.31} parent=1 // pred_fallthru
      _
    // Predicated region
    $region14: #{transformer_forward.31} parent=1 // pred_check
      _
    $region15: #{transformer_forward.31} parent=1 // pred_check_branch
      %30 = sbr.rel (0) target = $region17
    $region16: #{transformer_forward.31} parent=1 // pred_region
      _
    $region17: #{transformer_forward.31} parent=1 // pred_fallthru
      _
    // Predicated region
    $region18: #{transformer_forward.31} parent=1 // pred_check
      _
    $region19: #{transformer_forward.31} parent=1 // pred_check_branch
      %32 = sbr.rel (0) target = $region21
    $region20: #{transformer_forward.31} parent=1 // pred_region
      _
    $region21: #{transformer_forward.31} parent=1 // pred_fallthru
      _
    // Predicated region
    $region22: #{transformer_forward.31} parent=1 // pred_check
      _
    $region23: #{transformer_forward.31} parent=1 // pred_check_branch
      %34 = sbr.rel (0) target = $region25
    $region24: #{transformer_forward.31} parent=1 // pred_region
      _
    $region25: #{transformer_forward.31} parent=1 // pred_fallthru
      _
    // Predicated region
    $region26: #{transformer_forward.31} parent=1 // pred_check
      _
    $region27: #{transformer_forward.31} parent=1 // pred_check_branch
      %36 = sbr.rel (0) target = $region29
    $region28: #{transformer_forward.31} parent=1 // pred_region
      %38 = dma.done [#allocation4], 1024
    $region29: #{transformer_forward.31} parent=1 // pred_fallthru
      _
    %p39 = scmp.eq.s32.totalorder 0, 0
    // Predicated region
    $region30: #{transformer_forward.31} parent=1 // pred_check
      %p40 = pneg %p39
    $region31: #{transformer_forward.31} parent=1 // pred_check_branch
      %42 = sbr.rel (%p40) target = $region33
    $region32: #{transformer_forward.31} parent=1 // pred_region
      %43 = vst [vmem:[#allocation2] sm:$0xff] 0.0
      %44 = vst [vmem:[#allocation2 + $0x8] sm:$0xff] 0.0
    $region33: #{transformer_forward.31} parent=1 // pred_fallthru
      _
    %v45 = vld [vmem:[#allocation2] sm:$0xff]
    %v46 = vld [vmem:[#allocation2 + $0x8] sm:$0xff]
    %v47 = vld [vmem:[%s0] sm:$0xf]
    %v48 = vld [vmem:[%s0 + $0x4] sm:$0xf]
    %v49 = vld [vmem:[#allocation3] sm:$0xf]
    %v50 = vld [vmem:[#allocation3 + $0x4] sm:$0xf]
    %v51 = vld [vmem:[#allocation3 + $0x8] sm:$0xf]
    %v52 = vld [vmem:[#allocation3 + $0xc] sm:$0xf]
    %v53 = vld [vmem:[#allocation3 + $0x10] sm:$0xf]
    %v54 = vld [vmem:[#allocation3 + $0x14] sm:$0xf]
    %v55 = vld [vmem:[#allocation3 + $0x18] sm:$0xf]
    %v56 = vld [vmem:[#allocation3 + $0x1c] sm:$0xf]
    %v57 = vld [vmem:[#allocation3 + $0x20] sm:$0xf]
    %v58 = vld [vmem:[#allocation3 + $0x24] sm:$0xf]
    %v59 = vld [vmem:[#allocation3 + $0x28] sm:$0xf]
    %v60 = vld [vmem:[#allocation3 + $0x2c] sm:$0xf]
    %v61 = vld [vmem:[#allocation3 + $0x30] sm:$0xf]
    %v62 = vld [vmem:[#allocation3 + $0x34] sm:$0xf]
    %v63 = vld [vmem:[#allocation3 + $0x38] sm:$0xf]
    %v64 = vld [vmem:[#allocation3 + $0x3c] sm:$0xf]
    %v67 = vunpack.c.l.b16 %v47
    %v68 = vunpack.c.l.b16 %v48
    %v69 = vpack.c.b16 %v68, %v67
    %v87 = vunpack.c.l.b16 %v49
    %v88 = vunpack.c.l.b16 %v50
    %v89 = vunpack.c.l.b16 %v51
    %v90 = vunpack.c.l.b16 %v52
    %v91 = vunpack.c.l.b16 %v53
    %v92 = vunpack.c.l.b16 %v54
    %v93 = vunpack.c.l.b16 %v55
    %v94 = vunpack.c.l.b16 %v56
    %v95 = vunpack.c.l.b16 %v57
    %v96 = vunpack.c.l.b16 %v58
    %v97 = vunpack.c.l.b16 %v59
    %v98 = vunpack.c.l.b16 %v60
    %v99 = vunpack.c.l.b16 %v61
    %v100 = vunpack.c.l.b16 %v62
    %v101 = vunpack.c.l.b16 %v63
    %v102 = vunpack.c.l.b16 %v64
    %v103 = vpack.c.b16 %v88, %v87
    %v104 = vpack.c.b16 %v90, %v89
    %v105 = vpack.c.b16 %v92, %v91
    %v106 = vpack.c.b16 %v94, %v93
    %v107 = vpack.c.b16 %v96, %v95
    %v108 = vpack.c.b16 %v98, %v97
    %v109 = vpack.c.b16 %v100, %v99
    %v110 = vpack.c.b16 %v102, %v101
    %119 = vmatpush.bf16.msra.mxu0 %v110
    %120 = vmatpush.bf16.msra.mxu0 %v109
    %121 = vmatpush.bf16.msra.mxu0 %v108
    %122 = vmatpush.bf16.msra.mxu0 %v107
    %123 = vmatpush.bf16.msra.mxu0 %v106
    %124 = vmatpush.bf16.msra.mxu0 %v105
    %125 = vmatpush.bf16.msra.mxu0 %v104
    %126 = vmatpush.bf16.msra.mxu0 %v103
    %127 = vmatmul.bf16.gmra.mxu0 %v69
    %v128 = vpop.f32.mrf.mxu0
    %v129 = vadd.f32 0.0, %v128
    %v130 = vpop.f32.mrf.mxu0
    %v131 = vadd.f32 0.0, %v130
    %132 = vdwg.mxu0
    %v133 = vadd.f32 %v45, %v129
    %v134 = vadd.f32 %v46, %v131
    %135 = vst [vmem:[#allocation2] sm:$0xff] %v133
    %136 = vst [vmem:[#allocation2 + $0x8] sm:$0xff] %v134
    // Predicated region
    $region34: #{transformer_forward.31} parent=1 // pred_check
      %p137 = pneg %p39
    $region35: #{transformer_forward.31} parent=1 // pred_check_branch
      %139 = sbr.rel (%p137) target = $region37
    $region36: #{transformer_forward.31} parent=1 // pred_region
      %v140 = vld [vmem:[#allocation2] sm:$0xff]
      %v141 = vld [vmem:[#allocation2 + $0x8] sm:$0xff]
      %v142 = vld [vmem:[%s2] sm:$0x1]
      %v144 = vperm.slane %v142, 0
      %v146 = vadd.f32 %v140, %v144
      %v147 = vadd.f32 %v141, %v144
      %v148 = vld [vmem:[%s3] sm:$0xf]
      %v149 = vld [vmem:[%s3 + $0x4] sm:$0xf]
      %v150 = vunpack.c.l.bf16 %v148
      %v151 = vunpack.c.l.bf16 %v149
      %v152 = vadd.f32 %v146, %v150
      %v153 = vadd.f32 %v147, %v151
      %154 = vadd.xlane.f32.xlu0 %v152
      %v155 = vpop.xlane.xlu0 %154
      %156 = vadd.xlane.f32.xlu0 %v153
      %v157 = vpop.xlane.xlu0 %156
      %v158 = vrcp.pop 128.0
      %v159 = vmul.f32 128.0, %v158
      %v160 = vsub.f32 1.0, %v159
      %v161 = vmul.f32 %v158, %v160
      %v162 = vadd.f32 %v158, %v161
      %vm163 = vweird.f32 %v158
      %v164 = vsel %vm163, %v158, %v162
      %v165 = vmul.f32 %v155, %v164
      %v166 = vmul.f32 %v157, %v164
      %v167 = vsub.f32 %v152, %v165
      %v168 = vsub.f32 %v153, %v166
      %v169 = vmul.f32 %v167, %v167
      %v170 = vmul.f32 %v168, %v168
      %171 = vadd.xlane.f32.xlu0 %v169
      %v172 = vpop.xlane.xlu0 %171
      %173 = vadd.xlane.f32.xlu0 %v170
      %v174 = vpop.xlane.xlu0 %173
      %v175 = vmul.f32 %v172, %v164
      %v176 = vmul.f32 %v174, %v164
      %v177 = vadd.f32 %v175, 1e-05
      %v178 = vadd.f32 %v176, 1e-05
      %v179 = vrsqrt.pop %v177
      %v180 = vmul.f32 %v179, %v177
      %v181 = vmul.f32 %v180, %v179
      %v182 = vmul.f32 0.5, %v181
      %v183 = vsub.f32 1.5, %v182
      %v184 = vmul.f32 %v179, %v183
      %vm185 = vweird.f32 %v177
      %vm186 = vweird.f32 %v179
      %vm187 = vmor %vm185, %vm186
      %v188 = vsel %vm187, %v179, %v184
      %v189 = vrsqrt.pop %v178
      %v190 = vmul.f32 %v189, %v178
      %v191 = vmul.f32 %v190, %v189
      %v192 = vmul.f32 0.5, %v191
      %v193 = vsub.f32 1.5, %v192
      %v194 = vmul.f32 %v189, %v193
      %vm195 = vweird.f32 %v178
      %vm196 = vweird.f32 %v189
      %vm197 = vmor %vm195, %vm196
      %v198 = vsel %vm197, %v189, %v194
      %v199 = vmul.f32 %v167, %v188
      %v200 = vmul.f32 %v168, %v198
      %v201 = vld [vmem:[%s4] sm:$0x1]
      %v203 = vperm.slane %v201, 0
      %v205 = vmul.f32 %v199, %v203
      %v206 = vmul.f32 %v200, %v203
      %v207 = vld [vmem:[%s5] sm:$0x1]
      %v209 = vperm.slane %v207, 0
      %v211 = vadd.f32 %v205, %v209
      %v212 = vadd.f32 %v206, %v209
      %v213 = vpack.c.bf16 %v211, %v211
      %v214 = vpack.c.bf16 %v212, %v212
      %215 = vst [vmem:[%s6] sm:$0xf] %v213
      %216 = vst [vmem:[%s6 + $0x4] sm:$0xf] %v214
    $region37: #{transformer_forward.31} parent=1 // pred_fallthru
      _
    // Predicated region
    $region38: #{transformer_forward.31} parent=1 // pred_check
      _
    $region39: #{transformer_forward.31} parent=1 // pred_check_branch
      %218 = sbr.rel (0) target = $region41
    $region40: #{transformer_forward.31} parent=1 // pred_region
      _
    $region41: #{transformer_forward.31} parent=1 // pred_fallthru
      _
    // Predicated region
    $region42: #{transformer_forward.31} parent=1 // pred_check
      _
    $region43: #{transformer_forward.31} parent=1 // pred_check_branch
      %220 = sbr.rel (0) target = $region45
    $region44: #{transformer_forward.31} parent=1 // pred_region
      _
    $region45: #{transformer_forward.31} parent=1 // pred_fallthru
      _
    %221 = vsyncpa [#allocation4], 1

// kernel: transformer_forward.27
$region0: #{transformer_forward.27}
  #allocation0 [shape = 'u32[]', space=smem, size = 0x4, offset = 0x4, fixed_abs, tag = 'smem constant byte address 0x4 - core index']
  #allocation1 [shape = 'u32[72,128]{1,0:T(1,128)}', space=vmem, size = 0x9000, scoped, tag = 'internal scratch']
  #allocation2 [shape = 'f32[16,128]{1,0:T(8,128)}', space=vmem, size = 0x2000, scoped, tag = 'scratch operand']
  %s0 = inlined_call_operand.vmem [shape: bf16[16,128], index: 0, kind: input, shape index: {}]
  %s1 = inlined_call_operand.vmem [shape: bf16[128,128], index: 1, kind: input, shape index: {}]
  %s2 = inlined_call_operand.vmem [shape: f32[1,128], index: 2, kind: input, shape index: {}]
  %s3 = inlined_call_operand.vmem [shape: bf16[16,128], index: 3, kind: input, shape index: {}]
  %s4 = inlined_call_operand.vmem [shape: f32[1,128], index: 4, kind: input, shape index: {}]
  %s5 = inlined_call_operand.vmem [shape: f32[1,128], index: 5, kind: input, shape index: {}]
  %s6 = inlined_call_operand.vmem [shape: bf16[16,128], index: 6, kind: output, shape index: {}]
  %s7 = sld [smem:[#allocation0]]
  $region42: #{transformer_forward.27} parent=0
    _
  %s9 = ssub.s32 1, %s7
  %s10 = scalar_select 0, %s9, %s7
  // Predicated region
  $region2: #{transformer_forward.27} parent=0 // pred_check
    _
  $region3: #{transformer_forward.27} parent=0 // pred_check_branch
    %12 = sbr.rel (0) target = $region5
  $region4: #{transformer_forward.27} parent=0 // pred_region
    _
  $region5: #{transformer_forward.27} parent=0 // pred_fallthru
    _
  // Predicated region
  $region6: #{transformer_forward.27} parent=0 // pred_check
    _
  $region7: #{transformer_forward.27} parent=0 // pred_check_branch
    %14 = sbr.rel (0) target = $region9
  $region8: #{transformer_forward.27} parent=0 // pred_region
    _
  $region9: #{transformer_forward.27} parent=0 // pred_fallthru
    _
  // Predicated region
  $region10: #{transformer_forward.27} parent=0 // pred_check
    _
  $region11: #{transformer_forward.27} parent=0 // pred_check_branch
    %16 = sbr.rel (0) target = $region13
  $region12: #{transformer_forward.27} parent=0 // pred_region
    _
  $region13: #{transformer_forward.27} parent=0 // pred_fallthru
    _
  // Predicated region
  $region14: #{transformer_forward.27} parent=0 // pred_check
    _
  $region15: #{transformer_forward.27} parent=0 // pred_check_branch
    %18 = sbr.rel (0) target = $region17
  $region16: #{transformer_forward.27} parent=0 // pred_region
    _
  $region17: #{transformer_forward.27} parent=0 // pred_fallthru
    _
  // Predicated region
  $region18: #{transformer_forward.27} parent=0 // pred_check
    _
  $region19: #{transformer_forward.27} parent=0 // pred_check_branch
    %20 = sbr.rel (0) target = $region21
  $region20: #{transformer_forward.27} parent=0 // pred_region
    _
  $region21: #{transformer_forward.27} parent=0 // pred_fallthru
    _
  // Predicated region
  $region22: #{transformer_forward.27} parent=0 // pred_check
    _
  $region23: #{transformer_forward.27} parent=0 // pred_check_branch
    %22 = sbr.rel (0) target = $region25
  $region24: #{transformer_forward.27} parent=0 // pred_region
    _
  $region25: #{transformer_forward.27} parent=0 // pred_fallthru
    _
  %p23 = scmp.eq.s32.totalorder 0, 0
  // Predicated region
  $region26: #{transformer_forward.27} parent=0 // pred_check
    %p24 = pneg %p23
  $region27: #{transformer_forward.27} parent=0 // pred_check_branch
    %26 = sbr.rel (%p24) target = $region29
  $region28: #{transformer_forward.27} parent=0 // pred_region
    %27 = vst [vmem:[#allocation2] sm:$0xff] 0.0
    %28 = vst [vmem:[#allocation2 + $0x8] sm:$0xff] 0.0
  $region29: #{transformer_forward.27} parent=0 // pred_fallthru
    _
  %v29 = vld [vmem:[#allocation2] sm:$0xff]
  %v30 = vld [vmem:[#allocation2 + $0x8] sm:$0xff]
  %v31 = vld [vmem:[%s0] sm:$0xf]
  %v32 = vld [vmem:[%s0 + $0x4] sm:$0xf]
  %v33 = vld [vmem:[%s1] sm:$0xf]
  %v34 = vld [vmem:[%s1 + $0x4] sm:$0xf]
  %v35 = vld [vmem:[%s1 + $0x8] sm:$0xf]
  %v36 = vld [vmem:[%s1 + $0xc] sm:$0xf]
  %v37 = vld [vmem:[%s1 + $0x10] sm:$0xf]
  %v38 = vld [vmem:[%s1 + $0x14] sm:$0xf]
  %v39 = vld [vmem:[%s1 + $0x18] sm:$0xf]
  %v40 = vld [vmem:[%s1 + $0x1c] sm:$0xf]
  %v41 = vld [vmem:[%s1 + $0x20] sm:$0xf]
  %v42 = vld [vmem:[%s1 + $0x24] sm:$0xf]
  %v43 = vld [vmem:[%s1 + $0x28] sm:$0xf]
  %v44 = vld [vmem:[%s1 + $0x2c] sm:$0xf]
  %v45 = vld [vmem:[%s1 + $0x30] sm:$0xf]
  %v46 = vld [vmem:[%s1 + $0x34] sm:$0xf]
  %v47 = vld [vmem:[%s1 + $0x38] sm:$0xf]
  %v48 = vld [vmem:[%s1 + $0x3c] sm:$0xf]
  %v51 = vunpack.c.l.b16 %v31
  %v52 = vunpack.c.l.b16 %v32
  %v53 = vpack.c.b16 %v52, %v51
  %v71 = vunpack.c.l.b16 %v33
  %v72 = vunpack.c.l.b16 %v34
  %v73 = vunpack.c.l.b16 %v35
  %v74 = vunpack.c.l.b16 %v36
  %v75 = vunpack.c.l.b16 %v37
  %v76 = vunpack.c.l.b16 %v38
  %v77 = vunpack.c.l.b16 %v39
  %v78 = vunpack.c.l.b16 %v40
  %v79 = vunpack.c.l.b16 %v41
  %v80 = vunpack.c.l.b16 %v42
  %v81 = vunpack.c.l.b16 %v43
  %v82 = vunpack.c.l.b16 %v44
  %v83 = vunpack.c.l.b16 %v45
  %v84 = vunpack.c.l.b16 %v46
  %v85 = vunpack.c.l.b16 %v47
  %v86 = vunpack.c.l.b16 %v48
  %v87 = vpack.c.b16 %v72, %v71
  %v88 = vpack.c.b16 %v74, %v73
  %v89 = vpack.c.b16 %v76, %v75
  %v90 = vpack.c.b16 %v78, %v77
  %v91 = vpack.c.b16 %v80, %v79
  %v92 = vpack.c.b16 %v82, %v81
  %v93 = vpack.c.b16 %v84, %v83
  %v94 = vpack.c.b16 %v86, %v85
  %103 = vmatpush.bf16.msra.mxu0 %v94
  %104 = vmatpush.bf16.msra.mxu0 %v93
  %105 = vmatpush.bf16.msra.mxu0 %v92
  %106 = vmatpush.bf16.msra.mxu0 %v91
  %107 = vmatpush.bf16.msra.mxu0 %v90
  %108 = vmatpush.bf16.msra.mxu0 %v89
  %109 = vmatpush.bf16.msra.mxu0 %v88
  %110 = vmatpush.bf16.msra.mxu0 %v87
  %111 = vmatmul.bf16.gmra.mxu0 %v53
  %v112 = vpop.f32.mrf.mxu0
  %v113 = vadd.f32 0.0, %v112
  %v114 = vpop.f32.mrf.mxu0
  %v115 = vadd.f32 0.0, %v114
  %116 = vdwg.mxu0
  %v117 = vadd.f32 %v29, %v113
  %v118 = vadd.f32 %v30, %v115
  %119 = vst [vmem:[#allocation2] sm:$0xff] %v117
  %120 = vst [vmem:[#allocation2 + $0x8] sm:$0xff] %v118
  // Predicated region
  $region30: #{transformer_forward.27} parent=0 // pred_check
    %p121 = pneg %p23
  $region31: #{transformer_forward.27} parent=0 // pred_check_branch
    %123 = sbr.rel (%p121) target = $region33
  $region32: #{transformer_forward.27} parent=0 // pred_region
    %v124 = vld [vmem:[#allocation2] sm:$0xff]
    %v125 = vld [vmem:[#allocation2 + $0x8] sm:$0xff]
    %v126 = vld [vmem:[%s2] sm:$0x1]
    %v128 = vperm.slane %v126, 0
    %v130 = vadd.f32 %v124, %v128
    %v131 = vadd.f32 %v125, %v128
    %v132 = vld [vmem:[%s3] sm:$0xf]
    %v133 = vld [vmem:[%s3 + $0x4] sm:$0xf]
    %v134 = vunpack.c.l.bf16 %v132
    %v135 = vunpack.c.l.bf16 %v133
    %v136 = vadd.f32 %v130, %v134
    %v137 = vadd.f32 %v131, %v135
    %138 = vadd.xlane.f32.xlu0 %v136
    %v139 = vpop.xlane.xlu0 %138
    %140 = vadd.xlane.f32.xlu0 %v137
    %v141 = vpop.xlane.xlu0 %140
    %v142 = vrcp.pop 128.0
    %v143 = vmul.f32 128.0, %v142
    %v144 = vsub.f32 1.0, %v143
    %v145 = vmul.f32 %v142, %v144
    %v146 = vadd.f32 %v142, %v145
    %vm147 = vweird.f32 %v142
    %v148 = vsel %vm147, %v142, %v146
    %v149 = vmul.f32 %v139, %v148
    %v150 = vmul.f32 %v141, %v148
    %v151 = vsub.f32 %v136, %v149
    %v152 = vsub.f32 %v137, %v150
    %v153 = vmul.f32 %v151, %v151
    %v154 = vmul.f32 %v152, %v152
    %155 = vadd.xlane.f32.xlu0 %v153
    %v156 = vpop.xlane.xlu0 %155
    %157 = vadd.xlane.f32.xlu0 %v154
    %v158 = vpop.xlane.xlu0 %157
    %v159 = vmul.f32 %v156, %v148
    %v160 = vmul.f32 %v158, %v148
    %v161 = vadd.f32 %v159, 1e-05
    %v162 = vadd.f32 %v160, 1e-05
    %v163 = vrsqrt.pop %v161
    %v164 = vmul.f32 %v163, %v161
    %v165 = vmul.f32 %v164, %v163
    %v166 = vmul.f32 0.5, %v165
    %v167 = vsub.f32 1.5, %v166
    %v168 = vmul.f32 %v163, %v167
    %vm169 = vweird.f32 %v161
    %vm170 = vweird.f32 %v163
    %vm171 = vmor %vm169, %vm170
    %v172 = vsel %vm171, %v163, %v168
    %v173 = vrsqrt.pop %v162
    %v174 = vmul.f32 %v173, %v162
    %v175 = vmul.f32 %v174, %v173
    %v176 = vmul.f32 0.5, %v175
    %v177 = vsub.f32 1.5, %v176
    %v178 = vmul.f32 %v173, %v177
    %vm179 = vweird.f32 %v162
    %vm180 = vweird.f32 %v173
    %vm181 = vmor %vm179, %vm180
    %v182 = vsel %vm181, %v173, %v178
    %v183 = vmul.f32 %v151, %v172
    %v184 = vmul.f32 %v152, %v182
    %v185 = vld [vmem:[%s4] sm:$0x1]
    %v187 = vperm.slane %v185, 0
    %v189 = vmul.f32 %v183, %v187
    %v190 = vmul.f32 %v184, %v187
    %v191 = vld [vmem:[%s5] sm:$0x1]
    %v193 = vperm.slane %v191, 0
    %v195 = vadd.f32 %v189, %v193
    %v196 = vadd.f32 %v190, %v193
    %v197 = vpack.c.bf16 %v195, %v195
    %v198 = vpack.c.bf16 %v196, %v196
    %199 = vst [vmem:[%s6] sm:$0xf] %v197
    %200 = vst [vmem:[%s6 + $0x4] sm:$0xf] %v198
  $region33: #{transformer_forward.27} parent=0 // pred_fallthru
    _
  // Predicated region
  $region34: #{transformer_forward.27} parent=0 // pred_check
    _
  $region35: #{transformer_forward.27} parent=0 // pred_check_branch
    %202 = sbr.rel (0) target = $region37
  $region36: #{transformer_forward.27} parent=0 // pred_region
    _
  $region37: #{transformer_forward.27} parent=0 // pred_fallthru
    _
  // Predicated region
  $region38: #{transformer_forward.27} parent=0 // pred_check
    _
  $region39: #{transformer_forward.27} parent=0 // pred_check_branch
    %204 = sbr.rel (0) target = $region41
  $region40: #{transformer_forward.27} parent=0 // pred_region
    _
  $region41: #{transformer_forward.27} parent=0 // pred_fallthru
    _

// kernel: transformer_forward.28
$region0: #{transformer_forward.28}
  #allocation0 [shape = 'u32[]', space=smem, size = 0x4, offset = 0x4, fixed_abs, tag = 'smem constant byte address 0x4 - core index']
  #allocation1 [shape = 'u32[72,128]{1,0:T(1,128)}', space=vmem, size = 0x9000, scoped, tag = 'internal scratch']
  #allocation2 [shape = 'f32[16,128]{1,0:T(8,128)}', space=vmem, size = 0x2000, scoped, tag = 'scratch operand']
  %s0 = inlined_call_operand.vmem [shape: bf16[16,128], index: 0, kind: input, shape index: {}]
  %s1 = inlined_call_operand.vmem [shape: bf16[128,256], index: 1, kind: input, shape index: {}]
  %s2 = inlined_call_operand.vmem [shape: f32[1,256], index: 2, kind: input, shape index: {}]
  %s3 = inlined_call_operand.hbm [shape: bf16[256,128], index: 3, kind: input, shape index: {}]
  %s4 = inlined_call_operand.vmem [shape: f32[1,128], index: 4, kind: input, shape index: {}]
  %s5 = inlined_call_operand.vmem [shape: f32[1,128], index: 5, kind: input, shape index: {}]
  %s6 = inlined_call_operand.vmem [shape: f32[1,128], index: 6, kind: input, shape index: {}]
  %s7 = inlined_call_operand.vmem [shape: bf16[16,128], index: 7, kind: output, shape index: {}]
  %s8 = sld [smem:[#allocation0]]
  $region50: #{transformer_forward.28} parent=0
    _
  %s10 = ssub.s32 1, %s8
  %s11 = scalar_select 0, %s10, %s8
  $region1: #{transformer_forward.28} parent=0
    #allocation3 [shape = 'u8[65536]{0}', space=vmem, size = 0x10000, scoped, tag = 'input window, operand 3, single buffered']
    #allocation4 [shape = 's32[1]{0}', space=sflag, size = 0x4, scoped, tag = 'scoped memory for transformer_forward.28']
    %12 = vsyncpa [#allocation4], 0
    // Predicated region
    $region2: #{transformer_forward.28} parent=1 // pred_check
      _
    $region3: #{transformer_forward.28} parent=1 // pred_check_branch
      %14 = sbr.rel (0) target = $region5
    $region4: #{transformer_forward.28} parent=1 // pred_region
      _
    $region5: #{transformer_forward.28} parent=1 // pred_fallthru
      _
    // Predicated region
    $region6: #{transformer_forward.28} parent=1 // pred_check
      _
    $region7: #{transformer_forward.28} parent=1 // pred_check_branch
      %16 = sbr.rel (0) target = $region9
    $region8: #{transformer_forward.28} parent=1 // pred_region
      _
    $region9: #{transformer_forward.28} parent=1 // pred_fallthru
      _
    // Predicated region
    $region10: #{transformer_forward.28} parent=1 // pred_check
      _
    $region11: #{transformer_forward.28} parent=1 // pred_check_branch
      %18 = sbr.rel (0) target = $region13
    $region12: #{transformer_forward.28} parent=1 // pred_region
      _
    $region13: #{transformer_forward.28} parent=1 // pred_fallthru
      _
    // Predicated region
    $region14: #{transformer_forward.28} parent=1 // pred_check
      _
    $region15: #{transformer_forward.28} parent=1 // pred_check_branch
      %20 = sbr.rel (0) target = $region17
    $region16: #{transformer_forward.28} parent=1 // pred_region
      %22 = vsyncadd [#allocation4], 0
      %s23 = sshll.u32 %s3, 4
      %s24 = int_to_ptr.hbm [resolvable:$true] %s23
      %s25 = sshll.u32 [#allocation3], 4
      %s26 = int_to_ptr.vmem [resolvable:$true] %s25
      %31 = dma.hbm_to_vmem [thread:$0]  %s24, 2048, %s26, [#allocation4], 64, 64, 4
    $region17: #{transformer_forward.28} parent=1 // pred_fallthru
      _
    // Predicated region
    $region18: #{transformer_forward.28} parent=1 // pred_check
      _
    $region19: #{transformer_forward.28} parent=1 // pred_check_branch
      %33 = sbr.rel (0) target = $region21
    $region20: #{transformer_forward.28} parent=1 // pred_region
      _
    $region21: #{transformer_forward.28} parent=1 // pred_fallthru
      _
    // Predicated region
    $region22: #{transformer_forward.28} parent=1 // pred_check
      _
    $region23: #{transformer_forward.28} parent=1 // pred_check_branch
      %35 = sbr.rel (0) target = $region25
    $region24: #{transformer_forward.28} parent=1 // pred_region
      _
    $region25: #{transformer_forward.28} parent=1 // pred_fallthru
      _
    // Predicated region
    $region26: #{transformer_forward.28} parent=1 // pred_check
      _
    $region27: #{transformer_forward.28} parent=1 // pred_check_branch
      %37 = sbr.rel (0) target = $region29
    $region28: #{transformer_forward.28} parent=1 // pred_region
      _
    $region29: #{transformer_forward.28} parent=1 // pred_fallthru
      _
    // Predicated region
    $region30: #{transformer_forward.28} parent=1 // pred_check
      _
    $region31: #{transformer_forward.28} parent=1 // pred_check_branch
      %39 = sbr.rel (0) target = $region33
    $region32: #{transformer_forward.28} parent=1 // pred_region
      %41 = dma.done [#allocation4], 2048
    $region33: #{transformer_forward.28} parent=1 // pred_fallthru
      _
    %p42 = scmp.eq.s32.totalorder 0, 0
    // Predicated region
    $region34: #{transformer_forward.28} parent=1 // pred_check
      %p43 = pneg %p42
    $region35: #{transformer_forward.28} parent=1 // pred_check_branch
      %45 = sbr.rel (%p43) target = $region37
    $region36: #{transformer_forward.28} parent=1 // pred_region
      %46 = vst [vmem:[#allocation2] sm:$0xff] 0.0
      %47 = vst [vmem:[#allocation2 + $0x8] sm:$0xff] 0.0
    $region37: #{transformer_forward.28} parent=1 // pred_fallthru
      _
    %v48 = vld [vmem:[%s0] sm:$0xf]
    %v49 = vld [vmem:[%s0 + $0x4] sm:$0xf]
    %v50 = vld [vmem:[%s1] sm:$0xff]
    %v51 = vld [vmem:[%s1 + $0x8] sm:$0xff]
    %v52 = vld [vmem:[%s1 + $0x10] sm:$0xff]
    %v53 = vld [vmem:[%s1 + $0x18] sm:$0xff]
    %v54 = vld [vmem:[%s1 + $0x20] sm:$0xff]
    %v55 = vld [vmem:[%s1 + $0x28] sm:$0xff]
    %v56 = vld [vmem:[%s1 + $0x30] sm:$0xff]
    %v57 = vld [vmem:[%s1 + $0x38] sm:$0xff]
    %v58 = vld [vmem:[%s1 + $0x40] sm:$0xff]
    %v59 = vld [vmem:[%s1 + $0x48] sm:$0xff]
    %v60 = vld [vmem:[%s1 + $0x50] sm:$0xff]
    %v61 = vld [vmem:[%s1 + $0x58] sm:$0xff]
    %v62 = vld [vmem:[%s1 + $0x60] sm:$0xff]
    %v63 = vld [vmem:[%s1 + $0x68] sm:$0xff]
    %v64 = vld [vmem:[%s1 + $0x70] sm:$0xff]
    %v65 = vld [vmem:[%s1 + $0x78] sm:$0xff]
    %v66 = vld [vmem:[%s2] sm:$0x3]
    %v68 = vperm.slane %v66, 0
    %v69 = vperm.slane %v66, 1
    %v74 = vunpack.c.l.b16 %v48
    %v75 = vunpack.c.l.b16 %v49
    %v76 = vpack.c.b16 %v75, %v74
    %v94 = vunpack.c.l.b16 %v50
    %v95 = vunpack.c.h.b16 %v50
    %v96 = vunpack.c.l.b16 %v51
    %v97 = vunpack.c.h.b16 %v51
    %v98 = vunpack.c.l.b16 %v52
    %v99 = vunpack.c.h.b16 %v52
    %v100 = vunpack.c.l.b16 %v53
    %v101 = vunpack.c.h.b16 %v53
    %v102 = vunpack.c.l.b16 %v54
    %v103 = vunpack.c.h.b16 %v54
    %v104 = vunpack.c.l.b16 %v55
    %v105 = vunpack.c.h.b16 %v55
    %v106 = vunpack.c.l.b16 %v56
    %v107 = vunpack.c.h.b16 %v56
    %v108 = vunpack.c.l.b16 %v57
    %v109 = vunpack.c.h.b16 %v57
    %v110 = vunpack.c.l.b16 %v58
    %v111 = vunpack.c.h.b16 %v58
    %v112 = vunpack.c.l.b16 %v59
    %v113 = vunpack.c.h.b16 %v59
    %v114 = vunpack.c.l.b16 %v60
    %v115 = vunpack.c.h.b16 %v60
    %v116 = vunpack.c.l.b16 %v61
    %v117 = vunpack.c.h.b16 %v61
    %v118 = vunpack.c.l.b16 %v62
    %v119 = vunpack.c.h.b16 %v62
    %v120 = vunpack.c.l.b16 %v63
    %v121 = vunpack.c.h.b16 %v63
    %v122 = vunpack.c.l.b16 %v64
    %v123 = vunpack.c.h.b16 %v64
    %v124 = vunpack.c.l.b16 %v65
    %v125 = vunpack.c.h.b16 %v65
    %v126 = vpack.c.b16 %v96, %v94
    %v127 = vpack.c.b16 %v97, %v95
    %v128 = vpack.c.b16 %v100, %v98
    %v129 = vpack.c.b16 %v101, %v99
    %v130 = vpack.c.b16 %v104, %v102
    %v131 = vpack.c.b16 %v105, %v103
    %v132 = vpack.c.b16 %v108, %v106
    %v133 = vpack.c.b16 %v109, %v107
    %v134 = vpack.c.b16 %v112, %v110
    %v135 = vpack.c.b16 %v113, %v111
    %v136 = vpack.c.b16 %v116, %v114
    %v137 = vpack.c.b16 %v117, %v115
    %v138 = vpack.c.b16 %v120, %v118
    %v139 = vpack.c.b16 %v121, %v119
    %v140 = vpack.c.b16 %v124, %v122
    %v141 = vpack.c.b16 %v125, %v123
    %158 = vmatpush.bf16.msra.mxu0 %v140
    %159 = vmatpush.bf16.msra.mxu0 %v138
    %160 = vmatpush.bf16.msra.mxu0 %v136
    %161 = vmatpush.bf16.msra.mxu0 %v134
    %162 = vmatpush.bf16.msra.mxu0 %v132
    %163 = vmatpush.bf16.msra.mxu0 %v130
    %164 = vmatpush.bf16.msra.mxu0 %v128
    %165 = vmatpush.bf16.msra.mxu0 %v126
    %166 = vmatmul.bf16.gmra.mxu0 %v76
    %v167 = vpop.f32.mrf.mxu0
    %v168 = vadd.f32 %v68, %v167
    %v169 = vpop.f32.mrf.mxu0
    %v170 = vadd.f32 %v68, %v169
    %171 = vdwg.mxu0
    %172 = vmatpush.bf16.msra.mxu0 %v141
    %173 = vmatpush.bf16.msra.mxu0 %v139
    %174 = vmatpush.bf16.msra.mxu0 %v137
    %175 = vmatpush.bf16.msra.mxu0 %v135
    %176 = vmatpush.bf16.msra.mxu0 %v133
    %177 = vmatpush.bf16.msra.mxu0 %v131
    %178 = vmatpush.bf16.msra.mxu0 %v129
    %179 = vmatpush.bf16.msra.mxu0 %v127
    %180 = vmatmul.bf16.gmra.mxu0 %v76
    %v181 = vpop.f32.mrf.mxu0
    %v182 = vadd.f32 %v69, %v181
    %v183 = vpop.f32.mrf.mxu0
    %v184 = vadd.f32 %v69, %v183
    %185 = vdwg.mxu0
    %v186 = vmax.f32 %v168, 0.0
    %v187 = vmax.f32 %v182, 0.0
    %v188 = vmax.f32 %v170, 0.0
    %v189 = vmax.f32 %v184, 0.0
    %v190 = vpack.c.bf16 %v188, %v186
    %v191 = vpack.c.bf16 %v189, %v187
    %v192 = vld [vmem:[#allocation2] sm:$0xff]
    %v193 = vld [vmem:[#allocation2 + $0x8] sm:$0xff]
    %v194 = vld [vmem:[#allocation3] sm:$0xf]
    %v195 = vld [vmem:[#allocation3 + $0x4] sm:$0xf]
    %v196 = vld [vmem:[#allocation3 + $0x8] sm:$0xf]
    %v197 = vld [vmem:[#allocation3 + $0xc] sm:$0xf]
    %v198 = vld [vmem:[#allocation3 + $0x10] sm:$0xf]
    %v199 = vld [vmem:[#allocation3 + $0x14] sm:$0xf]
    %v200 = vld [vmem:[#allocation3 + $0x18] sm:$0xf]
    %v201 = vld [vmem:[#allocation3 + $0x1c] sm:$0xf]
    %v202 = vld [vmem:[#allocation3 + $0x20] sm:$0xf]
    %v203 = vld [vmem:[#allocation3 + $0x24] sm:$0xf]
    %v204 = vld [vmem:[#allocation3 + $0x28] sm:$0xf]
    %v205 = vld [vmem:[#allocation3 + $0x2c] sm:$0xf]
    %v206 = vld [vmem:[#allocation3 + $0x30] sm:$0xf]
    %v207 = vld [vmem:[#allocation3 + $0x34] sm:$0xf]
    %v208 = vld [vmem:[#allocation3 + $0x38] sm:$0xf]
    %v209 = vld [vmem:[#allocation3 + $0x3c] sm:$0xf]
    %v210 = vld [vmem:[#allocation3 + $0x40] sm:$0xf]
    %v211 = vld [vmem:[#allocation3 + $0x44] sm:$0xf]
    %v212 = vld [vmem:[#allocation3 + $0x48] sm:$0xf]
    %v213 = vld [vmem:[#allocation3 + $0x4c] sm:$0xf]
    %v214 = vld [vmem:[#allocation3 + $0x50] sm:$0xf]
    %v215 = vld [vmem:[#allocation3 + $0x54] sm:$0xf]
    %v216 = vld [vmem:[#allocation3 + $0x58] sm:$0xf]
    %v217 = vld [vmem:[#allocation3 + $0x5c] sm:$0xf]
    %v218 = vld [vmem:[#allocation3 + $0x60] sm:$0xf]
    %v219 = vld [vmem:[#allocation3 + $0x64] sm:$0xf]
    %v220 = vld [vmem:[#allocation3 + $0x68] sm:$0xf]
    %v221 = vld [vmem:[#allocation3 + $0x6c] sm:$0xf]
    %v222 = vld [vmem:[#allocation3 + $0x70] sm:$0xf]
    %v223 = vld [vmem:[#allocation3 + $0x74] sm:$0xf]
    %v224 = vld [vmem:[#allocation3 + $0x78] sm:$0xf]
    %v225 = vld [vmem:[#allocation3 + $0x7c] sm:$0xf]
    %v258 = vunpack.c.l.b16 %v194
    %v259 = vunpack.c.l.b16 %v195
    %v260 = vunpack.c.l.b16 %v196
    %v261 = vunpack.c.l.b16 %v197
    %v262 = vunpack.c.l.b16 %v198
    %v263 = vunpack.c.l.b16 %v199
    %v264 = vunpack.c.l.b16 %v200
    %v265 = vunpack.c.l.b16 %v201
    %v266 = vunpack.c.l.b16 %v202
    %v267 = vunpack.c.l.b16 %v203
    %v268 = vunpack.c.l.b16 %v204
    %v269 = vunpack.c.l.b16 %v205
    %v270 = vunpack.c.l.b16 %v206
    %v271 = vunpack.c.l.b16 %v207
    %v272 = vunpack.c.l.b16 %v208
    %v273 = vunpack.c.l.b16 %v209
    %v274 = vunpack.c.l.b16 %v210
    %v275 = vunpack.c.l.b16 %v211
    %v276 = vunpack.c.l.b16 %v212
    %v277 = vunpack.c.l.b16 %v213
    %v278 = vunpack.c.l.b16 %v214
    %v279 = vunpack.c.l.b16 %v215
    %v280 = vunpack.c.l.b16 %v216
    %v281 = vunpack.c.l.b16 %v217
    %v282 = vunpack.c.l.b16 %v218
    %v283 = vunpack.c.l.b16 %v219
    %v284 = vunpack.c.l.b16 %v220
    %v285 = vunpack.c.l.b16 %v221
    %v286 = vunpack.c.l.b16 %v222
    %v287 = vunpack.c.l.b16 %v223
    %v288 = vunpack.c.l.b16 %v224
    %v289 = vunpack.c.l.b16 %v225
    %v290 = vpack.c.b16 %v259, %v258
    %v291 = vpack.c.b16 %v261, %v260
    %v292 = vpack.c.b16 %v263, %v262
    %v293 = vpack.c.b16 %v265, %v264
    %v294 = vpack.c.b16 %v267, %v266
    %v295 = vpack.c.b16 %v269, %v268
    %v296 = vpack.c.b16 %v271, %v270
    %v297 = vpack.c.b16 %v273, %v272
    %v298 = vpack.c.b16 %v275, %v274
    %v299 = vpack.c.b16 %v277, %v276
    %v300 = vpack.c.b16 %v279, %v278
    %v301 = vpack.c.b16 %v281, %v280
    %v302 = vpack.c.b16 %v283, %v282
    %v303 = vpack.c.b16 %v285, %v284
    %v304 = vpack.c.b16 %v287, %v286
    %v305 = vpack.c.b16 %v289, %v288
    %322 = vmatpush.bf16.msra.mxu0 %v297
    %323 = vmatpush.bf16.msra.mxu0 %v296
    %324 = vmatpush.bf16.msra.mxu0 %v295
    %325 = vmatpush.bf16.msra.mxu0 %v294
    %326 = vmatpush.bf16.msra.mxu0 %v293
    %327 = vmatpush.bf16.msra.mxu0 %v292
    %328 = vmatpush.bf16.msra.mxu0 %v291
    %329 = vmatpush.bf16.msra.mxu0 %v290
    %330 = vmatmul.bf16.gmra.mxu0 %v190
    %v331 = vpop.f32.mrf.mxu0
    %v332 = vadd.f32 0.0, %v331
    %v333 = vpop.f32.mrf.mxu0
    %v334 = vadd.f32 0.0, %v333
    %335 = vdwg.mxu0
    %336 = vmatpush.bf16.msra.mxu0 %v305
    %337 = vmatpush.bf16.msra.mxu0 %v304
    %338 = vmatpush.bf16.msra.mxu0 %v303
    %339 = vmatpush.bf16.msra.mxu0 %v302
    %340 = vmatpush.bf16.msra.mxu0 %v301
    %341 = vmatpush.bf16.msra.mxu0 %v300
    %342 = vmatpush.bf16.msra.mxu0 %v299
    %343 = vmatpush.bf16.msra.mxu0 %v298
    %344 = vmatmul.bf16.gmra.mxu0 %v191
    %v345 = vpop.f32.mrf.mxu0
    %v346 = vadd.f32 %v332, %v345
    %v347 = vpop.f32.mrf.mxu0
    %v348 = vadd.f32 %v334, %v347
    %349 = vdwg.mxu0
    %v350 = vadd.f32 %v192, %v346
    %v351 = vadd.f32 %v193, %v348
    %352 = vst [vmem:[#allocation2] sm:$0xff] %v350
    %353 = vst [vmem:[#allocation2 + $0x8] sm:$0xff] %v351
    // Predicated region
    $region38: #{transformer_forward.28} parent=1 // pred_check
      %p354 = pneg %p42
    $region39: #{transformer_forward.28} parent=1 // pred_check_branch
      %356 = sbr.rel (%p354) target = $region41
    $region40: #{transformer_forward.28} parent=1 // pred_region
      %v357 = vld [vmem:[#allocation2] sm:$0xff]
      %v358 = vld [vmem:[#allocation2 + $0x8] sm:$0xff]
      %v359 = vld [vmem:[%s4] sm:$0x1]
      %v361 = vperm.slane %v359, 0
      %v363 = vadd.f32 %v357, %v361
      %v364 = vadd.f32 %v358, %v361
      %v365 = vld [vmem:[%s0] sm:$0xf]
      %v366 = vld [vmem:[%s0 + $0x4] sm:$0xf]
      %v367 = vunpack.c.l.bf16 %v365
      %v368 = vunpack.c.l.bf16 %v366
      %v369 = vadd.f32 %v363, %v367
      %v370 = vadd.f32 %v364, %v368
      %371 = vadd.xlane.f32.xlu0 %v369
      %v372 = vpop.xlane.xlu0 %371
      %373 = vadd.xlane.f32.xlu0 %v370
      %v374 = vpop.xlane.xlu0 %373
      %v375 = vrcp.pop 128.0
      %v376 = vmul.f32 128.0, %v375
      %v377 = vsub.f32 1.0, %v376
      %v378 = vmul.f32 %v375, %v377
      %v379 = vadd.f32 %v375, %v378
      %vm380 = vweird.f32 %v375
      %v381 = vsel %vm380, %v375, %v379
      %v382 = vmul.f32 %v372, %v381
      %v383 = vmul.f32 %v374, %v381
      %v384 = vsub.f32 %v369, %v382
      %v385 = vsub.f32 %v370, %v383
      %v386 = vmul.f32 %v384, %v384
      %v387 = vmul.f32 %v385, %v385
      %388 = vadd.xlane.f32.xlu0 %v386
      %v389 = vpop.xlane.xlu0 %388
      %390 = vadd.xlane.f32.xlu0 %v387
      %v391 = vpop.xlane.xlu0 %390
      %v392 = vmul.f32 %v389, %v381
      %v393 = vmul.f32 %v391, %v381
      %v394 = vadd.f32 %v392, 1e-05
      %v395 = vadd.f32 %v393, 1e-05
      %v396 = vrsqrt.pop %v394
      %v397 = vmul.f32 %v396, %v394
      %v398 = vmul.f32 %v397, %v396
      %v399 = vmul.f32 0.5, %v398
      %v400 = vsub.f32 1.5, %v399
      %v401 = vmul.f32 %v396, %v400
      %vm402 = vweird.f32 %v394
      %vm403 = vweird.f32 %v396
      %vm404 = vmor %vm402, %vm403
      %v405 = vsel %vm404, %v396, %v401
      %v406 = vrsqrt.pop %v395
      %v407 = vmul.f32 %v406, %v395
      %v408 = vmul.f32 %v407, %v406
      %v409 = vmul.f32 0.5, %v408
      %v410 = vsub.f32 1.5, %v409
      %v411 = vmul.f32 %v406, %v410
      %vm412 = vweird.f32 %v395
      %vm413 = vweird.f32 %v406
      %vm414 = vmor %vm412, %vm413
      %v415 = vsel %vm414, %v406, %v411
      %v416 = vmul.f32 %v384, %v405
      %v417 = vmul.f32 %v385, %v415
      %v418 = vld [vmem:[%s5] sm:$0x1]
      %v420 = vperm.slane %v418, 0
      %v422 = vmul.f32 %v416, %v420
      %v423 = vmul.f32 %v417, %v420
      %v424 = vld [vmem:[%s6] sm:$0x1]
      %v426 = vperm.slane %v424, 0
      %v428 = vadd.f32 %v422, %v426
      %v429 = vadd.f32 %v423, %v426
      %v430 = vpack.c.bf16 %v428, %v428
      %v431 = vpack.c.bf16 %v429, %v429
      %432 = vst [vmem:[%s7] sm:$0xf] %v430
      %433 = vst [vmem:[%s7 + $0x4] sm:$0xf] %v431
    $region41: #{transformer_forward.28} parent=1 // pred_fallthru
      _
    // Predicated region
    $region42: #{transformer_forward.28} parent=1 // pred_check
      _
    $region43: #{transformer_forward.28} parent=1 // pred_check_branch
      %435 = sbr.rel (0) target = $region45
    $region44: #{transformer_forward.28} parent=1 // pred_region
      _
    $region45: #{transformer_forward.28} parent=1 // pred_fallthru
      _
    // Predicated region
    $region46: #{transformer_forward.28} parent=1 // pred_check
      _
    $region47: #{transformer_forward.28} parent=1 // pred_check_branch
      %437 = sbr.rel (0) target = $region49
    $region48: #{transformer_forward.28} parent=1 // pred_region
      _
    $region49: #{transformer_forward.28} parent=1 // pred_fallthru
      _
    %438 = vsyncpa [#allocation4], 1

// kernel: transformer_forward.37
$region0: #{transformer_forward.37}
  #allocation0 [shape = 'u32[]', space=smem, size = 0x4, offset = 0x4, fixed_abs, tag = 'smem constant byte address 0x4 - core index']
  #allocation1 [shape = 'u32[72,128]{1,0:T(1,128)}', space=vmem, size = 0x9000, scoped, tag = 'internal scratch']
  #allocation2 [shape = 'f32[16,256]{1,0:T(8,128)}', space=vmem, size = 0x4000, scoped, tag = 'scratch operand']
  %s0 = inlined_call_operand.vmem [shape: bf16[16,128], index: 0, kind: input, shape index: {}]
  %s1 = inlined_call_operand.hbm [shape: bf16[128,256], index: 1, kind: input, shape index: {}]
  %s2 = inlined_call_operand.vmem [shape: f32[1,256], index: 2, kind: input, shape index: {}]
  %s3 = inlined_call_operand.vmem [shape: bf16[16,256], index: 3, kind: output, shape index: {}]
  %s4 = sld [smem:[#allocation0]]
  $region34: #{transformer_forward.37} parent=0
    _
  %s6 = ssub.s32 1, %s4
  %s7 = scalar_select 0, %s6, %s4
  $region1: #{transformer_forward.37} parent=0
    #allocation3 [shape = 'u8[65536]{0}', space=vmem, size = 0x10000, scoped, tag = 'input window, operand 1, single buffered']
    #allocation4 [shape = 's32[1]{0}', space=sflag, size = 0x4, scoped, tag = 'scoped memory for transformer_forward.37']
    %8 = vsyncpa [#allocation4], 0
    // Predicated region
    $region2: #{transformer_forward.37} parent=1 // pred_check
      _
    $region3: #{transformer_forward.37} parent=1 // pred_check_branch
      %10 = sbr.rel (0) target = $region5
    $region4: #{transformer_forward.37} parent=1 // pred_region
      _
    $region5: #{transformer_forward.37} parent=1 // pred_fallthru
      _
    // Predicated region
    $region6: #{transformer_forward.37} parent=1 // pred_check
      _
    $region7: #{transformer_forward.37} parent=1 // pred_check_branch
      %12 = sbr.rel (0) target = $region9
    $region8: #{transformer_forward.37} parent=1 // pred_region
      %14 = vsyncadd [#allocation4], 0
      %s15 = sshll.u32 %s1, 4
      %s16 = int_to_ptr.hbm [resolvable:$true] %s15
      %s17 = sshll.u32 [#allocation3], 4
      %s18 = int_to_ptr.vmem [resolvable:$true] %s17
      %23 = dma.hbm_to_vmem [thread:$0]  %s16, 2048, %s18, [#allocation4], 128, 128, 8
    $region9: #{transformer_forward.37} parent=1 // pred_fallthru
      _
    // Predicated region
    $region10: #{transformer_forward.37} parent=1 // pred_check
      _
    $region11: #{transformer_forward.37} parent=1 // pred_check_branch
      %25 = sbr.rel (0) target = $region13
    $region12: #{transformer_forward.37} parent=1 // pred_region
      _
    $region13: #{transformer_forward.37} parent=1 // pred_fallthru
      _
    // Predicated region
    $region14: #{transformer_forward.37} parent=1 // pred_check
      _
    $region15: #{transformer_forward.37} parent=1 // pred_check_branch
      %27 = sbr.rel (0) target = $region17
    $region16: #{transformer_forward.37} parent=1 // pred_region
      %29 = dma.done [#allocation4], 2048
    $region17: #{transformer_forward.37} parent=1 // pred_fallthru
      _
    %p30 = scmp.eq.s32.totalorder 0, 0
    // Predicated region
    $region18: #{transformer_forward.37} parent=1 // pred_check
      %p31 = pneg %p30
    $region19: #{transformer_forward.37} parent=1 // pred_check_branch
      %33 = sbr.rel (%p31) target = $region21
    $region20: #{transformer_forward.37} parent=1 // pred_region
      %34 = vst [vmem:[#allocation2] sm:$0xff] 0.0
      %35 = vst [vmem:[#allocation2 + $0x8] sm:$0xff] 0.0
      %36 = vst [vmem:[#allocation2 + $0x10] sm:$0xff] 0.0
      %37 = vst [vmem:[#allocation2 + $0x18] sm:$0xff] 0.0
    $region21: #{transformer_forward.37} parent=1 // pred_fallthru
      _
    %v38 = vld [vmem:[#allocation2] sm:$0xff]
    %v39 = vld [vmem:[#allocation2 + $0x8] sm:$0xff]
    %v40 = vld [vmem:[#allocation2 + $0x10] sm:$0xff]
    %v41 = vld [vmem:[#allocation2 + $0x18] sm:$0xff]
    %v42 = vld [vmem:[%s0] sm:$0xf]
    %v43 = vld [vmem:[%s0 + $0x4] sm:$0xf]
    %v44 = vld [vmem:[#allocation3] sm:$0xff]
    %v45 = vld [vmem:[#allocation3 + $0x8] sm:$0xff]
    %v46 = vld [vmem:[#allocation3 + $0x10] sm:$0xff]
    %v47 = vld [vmem:[#allocation3 + $0x18] sm:$0xff]
    %v48 = vld [vmem:[#allocation3 + $0x20] sm:$0xff]
    %v49 = vld [vmem:[#allocation3 + $0x28] sm:$0xff]
    %v50 = vld [vmem:[#allocation3 + $0x30] sm:$0xff]
    %v51 = vld [vmem:[#allocation3 + $0x38] sm:$0xff]
    %v52 = vld [vmem:[#allocation3 + $0x40] sm:$0xff]
    %v53 = vld [vmem:[#allocation3 + $0x48] sm:$0xff]
    %v54 = vld [vmem:[#allocation3 + $0x50] sm:$0xff]
    %v55 = vld [vmem:[#allocation3 + $0x58] sm:$0xff]
    %v56 = vld [vmem:[#allocation3 + $0x60] sm:$0xff]
    %v57 = vld [vmem:[#allocation3 + $0x68] sm:$0xff]
    %v58 = vld [vmem:[#allocation3 + $0x70] sm:$0xff]
    %v59 = vld [vmem:[#allocation3 + $0x78] sm:$0xff]
    %v62 = vunpack.c.l.b16 %v42
    %v63 = vunpack.c.l.b16 %v43
    %v64 = vpack.c.b16 %v63, %v62
    %v82 = vunpack.c.l.b16 %v44
    %v83 = vunpack.c.h.b16 %v44
    %v84 = vunpack.c.l.b16 %v45
    %v85 = vunpack.c.h.b16 %v45
    %v86 = vunpack.c.l.b16 %v46
    %v87 = vunpack.c.h.b16 %v46
    %v88 = vunpack.c.l.b16 %v47
    %v89 = vunpack.c.h.b16 %v47
    %v90 = vunpack.c.l.b16 %v48
    %v91 = vunpack.c.h.b16 %v48
    %v92 = vunpack.c.l.b16 %v49
    %v93 = vunpack.c.h.b16 %v49
    %v94 = vunpack.c.l.b16 %v50
    %v95 = vunpack.c.h.b16 %v50
    %v96 = vunpack.c.l.b16 %v51
    %v97 = vunpack.c.h.b16 %v51
    %v98 = vunpack.c.l.b16 %v52
    %v99 = vunpack.c.h.b16 %v52
    %v100 = vunpack.c.l.b16 %v53
    %v101 = vunpack.c.h.b16 %v53
    %v102 = vunpack.c.l.b16 %v54
    %v103 = vunpack.c.h.b16 %v54
    %v104 = vunpack.c.l.b16 %v55
    %v105 = vunpack.c.h.b16 %v55
    %v106 = vunpack.c.l.b16 %v56
    %v107 = vunpack.c.h.b16 %v56
    %v108 = vunpack.c.l.b16 %v57
    %v109 = vunpack.c.h.b16 %v57
    %v110 = vunpack.c.l.b16 %v58
    %v111 = vunpack.c.h.b16 %v58
    %v112 = vunpack.c.l.b16 %v59
    %v113 = vunpack.c.h.b16 %v59
    %v114 = vpack.c.b16 %v84, %v82
    %v115 = vpack.c.b16 %v85, %v83
    %v116 = vpack.c.b16 %v88, %v86
    %v117 = vpack.c.b16 %v89, %v87
    %v118 = vpack.c.b16 %v92, %v90
    %v119 = vpack.c.b16 %v93, %v91
    %v120 = vpack.c.b16 %v96, %v94
    %v121 = vpack.c.b16 %v97, %v95
    %v122 = vpack.c.b16 %v100, %v98
    %v123 = vpack.c.b16 %v101, %v99
    %v124 = vpack.c.b16 %v104, %v102
    %v125 = vpack.c.b16 %v105, %v103
    %v126 = vpack.c.b16 %v108, %v106
    %v127 = vpack.c.b16 %v109, %v107
    %v128 = vpack.c.b16 %v112, %v110
    %v129 = vpack.c.b16 %v113, %v111
    %146 = vmatpush.bf16.msra.mxu0 %v128
    %147 = vmatpush.bf16.msra.mxu0 %v126
    %148 = vmatpush.bf16.msra.mxu0 %v124
    %149 = vmatpush.bf16.msra.mxu0 %v122
    %150 = vmatpush.bf16.msra.mxu0 %v120
    %151 = vmatpush.bf16.msra.mxu0 %v118
    %152 = vmatpush.bf16.msra.mxu0 %v116
    %153 = vmatpush.bf16.msra.mxu0 %v114
    %154 = vmatmul.bf16.gmra.mxu0 %v64
    %v155 = vpop.f32.mrf.mxu0
    %v156 = vadd.f32 0.0, %v155
    %v157 = vpop.f32.mrf.mxu0
    %v158 = vadd.f32 0.0, %v157
    %159 = vdwg.mxu0
    %160 = vmatpush.bf16.msra.mxu0 %v129
    %161 = vmatpush.bf16.msra.mxu0 %v127
    %162 = vmatpush.bf16.msra.mxu0 %v125
    %163 = vmatpush.bf16.msra.mxu0 %v123
    %164 = vmatpush.bf16.msra.mxu0 %v121
    %165 = vmatpush.bf16.msra.mxu0 %v119
    %166 = vmatpush.bf16.msra.mxu0 %v117
    %167 = vmatpush.bf16.msra.mxu0 %v115
    %168 = vmatmul.bf16.gmra.mxu0 %v64
    %v169 = vpop.f32.mrf.mxu0
    %v170 = vadd.f32 0.0, %v169
    %v171 = vpop.f32.mrf.mxu0
    %v172 = vadd.f32 0.0, %v171
    %173 = vdwg.mxu0
    %v174 = vadd.f32 %v38, %v156
    %v175 = vadd.f32 %v39, %v170
    %v176 = vadd.f32 %v40, %v158
    %v177 = vadd.f32 %v41, %v172
    %178 = vst [vmem:[#allocation2] sm:$0xff] %v174
    %179 = vst [vmem:[#allocation2 + $0x8] sm:$0xff] %v175
    %180 = vst [vmem:[#allocation2 + $0x10] sm:$0xff] %v176
    %181 = vst [vmem:[#allocation2 + $0x18] sm:$0xff] %v177
    // Predicated region
    $region22: #{transformer_forward.37} parent=1 // pred_check
      %p182 = pneg %p30
    $region23: #{transformer_forward.37} parent=1 // pred_check_branch
      %184 = sbr.rel (%p182) target = $region25
    $region24: #{transformer_forward.37} parent=1 // pred_region
      %v185 = vld [vmem:[#allocation2] sm:$0xff]
      %v186 = vld [vmem:[#allocation2 + $0x8] sm:$0xff]
      %v187 = vld [vmem:[#allocation2 + $0x10] sm:$0xff]
      %v188 = vld [vmem:[#allocation2 + $0x18] sm:$0xff]
      %v189 = vld [vmem:[%s2] sm:$0x3]
      %v191 = vperm.slane %v189, 0
      %v192 = vperm.slane %v189, 1
      %v195 = vadd.f32 %v185, %v191
      %v196 = vadd.f32 %v186, %v192
      %v197 = vadd.f32 %v187, %v191
      %v198 = vadd.f32 %v188, %v192
      %v199 = vpack.c.bf16 %v196, %v195
      %v200 = vpack.c.bf16 %v198, %v197
      %201 = vst [vmem:[%s3] sm:$0xff] %v199
      %202 = vst [vmem:[%s3 + $0x8] sm:$0xff] %v200
    $region25: #{transformer_forward.37} parent=1 // pred_fallthru
      _
    // Predicated region
    $region26: #{transformer_forward.37} parent=1 // pred_check
      _
    $region27: #{transformer_forward.37} parent=1 // pred_check_branch
      %204 = sbr.rel (0) target = $region29
    $region28: #{transformer_forward.37} parent=1 // pred_region
      _
    $region29: #{transformer_forward.37} parent=1 // pred_fallthru
      _
    // Predicated region
    $region30: #{transformer_forward.37} parent=1 // pred_check
      _
    $region31: #{transformer_forward.37} parent=1 // pred_check_branch
      %206 = sbr.rel (0) target = $region33
    $region32: #{transformer_forward.37} parent=1 // pred_region
      _
    $region33: #{transformer_forward.37} parent=1 // pred_fallthru
      _
    %207 = vsyncpa [#allocation4], 1

// kernel: transformer_forward.36
$region0: #{transformer_forward.36}
  #allocation0 [shape = 'u32[]', space=smem, size = 0x4, offset = 0x4, fixed_abs, tag = 'smem constant byte address 0x4 - core index']
  #allocation1 [shape = 'u32[72,128]{1,0:T(1,128)}', space=vmem, size = 0x9000, scoped, tag = 'internal scratch']
  #allocation2 [shape = 'f32[16,128]{1,0:T(8,128)}', space=vmem, size = 0x2000, scoped, tag = 'scratch operand']
  %s0 = inlined_call_operand.vmem [shape: bf16[16,128], index: 0, kind: input, shape index: {}]
  %s1 = inlined_call_operand.hbm [shape: bf16[128,128], index: 1, kind: input, shape index: {}]
  %s2 = inlined_call_operand.vmem [shape: f32[1,128], index: 2, kind: input, shape index: {}]
  %s3 = inlined_call_operand.vmem [shape: bf16[16,128], index: 3, kind: output, shape index: {}]
  %s4 = sld [smem:[#allocation0]]
  $region34: #{transformer_forward.36} parent=0
    _
  %s6 = ssub.s32 1, %s4
  %s7 = scalar_select 0, %s6, %s4
  $region1: #{transformer_forward.36} parent=0
    #allocation3 [shape = 'u8[32768]{0}', space=vmem, size = 0x8000, scoped, tag = 'input window, operand 1, single buffered']
    #allocation4 [shape = 's32[1]{0}', space=sflag, size = 0x4, scoped, tag = 'scoped memory for transformer_forward.36']
    %8 = vsyncpa [#allocation4], 0
    // Predicated region
    $region2: #{transformer_forward.36} parent=1 // pred_check
      _
    $region3: #{transformer_forward.36} parent=1 // pred_check_branch
      %10 = sbr.rel (0) target = $region5
    $region4: #{transformer_forward.36} parent=1 // pred_region
      _
    $region5: #{transformer_forward.36} parent=1 // pred_fallthru
      _
    // Predicated region
    $region6: #{transformer_forward.36} parent=1 // pred_check
      _
    $region7: #{transformer_forward.36} parent=1 // pred_check_branch
      %12 = sbr.rel (0) target = $region9
    $region8: #{transformer_forward.36} parent=1 // pred_region
      %14 = vsyncadd [#allocation4], 0
      %s15 = sshll.u32 %s1, 4
      %s16 = int_to_ptr.hbm [resolvable:$true] %s15
      %s17 = sshll.u32 [#allocation3], 4
      %s18 = int_to_ptr.vmem [resolvable:$true] %s17
      %23 = dma.hbm_to_vmem [thread:$0]  %s16, 1024, %s18, [#allocation4], 64, 64, 4
    $region9: #{transformer_forward.36} parent=1 // pred_fallthru
      _
    // Predicated region
    $region10: #{transformer_forward.36} parent=1 // pred_check
      _
    $region11: #{transformer_forward.36} parent=1 // pred_check_branch
      %25 = sbr.rel (0) target = $region13
    $region12: #{transformer_forward.36} parent=1 // pred_region
      _
    $region13: #{transformer_forward.36} parent=1 // pred_fallthru
      _
    // Predicated region
    $region14: #{transformer_forward.36} parent=1 // pred_check
      _
    $region15: #{transformer_forward.36} parent=1 // pred_check_branch
      %27 = sbr.rel (0) target = $region17
    $region16: #{transformer_forward.36} parent=1 // pred_region
      %29 = dma.done [#allocation4], 1024
    $region17: #{transformer_forward.36} parent=1 // pred_fallthru
      _
    %p30 = scmp.eq.s32.totalorder 0, 0
    // Predicated region
    $region18: #{transformer_forward.36} parent=1 // pred_check
      %p31 = pneg %p30
    $region19: #{transformer_forward.36} parent=1 // pred_check_branch
      %33 = sbr.rel (%p31) target = $region21
    $region20: #{transformer_forward.36} parent=1 // pred_region
      %34 = vst [vmem:[#allocation2] sm:$0xff] 0.0
      %35 = vst [vmem:[#allocation2 + $0x8] sm:$0xff] 0.0
    $region21: #{transformer_forward.36} parent=1 // pred_fallthru
      _
    %v36 = vld [vmem:[#allocation2] sm:$0xff]
    %v37 = vld [vmem:[#allocation2 + $0x8] sm:$0xff]
    %v38 = vld [vmem:[%s0] sm:$0xf]
    %v39 = vld [vmem:[%s0 + $0x4] sm:$0xf]
    %v40 = vld [vmem:[#allocation3] sm:$0xf]
    %v41 = vld [vmem:[#allocation3 + $0x4] sm:$0xf]
    %v42 = vld [vmem:[#allocation3 + $0x8] sm:$0xf]
    %v43 = vld [vmem:[#allocation3 + $0xc] sm:$0xf]
    %v44 = vld [vmem:[#allocation3 + $0x10] sm:$0xf]
    %v45 = vld [vmem:[#allocation3 + $0x14] sm:$0xf]
    %v46 = vld [vmem:[#allocation3 + $0x18] sm:$0xf]
    %v47 = vld [vmem:[#allocation3 + $0x1c] sm:$0xf]
    %v48 = vld [vmem:[#allocation3 + $0x20] sm:$0xf]
    %v49 = vld [vmem:[#allocation3 + $0x24] sm:$0xf]
    %v50 = vld [vmem:[#allocation3 + $0x28] sm:$0xf]
    %v51 = vld [vmem:[#allocation3 + $0x2c] sm:$0xf]
    %v52 = vld [vmem:[#allocation3 + $0x30] sm:$0xf]
    %v53 = vld [vmem:[#allocation3 + $0x34] sm:$0xf]
    %v54 = vld [vmem:[#allocation3 + $0x38] sm:$0xf]
    %v55 = vld [vmem:[#allocation3 + $0x3c] sm:$0xf]
    %v58 = vunpack.c.l.b16 %v38
    %v59 = vunpack.c.l.b16 %v39
    %v60 = vpack.c.b16 %v59, %v58
    %v78 = vunpack.c.l.b16 %v40
    %v79 = vunpack.c.l.b16 %v41
    %v80 = vunpack.c.l.b16 %v42
    %v81 = vunpack.c.l.b16 %v43
    %v82 = vunpack.c.l.b16 %v44
    %v83 = vunpack.c.l.b16 %v45
    %v84 = vunpack.c.l.b16 %v46
    %v85 = vunpack.c.l.b16 %v47
    %v86 = vunpack.c.l.b16 %v48
    %v87 = vunpack.c.l.b16 %v49
    %v88 = vunpack.c.l.b16 %v50
    %v89 = vunpack.c.l.b16 %v51
    %v90 = vunpack.c.l.b16 %v52
    %v91 = vunpack.c.l.b16 %v53
    %v92 = vunpack.c.l.b16 %v54
    %v93 = vunpack.c.l.b16 %v55
    %v94 = vpack.c.b16 %v79, %v78
    %v95 = vpack.c.b16 %v81, %v80
    %v96 = vpack.c.b16 %v83, %v82
    %v97 = vpack.c.b16 %v85, %v84
    %v98 = vpack.c.b16 %v87, %v86
    %v99 = vpack.c.b16 %v89, %v88
    %v100 = vpack.c.b16 %v91, %v90
    %v101 = vpack.c.b16 %v93, %v92
    %110 = vmatpush.bf16.msra.mxu0 %v101
    %111 = vmatpush.bf16.msra.mxu0 %v100
    %112 = vmatpush.bf16.msra.mxu0 %v99
    %113 = vmatpush.bf16.msra.mxu0 %v98
    %114 = vmatpush.bf16.msra.mxu0 %v97
    %115 = vmatpush.bf16.msra.mxu0 %v96
    %116 = vmatpush.bf16.msra.mxu0 %v95
    %117 = vmatpush.bf16.msra.mxu0 %v94
    %118 = vmatmul.bf16.gmra.mxu0 %v60
    %v119 = vpop.f32.mrf.mxu0
    %v120 = vadd.f32 0.0, %v119
    %v121 = vpop.f32.mrf.mxu0
    %v122 = vadd.f32 0.0, %v121
    %123 = vdwg.mxu0
    %v124 = vadd.f32 %v36, %v120
    %v125 = vadd.f32 %v37, %v122
    %126 = vst [vmem:[#allocation2] sm:$0xff] %v124
    %127 = vst [vmem:[#allocation2 + $0x8] sm:$0xff] %v125
    // Predicated region
    $region22: #{transformer_forward.36} parent=1 // pred_check
      %p128 = pneg %p30
    $region23: #{transformer_forward.36} parent=1 // pred_check_branch
      %130 = sbr.rel (%p128) target = $region25
    $region24: #{transformer_forward.36} parent=1 // pred_region
      %v131 = vld [vmem:[#allocation2] sm:$0xff]
      %v132 = vld [vmem:[#allocation2 + $0x8] sm:$0xff]
      %v133 = vld [vmem:[%s2] sm:$0x1]
      %v135 = vperm.slane %v133, 0
      %v137 = vadd.f32 %v131, %v135
      %v138 = vadd.f32 %v132, %v135
      %v139 = vpack.c.bf16 %v137, %v137
      %v140 = vpack.c.bf16 %v138, %v138
      %141 = vst [vmem:[%s3] sm:$0xf] %v139
      %142 = vst [vmem:[%s3 + $0x4] sm:$0xf] %v140
    $region25: #{transformer_forward.36} parent=1 // pred_fallthru
      _
    // Predicated region
    $region26: #{transformer_forward.36} parent=1 // pred_check
      _
    $region27: #{transformer_forward.36} parent=1 // pred_check_branch
      %144 = sbr.rel (0) target = $region29
    $region28: #{transformer_forward.36} parent=1 // pred_region
      _
    $region29: #{transformer_forward.36} parent=1 // pred_fallthru
      _
    // Predicated region
    $region30: #{transformer_forward.36} parent=1 // pred_check
      _
    $region31: #{transformer_forward.36} parent=1 // pred_check_branch
      %146 = sbr.rel (0) target = $region33
    $region32: #{transformer_forward.36} parent=1 // pred_region
      _
    $region33: #{transformer_forward.36} parent=1 // pred_fallthru
      _
    %147 = vsyncpa [#allocation4], 1

// kernel: transformer_forward.32
$region0: #{transformer_forward.32}
  #allocation0 [shape = 'u32[]', space=smem, size = 0x4, offset = 0x4, fixed_abs, tag = 'smem constant byte address 0x4 - core index']
  #allocation1 [shape = 'u32[72,128]{1,0:T(1,128)}', space=vmem, size = 0x9000, scoped, tag = 'internal scratch']
  #allocation2 [shape = 'f32[16,128]{1,0:T(8,128)}', space=vmem, size = 0x2000, scoped, tag = 'scratch operand']
  %s0 = inlined_call_operand.vmem [shape: bf16[16,128], index: 0, kind: input, shape index: {}]
  %s1 = inlined_call_operand.hbm [shape: bf16[128,256], index: 1, kind: input, shape index: {}]
  %s2 = inlined_call_operand.vmem [shape: f32[1,256], index: 2, kind: input, shape index: {}]
  %s3 = inlined_call_operand.hbm [shape: bf16[256,128], index: 3, kind: input, shape index: {}]
  %s4 = inlined_call_operand.vmem [shape: f32[1,128], index: 4, kind: input, shape index: {}]
  %s5 = inlined_call_operand.vmem [shape: f32[1,128], index: 5, kind: input, shape index: {}]
  %s6 = inlined_call_operand.vmem [shape: f32[1,128], index: 6, kind: input, shape index: {}]
  %s7 = inlined_call_operand.vmem [shape: bf16[16,128], index: 7, kind: output, shape index: {}]
  %s8 = sld [smem:[#allocation0]]
  $region54: #{transformer_forward.32} parent=0
    _
  %s10 = ssub.s32 1, %s8
  %s11 = scalar_select 0, %s10, %s8
  $region1: #{transformer_forward.32} parent=0
    #allocation3 [shape = 'u8[65536]{0}', space=vmem, size = 0x10000, scoped, tag = 'input window, operand 1, single buffered']
    #allocation4 [shape = 's32[1]{0}', space=sflag, size = 0x4, scoped, tag = 'scoped memory for transformer_forward.32']
    #allocation5 [shape = 'u8[65536]{0}', space=vmem, size = 0x10000, scoped, tag = 'input window, operand 3, single buffered']
    #allocation6 [shape = 's32[1]{0}', space=sflag, size = 0x4, scoped, tag = 'scoped memory for transformer_forward.32']
    %12 = vsyncpa [#allocation4], 0
    %13 = vsyncpa [#allocation6], 0
    // Predicated region
    $region2: #{transformer_forward.32} parent=1 // pred_check
      _
    $region3: #{transformer_forward.32} parent=1 // pred_check_branch
      %15 = sbr.rel (0) target = $region5
    $region4: #{transformer_forward.32} parent=1 // pred_region
      _
    $region5: #{transformer_forward.32} parent=1 // pred_fallthru
      _
    // Predicated region
    $region6: #{transformer_forward.32} parent=1 // pred_check
      _
    $region7: #{transformer_forward.32} parent=1 // pred_check_branch
      %17 = sbr.rel (0) target = $region9
    $region8: #{transformer_forward.32} parent=1 // pred_region
      %19 = vsyncadd [#allocation4], 0
      %s20 = sshll.u32 %s1, 4
      %s21 = int_to_ptr.hbm [resolvable:$true] %s20
      %s22 = sshll.u32 [#allocation3], 4
      %s23 = int_to_ptr.vmem [resolvable:$true] %s22
      %28 = dma.hbm_to_vmem [thread:$0]  %s21, 2048, %s23, [#allocation4], 128, 128, 8
    $region9: #{transformer_forward.32} parent=1 // pred_fallthru
      _
    // Predicated region
    $region10: #{transformer_forward.32} parent=1 // pred_check
      _
    $region11: #{transformer_forward.32} parent=1 // pred_check_branch
      %30 = sbr.rel (0) target = $region13
    $region12: #{transformer_forward.32} parent=1 // pred_region
      _
    $region13: #{transformer_forward.32} parent=1 // pred_fallthru
      _
    // Predicated region
    $region14: #{transformer_forward.32} parent=1 // pred_check
      _
    $region15: #{transformer_forward.32} parent=1 // pred_check_branch
      %32 = sbr.rel (0) target = $region17
    $region16: #{transformer_forward.32} parent=1 // pred_region
      %34 = vsyncadd [#allocation6], 0
      %s35 = sshll.u32 %s3, 4
      %s36 = int_to_ptr.hbm [resolvable:$true] %s35
      %s37 = sshll.u32 [#allocation5], 4
      %s38 = int_to_ptr.vmem [resolvable:$true] %s37
      %43 = dma.hbm_to_vmem [thread:$0]  %s36, 2048, %s38, [#allocation6], 64, 64, 4
    $region17: #{transformer_forward.32} parent=1 // pred_fallthru
      _
    // Predicated region
    $region18: #{transformer_forward.32} parent=1 // pred_check
      _
    $region19: #{transformer_forward.32} parent=1 // pred_check_branch
      %45 = sbr.rel (0) target = $region21
    $region20: #{transformer_forward.32} parent=1 // pred_region
      _
    $region21: #{transformer_forward.32} parent=1 // pred_fallthru
      _
    // Predicated region
    $region22: #{transformer_forward.32} parent=1 // pred_check
      _
    $region23: #{transformer_forward.32} parent=1 // pred_check_branch
      %47 = sbr.rel (0) target = $region25
    $region24: #{transformer_forward.32} parent=1 // pred_region
      _
    $region25: #{transformer_forward.32} parent=1 // pred_fallthru
      _
    // Predicated region
    $region26: #{transformer_forward.32} parent=1 // pred_check
      _
    $region27: #{transformer_forward.32} parent=1 // pred_check_branch
      %49 = sbr.rel (0) target = $region29
    $region28: #{transformer_forward.32} parent=1 // pred_region
      _
    $region29: #{transformer_forward.32} parent=1 // pred_fallthru
      _
    // Predicated region
    $region30: #{transformer_forward.32} parent=1 // pred_check
      _
    $region31: #{transformer_forward.32} parent=1 // pred_check_branch
      %51 = sbr.rel (0) target = $region33
    $region32: #{transformer_forward.32} parent=1 // pred_region
      %53 = dma.done [#allocation4], 2048
    $region33: #{transformer_forward.32} parent=1 // pred_fallthru
      _
    // Predicated region
    $region34: #{transformer_forward.32} parent=1 // pred_check
      _
    $region35: #{transformer_forward.32} parent=1 // pred_check_branch
      %55 = sbr.rel (0) target = $region37
    $region36: #{transformer_forward.32} parent=1 // pred_region
      %57 = dma.done [#allocation6], 2048
    $region37: #{transformer_forward.32} parent=1 // pred_fallthru
      _
    %p58 = scmp.eq.s32.totalorder 0, 0
    // Predicated region
    $region38: #{transformer_forward.32} parent=1 // pred_check
      %p59 = pneg %p58
    $region39: #{transformer_forward.32} parent=1 // pred_check_branch
      %61 = sbr.rel (%p59) target = $region41
    $region40: #{transformer_forward.32} parent=1 // pred_region
      %62 = vst [vmem:[#allocation2] sm:$0xff] 0.0
      %63 = vst [vmem:[#allocation2 + $0x8] sm:$0xff] 0.0
    $region41: #{transformer_forward.32} parent=1 // pred_fallthru
      _
    %v64 = vld [vmem:[%s0] sm:$0xf]
    %v65 = vld [vmem:[%s0 + $0x4] sm:$0xf]
    %v66 = vld [vmem:[#allocation3] sm:$0xff]
    %v67 = vld [vmem:[#allocation3 + $0x8] sm:$0xff]
    %v68 = vld [vmem:[#allocation3 + $0x10] sm:$0xff]
    %v69 = vld [vmem:[#allocation3 + $0x18] sm:$0xff]
    %v70 = vld [vmem:[#allocation3 + $0x20] sm:$0xff]
    %v71 = vld [vmem:[#allocation3 + $0x28] sm:$0xff]
    %v72 = vld [vmem:[#allocation3 + $0x30] sm:$0xff]
    %v73 = vld [vmem:[#allocation3 + $0x38] sm:$0xff]
    %v74 = vld [vmem:[#allocation3 + $0x40] sm:$0xff]
    %v75 = vld [vmem:[#allocation3 + $0x48] sm:$0xff]
    %v76 = vld [vmem:[#allocation3 + $0x50] sm:$0xff]
    %v77 = vld [vmem:[#allocation3 + $0x58] sm:$0xff]
    %v78 = vld [vmem:[#allocation3 + $0x60] sm:$0xff]
    %v79 = vld [vmem:[#allocation3 + $0x68] sm:$0xff]
    %v80 = vld [vmem:[#allocation3 + $0x70] sm:$0xff]
    %v81 = vld [vmem:[#allocation3 + $0x78] sm:$0xff]
    %v82 = vld [vmem:[%s2] sm:$0x3]
    %v84 = vperm.slane %v82, 0
    %v85 = vperm.slane %v82, 1
    %v90 = vunpack.c.l.b16 %v64
    %v91 = vunpack.c.l.b16 %v65
    %v92 = vpack.c.b16 %v91, %v90
    %v110 = vunpack.c.l.b16 %v66
    %v111 = vunpack.c.h.b16 %v66
    %v112 = vunpack.c.l.b16 %v67
    %v113 = vunpack.c.h.b16 %v67
    %v114 = vunpack.c.l.b16 %v68
    %v115 = vunpack.c.h.b16 %v68
    %v116 = vunpack.c.l.b16 %v69
    %v117 = vunpack.c.h.b16 %v69
    %v118 = vunpack.c.l.b16 %v70
    %v119 = vunpack.c.h.b16 %v70
    %v120 = vunpack.c.l.b16 %v71
    %v121 = vunpack.c.h.b16 %v71
    %v122 = vunpack.c.l.b16 %v72
    %v123 = vunpack.c.h.b16 %v72
    %v124 = vunpack.c.l.b16 %v73
    %v125 = vunpack.c.h.b16 %v73
    %v126 = vunpack.c.l.b16 %v74
    %v127 = vunpack.c.h.b16 %v74
    %v128 = vunpack.c.l.b16 %v75
    %v129 = vunpack.c.h.b16 %v75
    %v130 = vunpack.c.l.b16 %v76
    %v131 = vunpack.c.h.b16 %v76
    %v132 = vunpack.c.l.b16 %v77
    %v133 = vunpack.c.h.b16 %v77
    %v134 = vunpack.c.l.b16 %v78
    %v135 = vunpack.c.h.b16 %v78
    %v136 = vunpack.c.l.b16 %v79
    %v137 = vunpack.c.h.b16 %v79
    %v138 = vunpack.c.l.b16 %v80
    %v139 = vunpack.c.h.b16 %v80
    %v140 = vunpack.c.l.b16 %v81
    %v141 = vunpack.c.h.b16 %v81
    %v142 = vpack.c.b16 %v112, %v110
    %v143 = vpack.c.b16 %v113, %v111
    %v144 = vpack.c.b16 %v116, %v114
    %v145 = vpack.c.b16 %v117, %v115
    %v146 = vpack.c.b16 %v120, %v118
    %v147 = vpack.c.b16 %v121, %v119
    %v148 = vpack.c.b16 %v124, %v122
    %v149 = vpack.c.b16 %v125, %v123
    %v150 = vpack.c.b16 %v128, %v126
    %v151 = vpack.c.b16 %v129, %v127
    %v152 = vpack.c.b16 %v132, %v130
    %v153 = vpack.c.b16 %v133, %v131
    %v154 = vpack.c.b16 %v136, %v134
    %v155 = vpack.c.b16 %v137, %v135
    %v156 = vpack.c.b16 %v140, %v138
    %v157 = vpack.c.b16 %v141, %v139
    %174 = vmatpush.bf16.msra.mxu0 %v156
    %175 = vmatpush.bf16.msra.mxu0 %v154
    %176 = vmatpush.bf16.msra.mxu0 %v152
    %177 = vmatpush.bf16.msra.mxu0 %v150
    %178 = vmatpush.bf16.msra.mxu0 %v148
    %179 = vmatpush.bf16.msra.mxu0 %v146
    %180 = vmatpush.bf16.msra.mxu0 %v144
    %181 = vmatpush.bf16.msra.mxu0 %v142
    %182 = vmatmul.bf16.gmra.mxu0 %v92
    %v183 = vpop.f32.mrf.mxu0
    %v184 = vadd.f32 %v84, %v183
    %v185 = vpop.f32.mrf.mxu0
    %v186 = vadd.f32 %v84, %v185
    %187 = vdwg.mxu0
    %188 = vmatpush.bf16.msra.mxu0 %v157
    %189 = vmatpush.bf16.msra.mxu0 %v155
    %190 = vmatpush.bf16.msra.mxu0 %v153
    %191 = vmatpush.bf16.msra.mxu0 %v151
    %192 = vmatpush.bf16.msra.mxu0 %v149
    %193 = vmatpush.bf16.msra.mxu0 %v147
    %194 = vmatpush.bf16.msra.mxu0 %v145
    %195 = vmatpush.bf16.msra.mxu0 %v143
    %196 = vmatmul.bf16.gmra.mxu0 %v92
    %v197 = vpop.f32.mrf.mxu0
    %v198 = vadd.f32 %v85, %v197
    %v199 = vpop.f32.mrf.mxu0
    %v200 = vadd.f32 %v85, %v199
    %201 = vdwg.mxu0
    %v202 = vmax.f32 %v184, 0.0
    %v203 = vmax.f32 %v198, 0.0
    %v204 = vmax.f32 %v186, 0.0
    %v205 = vmax.f32 %v200, 0.0
    %v206 = vpack.c.bf16 %v204, %v202
    %v207 = vpack.c.bf16 %v205, %v203
    %v208 = vld [vmem:[#allocation2] sm:$0xff]
    %v209 = vld [vmem:[#allocation2 + $0x8] sm:$0xff]
    %v210 = vld [vmem:[#allocation5] sm:$0xf]
    %v211 = vld [vmem:[#allocation5 + $0x4] sm:$0xf]
    %v212 = vld [vmem:[#allocation5 + $0x8] sm:$0xf]
    %v213 = vld [vmem:[#allocation5 + $0xc] sm:$0xf]
    %v214 = vld [vmem:[#allocation5 + $0x10] sm:$0xf]
    %v215 = vld [vmem:[#allocation5 + $0x14] sm:$0xf]
    %v216 = vld [vmem:[#allocation5 + $0x18] sm:$0xf]
    %v217 = vld [vmem:[#allocation5 + $0x1c] sm:$0xf]
    %v218 = vld [vmem:[#allocation5 + $0x20] sm:$0xf]
    %v219 = vld [vmem:[#allocation5 + $0x24] sm:$0xf]
    %v220 = vld [vmem:[#allocation5 + $0x28] sm:$0xf]
    %v221 = vld [vmem:[#allocation5 + $0x2c] sm:$0xf]
    %v222 = vld [vmem:[#allocation5 + $0x30] sm:$0xf]
    %v223 = vld [vmem:[#allocation5 + $0x34] sm:$0xf]
    %v224 = vld [vmem:[#allocation5 + $0x38] sm:$0xf]
    %v225 = vld [vmem:[#allocation5 + $0x3c] sm:$0xf]
    %v226 = vld [vmem:[#allocation5 + $0x40] sm:$0xf]
    %v227 = vld [vmem:[#allocation5 + $0x44] sm:$0xf]
    %v228 = vld [vmem:[#allocation5 + $0x48] sm:$0xf]
    %v229 = vld [vmem:[#allocation5 + $0x4c] sm:$0xf]
    %v230 = vld [vmem:[#allocation5 + $0x50] sm:$0xf]
    %v231 = vld [vmem:[#allocation5 + $0x54] sm:$0xf]
    %v232 = vld [vmem:[#allocation5 + $0x58] sm:$0xf]
    %v233 = vld [vmem:[#allocation5 + $0x5c] sm:$0xf]
    %v234 = vld [vmem:[#allocation5 + $0x60] sm:$0xf]
    %v235 = vld [vmem:[#allocation5 + $0x64] sm:$0xf]
    %v236 = vld [vmem:[#allocation5 + $0x68] sm:$0xf]
    %v237 = vld [vmem:[#allocation5 + $0x6c] sm:$0xf]
    %v238 = vld [vmem:[#allocation5 + $0x70] sm:$0xf]
    %v239 = vld [vmem:[#allocation5 + $0x74] sm:$0xf]
    %v240 = vld [vmem:[#allocation5 + $0x78] sm:$0xf]
    %v241 = vld [vmem:[#allocation5 + $0x7c] sm:$0xf]
    %v274 = vunpack.c.l.b16 %v210
    %v275 = vunpack.c.l.b16 %v211
    %v276 = vunpack.c.l.b16 %v212
    %v277 = vunpack.c.l.b16 %v213
    %v278 = vunpack.c.l.b16 %v214
    %v279 = vunpack.c.l.b16 %v215
    %v280 = vunpack.c.l.b16 %v216
    %v281 = vunpack.c.l.b16 %v217
    %v282 = vunpack.c.l.b16 %v218
    %v283 = vunpack.c.l.b16 %v219
    %v284 = vunpack.c.l.b16 %v220
    %v285 = vunpack.c.l.b16 %v221
    %v286 = vunpack.c.l.b16 %v222
    %v287 = vunpack.c.l.b16 %v223
    %v288 = vunpack.c.l.b16 %v224
    %v289 = vunpack.c.l.b16 %v225
    %v290 = vunpack.c.l.b16 %v226
    %v291 = vunpack.c.l.b16 %v227
    %v292 = vunpack.c.l.b16 %v228
    %v293 = vunpack.c.l.b16 %v229
    %v294 = vunpack.c.l.b16 %v230
    %v295 = vunpack.c.l.b16 %v231
    %v296 = vunpack.c.l.b16 %v232
    %v297 = vunpack.c.l.b16 %v233
    %v298 = vunpack.c.l.b16 %v234
    %v299 = vunpack.c.l.b16 %v235
    %v300 = vunpack.c.l.b16 %v236
    %v301 = vunpack.c.l.b16 %v237
    %v302 = vunpack.c.l.b16 %v238
    %v303 = vunpack.c.l.b16 %v239
    %v304 = vunpack.c.l.b16 %v240
    %v305 = vunpack.c.l.b16 %v241
    %v306 = vpack.c.b16 %v275, %v274
    %v307 = vpack.c.b16 %v277, %v276
    %v308 = vpack.c.b16 %v279, %v278
    %v309 = vpack.c.b16 %v281, %v280
    %v310 = vpack.c.b16 %v283, %v282
    %v311 = vpack.c.b16 %v285, %v284
    %v312 = vpack.c.b16 %v287, %v286
    %v313 = vpack.c.b16 %v289, %v288
    %v314 = vpack.c.b16 %v291, %v290
    %v315 = vpack.c.b16 %v293, %v292
    %v316 = vpack.c.b16 %v295, %v294
    %v317 = vpack.c.b16 %v297, %v296
    %v318 = vpack.c.b16 %v299, %v298
    %v319 = vpack.c.b16 %v301, %v300
    %v320 = vpack.c.b16 %v303, %v302
    %v321 = vpack.c.b16 %v305, %v304
    %338 = vmatpush.bf16.msra.mxu0 %v313
    %339 = vmatpush.bf16.msra.mxu0 %v312
    %340 = vmatpush.bf16.msra.mxu0 %v311
    %341 = vmatpush.bf16.msra.mxu0 %v310
    %342 = vmatpush.bf16.msra.mxu0 %v309
    %343 = vmatpush.bf16.msra.mxu0 %v308
    %344 = vmatpush.bf16.msra.mxu0 %v307
    %345 = vmatpush.bf16.msra.mxu0 %v306
    %346 = vmatmul.bf16.gmra.mxu0 %v206
    %v347 = vpop.f32.mrf.mxu0
    %v348 = vadd.f32 0.0, %v347
    %v349 = vpop.f32.mrf.mxu0
    %v350 = vadd.f32 0.0, %v349
    %351 = vdwg.mxu0
    %352 = vmatpush.bf16.msra.mxu0 %v321
    %353 = vmatpush.bf16.msra.mxu0 %v320
    %354 = vmatpush.bf16.msra.mxu0 %v319
    %355 = vmatpush.bf16.msra.mxu0 %v318
    %356 = vmatpush.bf16.msra.mxu0 %v317
    %357 = vmatpush.bf16.msra.mxu0 %v316
    %358 = vmatpush.bf16.msra.mxu0 %v315
    %359 = vmatpush.bf16.msra.mxu0 %v314
    %360 = vmatmul.bf16.gmra.mxu0 %v207
    %v361 = vpop.f32.mrf.mxu0
    %v362 = vadd.f32 %v348, %v361
    %v363 = vpop.f32.mrf.mxu0
    %v364 = vadd.f32 %v350, %v363
    %365 = vdwg.mxu0
    %v366 = vadd.f32 %v208, %v362
    %v367 = vadd.f32 %v209, %v364
    %368 = vst [vmem:[#allocation2] sm:$0xff] %v366
    %369 = vst [vmem:[#allocation2 + $0x8] sm:$0xff] %v367
    // Predicated region
    $region42: #{transformer_forward.32} parent=1 // pred_check
      %p370 = pneg %p58
    $region43: #{transformer_forward.32} parent=1 // pred_check_branch
      %372 = sbr.rel (%p370) target = $region45
    $region44: #{transformer_forward.32} parent=1 // pred_region
      %v373 = vld [vmem:[#allocation2] sm:$0xff]
      %v374 = vld [vmem:[#allocation2 + $0x8] sm:$0xff]
      %v375 = vld [vmem:[%s4] sm:$0x1]
      %v377 = vperm.slane %v375, 0
      %v379 = vadd.f32 %v373, %v377
      %v380 = vadd.f32 %v374, %v377
      %v381 = vld [vmem:[%s0] sm:$0xf]
      %v382 = vld [vmem:[%s0 + $0x4] sm:$0xf]
      %v383 = vunpack.c.l.bf16 %v381
      %v384 = vunpack.c.l.bf16 %v382
      %v385 = vadd.f32 %v379, %v383
      %v386 = vadd.f32 %v380, %v384
      %387 = vadd.xlane.f32.xlu0 %v385
      %v388 = vpop.xlane.xlu0 %387
      %389 = vadd.xlane.f32.xlu0 %v386
      %v390 = vpop.xlane.xlu0 %389
      %v391 = vrcp.pop 128.0
      %v392 = vmul.f32 128.0, %v391
      %v393 = vsub.f32 1.0, %v392
      %v394 = vmul.f32 %v391, %v393
      %v395 = vadd.f32 %v391, %v394
      %vm396 = vweird.f32 %v391
      %v397 = vsel %vm396, %v391, %v395
      %v398 = vmul.f32 %v388, %v397
      %v399 = vmul.f32 %v390, %v397
      %v400 = vsub.f32 %v385, %v398
      %v401 = vsub.f32 %v386, %v399
      %v402 = vmul.f32 %v400, %v400
      %v403 = vmul.f32 %v401, %v401
      %404 = vadd.xlane.f32.xlu0 %v402
      %v405 = vpop.xlane.xlu0 %404
      %406 = vadd.xlane.f32.xlu0 %v403
      %v407 = vpop.xlane.xlu0 %406
      %v408 = vmul.f32 %v405, %v397
      %v409 = vmul.f32 %v407, %v397
      %v410 = vadd.f32 %v408, 1e-05
      %v411 = vadd.f32 %v409, 1e-05
      %v412 = vrsqrt.pop %v410
      %v413 = vmul.f32 %v412, %v410
      %v414 = vmul.f32 %v413, %v412
      %v415 = vmul.f32 0.5, %v414
      %v416 = vsub.f32 1.5, %v415
      %v417 = vmul.f32 %v412, %v416
      %vm418 = vweird.f32 %v410
      %vm419 = vweird.f32 %v412
      %vm420 = vmor %vm418, %vm419
      %v421 = vsel %vm420, %v412, %v417
      %v422 = vrsqrt.pop %v411
      %v423 = vmul.f32 %v422, %v411
      %v424 = vmul.f32 %v423, %v422
      %v425 = vmul.f32 0.5, %v424
      %v426 = vsub.f32 1.5, %v425
      %v427 = vmul.f32 %v422, %v426
      %vm428 = vweird.f32 %v411
      %vm429 = vweird.f32 %v422
      %vm430 = vmor %vm428, %vm429
      %v431 = vsel %vm430, %v422, %v427
      %v432 = vmul.f32 %v400, %v421
      %v433 = vmul.f32 %v401, %v431
      %v434 = vld [vmem:[%s5] sm:$0x1]
      %v436 = vperm.slane %v434, 0
      %v438 = vmul.f32 %v432, %v436
      %v439 = vmul.f32 %v433, %v436
      %v440 = vld [vmem:[%s6] sm:$0x1]
      %v442 = vperm.slane %v440, 0
      %v444 = vadd.f32 %v438, %v442
      %v445 = vadd.f32 %v439, %v442
      %v446 = vpack.c.bf16 %v444, %v444
      %v447 = vpack.c.bf16 %v445, %v445
      %448 = vst [vmem:[%s7] sm:$0xf] %v446
      %449 = vst [vmem:[%s7 + $0x4] sm:$0xf] %v447
    $region45: #{transformer_forward.32} parent=1 // pred_fallthru
      _
    // Predicated region
    $region46: #{transformer_forward.32} parent=1 // pred_check
      _
    $region47: #{transformer_forward.32} parent=1 // pred_check_branch
      %451 = sbr.rel (0) target = $region49
    $region48: #{transformer_forward.32} parent=1 // pred_region
      _
    $region49: #{transformer_forward.32} parent=1 // pred_fallthru
      _
    // Predicated region
    $region50: #{transformer_forward.32} parent=1 // pred_check
      _
    $region51: #{transformer_forward.32} parent=1 // pred_check_branch
      %453 = sbr.rel (0) target = $region53
    $region52: #{transformer_forward.32} parent=1 // pred_region
      _
    $region53: #{transformer_forward.32} parent=1 // pred_fallthru
      _
    %454 = vsyncpa [#allocation4], 1
    %455 = vsyncpa [#allocation6], 1

// kernel: transformer_forward.49
$region0: #{transformer_forward.49}
  #allocation0 [shape = 'u32[]', space=smem, size = 0x4, offset = 0x4, fixed_abs, tag = 'smem constant byte address 0x4 - core index']
  #allocation1 [shape = 'u32[72,128]{1,0:T(1,128)}', space=vmem, size = 0x9000, scoped, tag = 'internal scratch']
  %s0 = inlined_call_operand.vmem [shape: bf16[16,128], index: 0, kind: input, shape index: {}]
  %s1 = inlined_call_operand.vmem [shape: f32[128,3], index: 1, kind: input, shape index: {}]
  %s2 = inlined_call_operand.vmem [shape: f32[1,3], index: 2, kind: input, shape index: {}]
  %s3 = inlined_call_operand.vmem [shape: f32[16,3], index: 3, kind: output, shape index: {}]
  %s4 = sld [smem:[#allocation0]]
  $region22: #{transformer_forward.49} parent=0
    _
  %s6 = ssub.s32 1, %s4
  %s7 = scalar_select 0, %s6, %s4
  // Predicated region
  $region2: #{transformer_forward.49} parent=0 // pred_check
    _
  $region3: #{transformer_forward.49} parent=0 // pred_check_branch
    %9 = sbr.rel (0) target = $region5
  $region4: #{transformer_forward.49} parent=0 // pred_region
    _
  $region5: #{transformer_forward.49} parent=0 // pred_fallthru
    _
  // Predicated region
  $region6: #{transformer_forward.49} parent=0 // pred_check
    _
  $region7: #{transformer_forward.49} parent=0 // pred_check_branch
    %11 = sbr.rel (0) target = $region9
  $region8: #{transformer_forward.49} parent=0 // pred_region
    _
  $region9: #{transformer_forward.49} parent=0 // pred_fallthru
    _
  // Predicated region
  $region10: #{transformer_forward.49} parent=0 // pred_check
    _
  $region11: #{transformer_forward.49} parent=0 // pred_check_branch
    %13 = sbr.rel (0) target = $region13
  $region12: #{transformer_forward.49} parent=0 // pred_region
    _
  $region13: #{transformer_forward.49} parent=0 // pred_fallthru
    _
  %v14 = vld [vmem:[%s0] sm:$0xf]
  %v15 = vld [vmem:[%s0 + $0x4] sm:$0xf]
  %v16 = vunpack.c.l.bf16 %v14
  %v17 = vunpack.c.l.bf16 %v15
  %v18 = vld [vmem:[%s1] sm:$0xff]
  %v19 = vld [vmem:[%s1 + $0x8] sm:$0xff]
  %v20 = vld [vmem:[%s1 + $0x10] sm:$0xff]
  %v21 = vld [vmem:[%s1 + $0x18] sm:$0xff]
  %v22 = vld [vmem:[%s1 + $0x20] sm:$0xff]
  %v23 = vld [vmem:[%s1 + $0x28] sm:$0xff]
  %v24 = vld [vmem:[%s1 + $0x30] sm:$0xff]
  %v25 = vld [vmem:[%s1 + $0x38] sm:$0xff]
  %v26 = vld [vmem:[%s1 + $0x40] sm:$0xff]
  %v27 = vld [vmem:[%s1 + $0x48] sm:$0xff]
  %v28 = vld [vmem:[%s1 + $0x50] sm:$0xff]
  %v29 = vld [vmem:[%s1 + $0x58] sm:$0xff]
  %v30 = vld [vmem:[%s1 + $0x60] sm:$0xff]
  %v31 = vld [vmem:[%s1 + $0x68] sm:$0xff]
  %v32 = vld [vmem:[%s1 + $0x70] sm:$0xff]
  %v33 = vld [vmem:[%s1 + $0x78] sm:$0xff]
  %v34 = vld [vmem:[%s2] sm:$0x1]
  %v36 = vperm.slane %v34, 0
  %38 = vmatpush.msra.mxu0 %v33
  %39 = vmatpush.msra.mxu0 %v32
  %40 = vmatpush.msra.mxu0 %v31
  %41 = vmatpush.msra.mxu0 %v30
  %42 = vmatpush.msra.mxu0 %v29
  %43 = vmatpush.msra.mxu0 %v28
  %44 = vmatpush.msra.mxu0 %v27
  %45 = vmatpush.msra.mxu0 %v26
  %46 = vmatpush.msra.mxu0 %v25
  %47 = vmatpush.msra.mxu0 %v24
  %48 = vmatpush.msra.mxu0 %v23
  %49 = vmatpush.msra.mxu0 %v22
  %50 = vmatpush.msra.mxu0 %v21
  %51 = vmatpush.msra.mxu0 %v20
  %52 = vmatpush.msra.mxu0 %v19
  %53 = vmatpush.msra.mxu0 %v18
  %54 = vmatmul.f32.gmra.mxu0 %v16
  %v55 = vpop.f32.mrf.mxu0
  %v56 = vadd.f32 %v36, %v55
  %57 = vmatmul.f32.gmra.mxu0 %v17
  %v58 = vpop.f32.mrf.mxu0
  %v59 = vadd.f32 %v36, %v58
  %60 = vdwg.mxu0
  %vm61 = vcmask 23552
  %v62 = vsel %vm61, %v56, -inf
  %63 = vmax.xlane.f32.xlu0 %v62
  %v64 = vpop.xlane.xlu0 %63
  %v65 = vsel %vm61, %v59, -inf
  %66 = vmax.xlane.f32.xlu0 %v65
  %v67 = vpop.xlane.xlu0 %66
  %v68 = vsub.f32 %v56, %v64
  %v69 = vsub.f32 %v59, %v67
  %v70 = vmul.f32 %v68, 1.442695
  %v71 = vpow.pop %v70
  %v72 = vmul.f32 %v69, 1.442695
  %v73 = vpow.pop %v72
  %v74 = vsel %vm61, %v71, 0.0
  %75 = vadd.xlane.f32.xlu0 %v74
  %v76 = vpop.xlane.xlu0 %75
  %v77 = vsel %vm61, %v73, 0.0
  %78 = vadd.xlane.f32.xlu0 %v77
  %v79 = vpop.xlane.xlu0 %78
  %v80 = vrcp.pop %v76
  %v81 = vmul.f32 %v76, %v80
  %v82 = vsub.f32 1.0, %v81
  %v83 = vmul.f32 %v80, %v82
  %v84 = vadd.f32 %v80, %v83
  %vm85 = vweird.f32 %v76
  %vm86 = vweird.f32 %v80
  %vm87 = vmor %vm85, %vm86
  %v88 = vsel %vm87, %v80, %v84
  %v89 = vand.u32 2147483647, %v76
  %vm90 = vcmp.eq.f32.partialorder %v89, 8.507059e+37
  %v91 = vand.u32 %v76, 2147483648
  %v92 = vor.u32 1.1754944e-38, %v91
  %v93 = vsel %vm90, %v92, %v88
  %v94 = vmul.f32 %v71, %v93
  %v95 = vrcp.pop %v79
  %v96 = vmul.f32 %v79, %v95
  %v97 = vsub.f32 1.0, %v96
  %v98 = vmul.f32 %v95, %v97
  %v99 = vadd.f32 %v95, %v98
  %vm100 = vweird.f32 %v79
  %vm101 = vweird.f32 %v95
  %vm102 = vmor %vm100, %vm101
  %v103 = vsel %vm102, %v95, %v99
  %v104 = vand.u32 2147483647, %v79
  %vm105 = vcmp.eq.f32.partialorder %v104, 8.507059e+37
  %v106 = vand.u32 %v79, 2147483648
  %v107 = vor.u32 1.1754944e-38, %v106
  %v108 = vsel %vm105, %v107, %v103
  %v109 = vmul.f32 %v73, %v108
  %110 = vst.msk [vmem:[%s3] sm:$0xff] %vm61, %v94
  %111 = vst.msk [vmem:[%s3 + $0x8] sm:$0xff] %vm61, %v109
  // Predicated region
  $region14: #{transformer_forward.49} parent=0 // pred_check
    _
  $region15: #{transformer_forward.49} parent=0 // pred_check_branch
    %113 = sbr.rel (0) target = $region17
  $region16: #{transformer_forward.49} parent=0 // pred_region
    _
  $region17: #{transformer_forward.49} parent=0 // pred_fallthru
    _
  // Predicated region
  $region18: #{transformer_forward.49} parent=0 // pred_check
    _
  $region19: #{transformer_forward.49} parent=0 // pred_check_branch
    %115 = sbr.rel (0) target = $region21
  $region20: #{transformer_forward.49} parent=0 // pred_region
    _
  $region21: #{transformer_forward.49} parent=0 // pred_fallthru
    _

// kernel: transformer_forward.38
$region0: #{transformer_forward.38}
  #allocation0 [shape = 'u32[]', space=smem, size = 0x4, offset = 0x4, fixed_abs, tag = 'smem constant byte address 0x4 - core index']
  #allocation1 [shape = 'u32[72,128]{1,0:T(1,128)}', space=vmem, size = 0x9000, scoped, tag = 'internal scratch']
  #allocation2 [shape = 'f32[4,8,1]{2,1,0:T(8,128)}', space=vmem, size = 0x4000, scoped, tag = 'scratch operand']
  #allocation3 [shape = 'f32[4,8,1]{2,1,0:T(8,128)}', space=vmem, size = 0x4000, scoped, tag = 'scratch operand']
  #allocation4 [shape = 'f32[4,8,32]{2,1,0:T(8,128)}', space=vmem, size = 0x4000, scoped, tag = 'scratch operand']
  %s0 = inlined_call_operand.vmem [shape: bf16[2,8,128], index: 0, kind: input, shape index: {}]
  %s1 = inlined_call_operand.vmem [shape: bf16[2,8,256], index: 1, kind: input, shape index: {}, may-alias: {1,2}]
  %s2 = inlined_call_operand.vmem [shape: bf16[2,8,256], index: 2, kind: input, shape index: {}, may-alias: {1,2}]
  %s3 = inlined_call_operand.vmem [shape: bf16[2,8,128], index: 3, kind: output, shape index: {}]
  %s4 = sld [smem:[#allocation0]]
  $region53: #{transformer_forward.38} parent=0
    _
  %s6 = ssub.s32 1, %s4
  %s7 = scalar_select 0, %s6, %s4
  loop: start=0, step=1, limit=4
  $region2: #{transformer_forward.38} parent=0 // loop_pre_header
    _
  $region3: #{transformer_forward.38} parent=0 // loop_header
    %s9 = sphi 0, %s13
    %p10 = scmp.ge.s32.totalorder %s9, 4
    %s16 = sphi 0, %s35
    %s17 = sphi 0, %s31
    %s18 = sphi 0, %s27
    %s19 = sphi 0, %s16
    %s20 = sphi 0, %s17
    %s21 = sphi 0, %s18
    %s22 = sphi 0, %s19
    %s23 = sphi 0, %s20
    %s24 = sphi 0, %s21
    %s40 = sphi 0, %s42
    %s43 = sphi 0, %s40
    %s44 = sphi 0, %s43
    %s60 = sphi 0, %s44
    %s68 = sphi 0, %s70
    %s71 = sphi 0, %s68
    %s72 = sphi 0, %s71
    %s88 = sphi 0, %s72
    %s96 = sphi 0, %s98
    %s99 = sphi 0, %s96
    %s100 = sphi 0, %s99
    %s116 = sphi 0, %s100
    %s124 = sphi 0, %s126
    %s127 = sphi 0, %s124
    %s128 = sphi 0, %s127
    %s144 = sphi 0, %s128
  $region4: #{transformer_forward.38} parent=0 // loop_header_branch
    %12 = sbr.rel (%p10) target = $region8
  $region5: #{transformer_forward.38} parent=0 // loop_body
    %s14 = ssub.s32 %s9, 1
    %s15 = ssub.s32 %s9, 2
    %s25 = sadd.s32 1, %s18
    %p26 = scmp.ge.s32.totalorder %s25, 1
    %s27 = scalar_select %p26, 0, %s25
    %s28 = sadd.s32 1, %s17
    %s29 = scalar_select %p26, %s28, %s17
    %p30 = scmp.ge.s32.totalorder %s29, 1
    %s31 = scalar_select %p30, 0, %s29
    %s32 = sadd.s32 1, %s16
    %s33 = scalar_select %p30, %s32, %s16
    %p34 = scmp.ge.s32.totalorder %s33, 2
    %s35 = scalar_select %p34, 0, %s33
    %s36 = ssub.s32 %s16, %s35
    %s37 = ssub.s32 %s17, %s31
    %s38 = sor.u32 %s36, %s37
    %p39 = scmp.eq.s32.totalorder %s38, 0
    %s41 = sadd.s32 %s40, 1
    %s42 = scalar_select %p39, %s40, %s41
    %p45 = pneg %p39
    %p46 = scmp.eq.s32.totalorder %s9, 1
    %p47 = por %p45, %p46
    %p48 = scmp.ne.s32.totalorder %s40, %s43
    %p49 = scmp.eq.s32.totalorder %s9, 0
    %p50 = por %p48, %p49
    %p51 = scmp.ne.s32.totalorder %s40, %s43
    %p52 = scmp.eq.s32.totalorder %s14, 1
    %p53 = por %p51, %p52
    %p54 = scmp.ne.s32.totalorder %s43, %s44
    %p55 = scmp.eq.s32.totalorder %s14, 0
    %p56 = por %p54, %p55
    %p57 = scmp.ne.s32.totalorder %s43, %s44
    %p58 = scmp.eq.s32.totalorder %s15, 1
    %p59 = por %p57, %p58
    %p61 = scmp.ne.s32.totalorder %s44, %s60
    %p62 = scmp.eq.s32.totalorder %s15, 0
    %p63 = por %p61, %p62
    %s64 = ssub.s32 %s16, %s35
    %s65 = ssub.s32 %s18, %s27
    %s66 = sor.u32 %s64, %s65
    %p67 = scmp.eq.s32.totalorder %s66, 0
    %s69 = sadd.s32 %s68, 1
    %s70 = scalar_select %p67, %s68, %s69
    %p73 = pneg %p67
    %p74 = scmp.eq.s32.totalorder %s9, 1
    %p75 = por %p73, %p74
    %p76 = scmp.ne.s32.totalorder %s68, %s71
    %p77 = scmp.eq.s32.totalorder %s9, 0
    %p78 = por %p76, %p77
    %p79 = scmp.ne.s32.totalorder %s68, %s71
    %p80 = scmp.eq.s32.totalorder %s14, 1
    %p81 = por %p79, %p80
    %p82 = scmp.ne.s32.totalorder %s71, %s72
    %p83 = scmp.eq.s32.totalorder %s14, 0
    %p84 = por %p82, %p83
    %p85 = scmp.ne.s32.totalorder %s71, %s72
    %p86 = scmp.eq.s32.totalorder %s15, 1
    %p87 = por %p85, %p86
    %p89 = scmp.ne.s32.totalorder %s72, %s88
    %p90 = scmp.eq.s32.totalorder %s15, 0
    %p91 = por %p89, %p90
    %s92 = ssub.s32 %s16, %s35
    %s93 = ssub.s32 %s18, %s27
    %s94 = sor.u32 %s92, %s93
    %p95 = scmp.eq.s32.totalorder %s94, 0
    %s97 = sadd.s32 %s96, 1
    %s98 = scalar_select %p95, %s96, %s97
    %p101 = pneg %p95
    %p102 = scmp.eq.s32.totalorder %s9, 1
    %p103 = por %p101, %p102
    %p104 = scmp.ne.s32.totalorder %s96, %s99
    %p105 = scmp.eq.s32.totalorder %s9, 0
    %p106 = por %p104, %p105
    %p107 = scmp.ne.s32.totalorder %s96, %s99
    %p108 = scmp.eq.s32.totalorder %s14, 1
    %p109 = por %p107, %p108
    %p110 = scmp.ne.s32.totalorder %s99, %s100
    %p111 = scmp.eq.s32.totalorder %s14, 0
    %p112 = por %p110, %p111
    %p113 = scmp.ne.s32.totalorder %s99, %s100
    %p114 = scmp.eq.s32.totalorder %s15, 1
    %p115 = por %p113, %p114
    %p117 = scmp.ne.s32.totalorder %s100, %s116
    %p118 = scmp.eq.s32.totalorder %s15, 0
    %p119 = por %p117, %p118
    %s120 = ssub.s32 %s16, %s35
    %s121 = ssub.s32 %s17, %s31
    %s122 = sor.u32 %s120, %s121
    %p123 = scmp.eq.s32.totalorder %s122, 0
    %s125 = sadd.s32 %s124, 1
    %s126 = scalar_select %p123, %s124, %s125
    %p129 = pneg %p123
    %p130 = scmp.eq.s32.totalorder %s9, 1
    %p131 = por %p129, %p130
    %p132 = scmp.ne.s32.totalorder %s124, %s127
    %p133 = scmp.eq.s32.totalorder %s9, 0
    %p134 = por %p132, %p133
    %p135 = scmp.ne.s32.totalorder %s124, %s127
    %p136 = scmp.eq.s32.totalorder %s14, 1
    %p137 = por %p135, %p136
    %p138 = scmp.ne.s32.totalorder %s127, %s128
    %p139 = scmp.eq.s32.totalorder %s14, 0
    %p140 = por %p138, %p139
    %p141 = scmp.ne.s32.totalorder %s127, %s128
    %p142 = scmp.eq.s32.totalorder %s15, 1
    %p143 = por %p141, %p142
    %p145 = scmp.ne.s32.totalorder %s128, %s144
    %p146 = scmp.eq.s32.totalorder %s15, 0
    %p147 = por %p145, %p146
    %p148 = scmp.le.s32.totalorder 1, %s9
    %p149 = scmp.lt.s32.totalorder %s9, 3
    %p150 = pnand %p148, %p149
    %p151 = pneg %p150
    // Predicated region
    $region9: #{transformer_forward.38} parent=5 // pred_check
      _
    $region10: #{transformer_forward.38} parent=5 // pred_check_branch
      %153 = sbr.rel (%p150) target = $region12
    $region11: #{transformer_forward.38} parent=5 // pred_region
      %s154 = ssub.s32 %s9, 1
    $region12: #{transformer_forward.38} parent=5 // pred_fallthru
      _
    %p155 = scmp.lt.s32.totalorder %s9, 2
    // Predicated region
    $region13: #{transformer_forward.38} parent=5 // pred_check
      %p156 = pneg %p155
    $region14: #{transformer_forward.38} parent=5 // pred_check_branch
      %158 = sbr.rel (%p156) target = $region16
    $region15: #{transformer_forward.38} parent=5 // pred_region
      // Predicated region
      $region17: #{transformer_forward.38} parent=15 // pred_check
        %p159 = pneg %p50
      $region18: #{transformer_forward.38} parent=15 // pred_check_branch
        %161 = sbr.rel (%p159) target = $region20
      $region19: #{transformer_forward.38} parent=15 // pred_region
        %p162 = scmp.lt.s32.totalorder %s16, 1
        %s163 = scalar_select %p162, %s16, 1
        %p164 = scmp.lt.s32.totalorder %s17, 0
        %s165 = scalar_select %p164, %s17, 0
        %s166 = sadd.s32 %s165, %s163
        %s167 = smul.addr %s166, 4
        %s168 = scalar_lea.vmem %s0, %s167
      $region20: #{transformer_forward.38} parent=15 // pred_fallthru
        _
      // Predicated region
      $region21: #{transformer_forward.38} parent=15 // pred_check
        %p169 = pneg %p78
      $region22: #{transformer_forward.38} parent=15 // pred_check_branch
        %171 = sbr.rel (%p169) target = $region24
      $region23: #{transformer_forward.38} parent=15 // pred_region
        %p172 = scmp.lt.s32.totalorder %s16, 1
        %s173 = scalar_select %p172, %s16, 1
        %p174 = scmp.lt.s32.totalorder %s18, 0
        %s175 = scalar_select %p174, %s18, 0
        %s176 = smul.addr %s175, 2
        %s177 = smul.addr %s173, 2
        %s178 = sadd.s32 %s176, %s177
        %s179 = smul.addr %s178, 4
        %s180 = scalar_lea.vmem %s1, %s179
      $region24: #{transformer_forward.38} parent=15 // pred_fallthru
        _
      // Predicated region
      $region25: #{transformer_forward.38} parent=15 // pred_check
        %p181 = pneg %p106
      $region26: #{transformer_forward.38} parent=15 // pred_check_branch
        %183 = sbr.rel (%p181) target = $region28
      $region27: #{transformer_forward.38} parent=15 // pred_region
        %p184 = scmp.lt.s32.totalorder %s16, 1
        %s185 = scalar_select %p184, %s16, 1
        %p186 = scmp.lt.s32.totalorder %s18, 0
        %s187 = scalar_select %p186, %s18, 0
        %s188 = smul.addr %s187, 2
        %s189 = sadd.s32 1, %s188
        %s190 = smul.addr %s185, 2
        %s191 = sadd.s32 %s189, %s190
        %s192 = smul.addr %s191, 4
        %s193 = scalar_lea.vmem %s2, %s192
      $region28: #{transformer_forward.38} parent=15 // pred_fallthru
        _
    $region16: #{transformer_forward.38} parent=5 // pred_fallthru
      _
    %p194 = scmp.le.s32.totalorder 1, %s9
    %p195 = scmp.lt.s32.totalorder %s9, 3
    %p196 = pnand %p194, %p195
    %p197 = pneg %p196
    // Predicated region
    $region29: #{transformer_forward.38} parent=5 // pred_check
      _
    $region30: #{transformer_forward.38} parent=5 // pred_check_branch
      %199 = sbr.rel (%p196) target = $region32
    $region31: #{transformer_forward.38} parent=5 // pred_region
      %s200 = ssub.s32 %s9, 1
      %p201 = scmp.lt.s32.totalorder %s19, 1
      %s202 = scalar_select %p201, %s19, 1
      %p203 = scmp.lt.s32.totalorder %s20, 0
      %s204 = scalar_select %p203, %s20, 0
      %s205 = sadd.s32 %s204, %s202
      %s206 = smul.addr %s205, 4
      %s207 = scalar_lea.vmem %s0, %s206
      %p208 = pneg %p56
      %p209 = pneg %p53
      %p210 = scmp.lt.s32.totalorder %s19, 1
      %s211 = scalar_select %p210, %s19, 1
      %p212 = scmp.lt.s32.totalorder %s21, 0
      %s213 = scalar_select %p212, %s21, 0
      %s214 = smul.addr %s213, 2
      %s215 = smul.addr %s211, 2
      %s216 = sadd.s32 %s214, %s215
      %s217 = smul.addr %s216, 4
      %s218 = scalar_lea.vmem %s1, %s217
      %p219 = pneg %p84
      %p220 = pneg %p81
      %p221 = scmp.lt.s32.totalorder %s19, 1
      %s222 = scalar_select %p221, %s19, 1
      %p223 = scmp.lt.s32.totalorder %s21, 0
      %s224 = scalar_select %p223, %s21, 0
      %s225 = smul.addr %s224, 2
      %s226 = sadd.s32 1, %s225
      %s227 = smul.addr %s222, 2
      %s228 = sadd.s32 %s226, %s227
      %s229 = smul.addr %s228, 4
      %s230 = scalar_lea.vmem %s2, %s229
      %p231 = pneg %p112
      %p232 = pneg %p109
      %p233 = pneg %p140
      %p234 = pneg %p137
      %p235 = scmp.lt.s32.totalorder %s19, 1
      %s236 = scalar_select %p235, %s19, 1
      %p237 = scmp.lt.s32.totalorder %s20, 0
      %s238 = scalar_select %p237, %s20, 0
      %s239 = sadd.s32 %s238, %s236
      %s240 = smul.addr %s239, 4
      %s241 = scalar_lea.vmem %s3, %s240
      %p242 = scmp.lt.s32.totalorder %s19, 1
      %s243 = scalar_select %p242, %s19, 1
      %p244 = scmp.lt.s32.totalorder %s20, 0
      %s245 = scalar_select %p244, %s20, 0
      %s246 = sadd.s32 %s245, %s243
      %s247 = smul.addr %s246, 4
      %s248 = scalar_lea.vmem %s0, %s247
      %p249 = scmp.lt.s32.totalorder %s19, 1
      %s250 = scalar_select %p249, %s19, 1
      %p251 = scmp.lt.s32.totalorder %s21, 0
      %s252 = scalar_select %p251, %s21, 0
      %s253 = smul.addr %s252, 2
      %s254 = smul.addr %s250, 2
      %s255 = sadd.s32 %s253, %s254
      %s256 = smul.addr %s255, 4
      %s257 = scalar_lea.vmem %s1, %s256
      %p258 = scmp.lt.s32.totalorder %s19, 1
      %s259 = scalar_select %p258, %s19, 1
      %p260 = scmp.lt.s32.totalorder %s21, 0
      %s261 = scalar_select %p260, %s21, 0
      %s262 = smul.addr %s261, 2
      %s263 = sadd.s32 1, %s262
      %s264 = smul.addr %s259, 2
      %s265 = sadd.s32 %s263, %s264
      %s266 = smul.addr %s265, 4
      %s267 = scalar_lea.vmem %s2, %s266
      %p268 = scmp.lt.s32.totalorder %s19, 1
      %s269 = scalar_select %p268, %s19, 1
      %p270 = scmp.lt.s32.totalorder %s20, 0
      %s271 = scalar_select %p270, %s20, 0
      %s272 = sadd.s32 %s271, %s269
      %s273 = smul.addr %s272, 4
      %s274 = scalar_lea.vmem %s3, %s273
      %p276 = scmp.eq.s32.totalorder %s21, 0
      // Predicated region
      $region33: #{transformer_forward.38} parent=31 // pred_check
        %p277 = pneg %p276
      $region34: #{transformer_forward.38} parent=31 // pred_check_branch
        %279 = sbr.rel (%p277) target = $region36
      $region35: #{transformer_forward.38} parent=31 // pred_region
        %vm280 = vcmask 7168
        %281 = vst.msk [vmem:[#allocation2] sm:$0xff] %vm280, -inf
        %282 = vst.msk [vmem:[#allocation2 + $0x8] sm:$0xff] %vm280, -inf
        %283 = vst.msk [vmem:[#allocation2 + $0x10] sm:$0xff] %vm280, -inf
        %284 = vst.msk [vmem:[#allocation2 + $0x18] sm:$0xff] %vm280, -inf
        %285 = vst.msk [vmem:[#allocation3] sm:$0xff] %vm280, 0.0
        %286 = vst.msk [vmem:[#allocation3 + $0x8] sm:$0xff] %vm280, 0.0
        %287 = vst.msk [vmem:[#allocation3 + $0x10] sm:$0xff] %vm280, 0.0
        %288 = vst.msk [vmem:[#allocation3 + $0x18] sm:$0xff] %vm280, 0.0
        %vm289 = vcmask 261120
        %290 = vst.msk [vmem:[#allocation4] sm:$0xff] %vm289, 0.0
        %291 = vst.msk [vmem:[#allocation4 + $0x8] sm:$0xff] %vm289, 0.0
        %292 = vst.msk [vmem:[#allocation4 + $0x10] sm:$0xff] %vm289, 0.0
        %293 = vst.msk [vmem:[#allocation4 + $0x18] sm:$0xff] %vm289, 0.0
      $region36: #{transformer_forward.38} parent=31 // pred_fallthru
        _
      %v294 = vld [vmem:[%s248] sm:$0xf]
      %v295 = vld [vmem:[%s257] sm:$0xf]
      %v296 = vld [vmem:[%s267] sm:$0xf]
      %vm297 = vcmask 261120
      %v299 = vsel %vm297, %v294, 0
      %v302 = vsel %vm297, %v295, 0
      %304 = vmatpush.bf16.xpose.msra.mxu0 0
      %305 = vmatpush.bf16.xpose.msra.mxu0 0
      %306 = vmatpush.bf16.xpose.msra.mxu0 0
      %307 = vmatpush.bf16.xpose.msra.mxu0 0
      %308 = vmatpush.bf16.xpose.msra.mxu0 0
      %309 = vmatpush.bf16.xpose.msra.mxu0 0
      %310 = vmatpush.bf16.xpose.msra.mxu0 0
      %311 = vmatpush.bf16.xpose.msra.mxu0 %v302
      %312 = vmatmul.bf16.gmra.mxu0 %v299
      %v313 = vpop.f32.mrf.mxu0
      %v314 = vadd.f32 0.0, %v313
      %v315 = vpop.f32.mrf.mxu0
      %316 = vdwg.mxu0
      %v317 = vld [vmem:[#allocation2] sm:$0xff]
      %vm318 = vcmask 64512
      %v319 = vsel %vm318, %v314, -inf
      %320 = vmax.xlane.f32.xlu0 %v319
      %v321 = vpop.xlane.xlu0 %320
      %v322 = vmax.f32 %v317, %v321
      %v323 = vsub.f32 %v317, %v322
      %v324 = vmul.f32 %v323, 1.442695
      %v325 = vpow.pop %v324
      %327 = vset.pattern.permute.xlu0 0
      %328 = vperm.xlu0 %327, %v322
      %v329 = vpop.permute.xlu0 %328
      %v331 = vsub.f32 %v314, %v329
      %v332 = vmul.f32 %v331, 1.442695
      %v333 = vpow.pop %v332
      %v334 = vld [vmem:[#allocation3] sm:$0xff]
      %v335 = vmul.f32 %v325, %v334
      %v336 = vsel %vm318, %v333, 0.0
      %337 = vadd.xlane.f32.xlu0 %v336
      %v338 = vpop.xlane.xlu0 %337
      %v339 = vadd.f32 %v335, %v338
      %vm340 = vcmask 7168
      %341 = vst.msk [vmem:[#allocation3] sm:$0xff] %vm340, %v339
      %v342 = vld [vmem:[#allocation4] sm:$0xff]
      %344 = vset.pattern.permute.xlu0 0
      %345 = vperm.xlu0 %344, %v325
      %v346 = vpop.permute.xlu0 %345
      %v348 = vmul.f32 %v346, %v342
      %v349 = vpack.c.bf16 %v333, %v333
      %v351 = vsel %vm318, %v349, 0
      %vm353 = vcmask 1043456
      %v355 = vsel %vm353, %v296, 0
      %357 = vmatpush.bf16.msra.mxu0 0
      %358 = vmatpush.bf16.msra.mxu0 0
      %359 = vmatpush.bf16.msra.mxu0 0
      %360 = vmatpush.bf16.msra.mxu0 0
      %361 = vmatpush.bf16.msra.mxu0 0
      %362 = vmatpush.bf16.msra.mxu0 0
      %363 = vmatpush.bf16.msra.mxu0 0
      %364 = vmatpush.bf16.msra.mxu0 %v355
      %365 = vmatmul.bf16.gmra.mxu0 %v351
      %v366 = vpop.f32.mrf.mxu0
      %v367 = vadd.f32 0.0, %v366
      %v368 = vpop.f32.mrf.mxu0
      %369 = vdwg.mxu0
      %v370 = vadd.f32 %v348, %v367
      %371 = vst.msk [vmem:[#allocation4] sm:$0xff] %vm297, %v370
      %372 = vst.msk [vmem:[#allocation2] sm:$0xff] %vm340, %v322
      %v374 = vunpack.c.l.b16 %v294
      %v375 = vpack.c.b16 %v374, %v374
      %376 = vrot.lane.b32.xlu0 %v375, 96
      %v377 = vpop.permute.xlu0 %376
      %v379 = vunpack.c.l.b16 %v295
      %v380 = vpack.c.b16 %v379, %v379
      %381 = vrot.lane.b32.xlu0 %v380, 96
      %v382 = vpop.permute.xlu0 %381
      %v384 = vsel %vm297, %v377, 0
      %v387 = vsel %vm297, %v382, 0
      %389 = vmatpush.bf16.xpose.msra.mxu0 0
      %390 = vmatpush.bf16.xpose.msra.mxu0 0
      %391 = vmatpush.bf16.xpose.msra.mxu0 0
      %392 = vmatpush.bf16.xpose.msra.mxu0 0
      %393 = vmatpush.bf16.xpose.msra.mxu0 0
      %394 = vmatpush.bf16.xpose.msra.mxu0 0
      %395 = vmatpush.bf16.xpose.msra.mxu0 0
      %396 = vmatpush.bf16.xpose.msra.mxu0 %v387
      %397 = vmatmul.bf16.gmra.mxu0 %v384
      %v398 = vpop.f32.mrf.mxu0
      %v399 = vadd.f32 0.0, %v398
      %v400 = vpop.f32.mrf.mxu0
      %401 = vdwg.mxu0
      %s402 = scalar_lea.vmem [#allocation2], 8
      %v403 = vld [vmem:[%s402] sm:$0xff]
      %v404 = vsel %vm318, %v399, -inf
      %405 = vmax.xlane.f32.xlu0 %v404
      %v406 = vpop.xlane.xlu0 %405
      %v407 = vmax.f32 %v403, %v406
      %v408 = vsub.f32 %v403, %v407
      %v409 = vmul.f32 %v408, 1.442695
      %v410 = vpow.pop %v409
      %412 = vset.pattern.permute.xlu0 0
      %413 = vperm.xlu0 %412, %v407
      %v414 = vpop.permute.xlu0 %413
      %v416 = vsub.f32 %v399, %v414
      %v417 = vmul.f32 %v416, 1.442695
      %v418 = vpow.pop %v417
      %s419 = scalar_lea.vmem [#allocation3], 8
      %v420 = vld [vmem:[%s419] sm:$0xff]
      %v421 = vmul.f32 %v410, %v420
      %v422 = vsel %vm318, %v418, 0.0
      %423 = vadd.xlane.f32.xlu0 %v422
      %v424 = vpop.xlane.xlu0 %423
      %v425 = vadd.f32 %v421, %v424
      %426 = vst.msk [vmem:[%s419] sm:$0xff] %vm340, %v425
      %s427 = scalar_lea.vmem [#allocation4], 8
      %v428 = vld [vmem:[%s427] sm:$0xff]
      %430 = vset.pattern.permute.xlu0 0
      %431 = vperm.xlu0 %430, %v410
      %v432 = vpop.permute.xlu0 %431
      %v434 = vmul.f32 %v432, %v428
      %v435 = vpack.c.bf16 %v418, %v418
      %v437 = vunpack.c.l.b16 %v296
      %v438 = vpack.c.b16 %v437, %v437
      %439 = vrot.lane.b32.xlu0 %v438, 96
      %v440 = vpop.permute.xlu0 %439
      %v442 = vsel %vm318, %v435, 0
      %v445 = vsel %vm353, %v440, 0
      %447 = vmatpush.bf16.msra.mxu0 0
      %448 = vmatpush.bf16.msra.mxu0 0
      %449 = vmatpush.bf16.msra.mxu0 0
      %450 = vmatpush.bf16.msra.mxu0 0
      %451 = vmatpush.bf16.msra.mxu0 0
      %452 = vmatpush.bf16.msra.mxu0 0
      %453 = vmatpush.bf16.msra.mxu0 0
      %454 = vmatpush.bf16.msra.mxu0 %v445
      %455 = vmatmul.bf16.gmra.mxu0 %v442
      %v456 = vpop.f32.mrf.mxu0
      %v457 = vadd.f32 0.0, %v456
      %v458 = vpop.f32.mrf.mxu0
      %459 = vdwg.mxu0
      %v460 = vadd.f32 %v434, %v457
      %461 = vst.msk [vmem:[%s427] sm:$0xff] %vm297, %v460
      %462 = vst.msk [vmem:[%s402] sm:$0xff] %vm340, %v407
      %463 = vrot.lane.b32.xlu0 %v375, 64
      %v464 = vpop.permute.xlu0 %463
      %465 = vrot.lane.b32.xlu0 %v380, 64
      %v466 = vpop.permute.xlu0 %465
      %v468 = vsel %vm297, %v464, 0
      %v471 = vsel %vm297, %v466, 0
      %473 = vmatpush.bf16.xpose.msra.mxu0 0
      %474 = vmatpush.bf16.xpose.msra.mxu0 0
      %475 = vmatpush.bf16.xpose.msra.mxu0 0
      %476 = vmatpush.bf16.xpose.msra.mxu0 0
      %477 = vmatpush.bf16.xpose.msra.mxu0 0
      %478 = vmatpush.bf16.xpose.msra.mxu0 0
      %479 = vmatpush.bf16.xpose.msra.mxu0 0
      %480 = vmatpush.bf16.xpose.msra.mxu0 %v471
      %481 = vmatmul.bf16.gmra.mxu0 %v468
      %v482 = vpop.f32.mrf.mxu0
      %v483 = vadd.f32 0.0, %v482
      %v484 = vpop.f32.mrf.mxu0
      %485 = vdwg.mxu0
      %s486 = scalar_lea.vmem [#allocation2], 16
      %v487 = vld [vmem:[%s486] sm:$0xff]
      %v488 = vsel %vm318, %v483, -inf
      %489 = vmax.xlane.f32.xlu0 %v488
      %v490 = vpop.xlane.xlu0 %489
      %v491 = vmax.f32 %v487, %v490
      %v492 = vsub.f32 %v487, %v491
      %v493 = vmul.f32 %v492, 1.442695
      %v494 = vpow.pop %v493
      %496 = vset.pattern.permute.xlu0 0
      %497 = vperm.xlu0 %496, %v491
      %v498 = vpop.permute.xlu0 %497
      %v500 = vsub.f32 %v483, %v498
      %v501 = vmul.f32 %v500, 1.442695
      %v502 = vpow.pop %v501
      %s503 = scalar_lea.vmem [#allocation3], 16
      %v504 = vld [vmem:[%s503] sm:$0xff]
      %v505 = vmul.f32 %v494, %v504
      %v506 = vsel %vm318, %v502, 0.0
      %507 = vadd.xlane.f32.xlu0 %v506
      %v508 = vpop.xlane.xlu0 %507
      %v509 = vadd.f32 %v505, %v508
      %510 = vst.msk [vmem:[%s503] sm:$0xff] %vm340, %v509
      %s511 = scalar_lea.vmem [#allocation4], 16
      %v512 = vld [vmem:[%s511] sm:$0xff]
      %514 = vset.pattern.permute.xlu0 0
      %515 = vperm.xlu0 %514, %v494
      %v516 = vpop.permute.xlu0 %515
      %v518 = vmul.f32 %v516, %v512
      %v519 = vpack.c.bf16 %v502, %v502
      %520 = vrot.lane.b32.xlu0 %v438, 64
      %v521 = vpop.permute.xlu0 %520
      %v523 = vsel %vm318, %v519, 0
      %v526 = vsel %vm353, %v521, 0
      %528 = vmatpush.bf16.msra.mxu0 0
      %529 = vmatpush.bf16.msra.mxu0 0
      %530 = vmatpush.bf16.msra.mxu0 0
      %531 = vmatpush.bf16.msra.mxu0 0
      %532 = vmatpush.bf16.msra.mxu0 0
      %533 = vmatpush.bf16.msra.mxu0 0
      %534 = vmatpush.bf16.msra.mxu0 0
      %535 = vmatpush.bf16.msra.mxu0 %v526
      %536 = vmatmul.bf16.gmra.mxu0 %v523
      %v537 = vpop.f32.mrf.mxu0
      %v538 = vadd.f32 0.0, %v537
      %v539 = vpop.f32.mrf.mxu0
      %540 = vdwg.mxu0
      %v541 = vadd.f32 %v518, %v538
      %542 = vst.msk [vmem:[%s511] sm:$0xff] %vm297, %v541
      %543 = vst.msk [vmem:[%s486] sm:$0xff] %vm340, %v491
      %544 = vrot.lane.b32.xlu0 %v375, 32
      %v545 = vpop.permute.xlu0 %544
      %546 = vrot.lane.b32.xlu0 %v380, 32
      %v547 = vpop.permute.xlu0 %546
      %v549 = vsel %vm297, %v545, 0
      %v552 = vsel %vm297, %v547, 0
      %554 = vmatpush.bf16.xpose.msra.mxu0 0
      %555 = vmatpush.bf16.xpose.msra.mxu0 0
      %556 = vmatpush.bf16.xpose.msra.mxu0 0
      %557 = vmatpush.bf16.xpose.msra.mxu0 0
      %558 = vmatpush.bf16.xpose.msra.mxu0 0
      %559 = vmatpush.bf16.xpose.msra.mxu0 0
      %560 = vmatpush.bf16.xpose.msra.mxu0 0
      %561 = vmatpush.bf16.xpose.msra.mxu0 %v552
      %562 = vmatmul.bf16.gmra.mxu0 %v549
      %v563 = vpop.f32.mrf.mxu0
      %v564 = vadd.f32 0.0, %v563
      %v565 = vpop.f32.mrf.mxu0
      %566 = vdwg.mxu0
      %s567 = scalar_lea.vmem [#allocation2], 24
      %v568 = vld [vmem:[%s567] sm:$0xff]
      %v569 = vsel %vm318, %v564, -inf
      %570 = vmax.xlane.f32.xlu0 %v569
      %v571 = vpop.xlane.xlu0 %570
      %v572 = vmax.f32 %v568, %v571
      %v573 = vsub.f32 %v568, %v572
      %v574 = vmul.f32 %v573, 1.442695
      %v575 = vpow.pop %v574
      %577 = vset.pattern.permute.xlu0 0
      %578 = vperm.xlu0 %577, %v572
      %v579 = vpop.permute.xlu0 %578
      %v581 = vsub.f32 %v564, %v579
      %v582 = vmul.f32 %v581, 1.442695
      %v583 = vpow.pop %v582
      %s584 = scalar_lea.vmem [#allocation3], 24
      %v585 = vld [vmem:[%s584] sm:$0xff]
      %v586 = vmul.f32 %v575, %v585
      %v587 = vsel %vm318, %v583, 0.0
      %588 = vadd.xlane.f32.xlu0 %v587
      %v589 = vpop.xlane.xlu0 %588
      %v590 = vadd.f32 %v586, %v589
      %591 = vst.msk [vmem:[%s584] sm:$0xff] %vm340, %v590
      %s592 = scalar_lea.vmem [#allocation4], 24
      %v593 = vld [vmem:[%s592] sm:$0xff]
      %595 = vset.pattern.permute.xlu0 0
      %596 = vperm.xlu0 %595, %v575
      %v597 = vpop.permute.xlu0 %596
      %v599 = vmul.f32 %v597, %v593
      %v600 = vpack.c.bf16 %v583, %v583
      %601 = vrot.lane.b32.xlu0 %v438, 32
      %v602 = vpop.permute.xlu0 %601
      %v604 = vsel %vm318, %v600, 0
      %v607 = vsel %vm353, %v602, 0
      %609 = vmatpush.bf16.msra.mxu0 0
      %610 = vmatpush.bf16.msra.mxu0 0
      %611 = vmatpush.bf16.msra.mxu0 0
      %612 = vmatpush.bf16.msra.mxu0 0
      %613 = vmatpush.bf16.msra.mxu0 0
      %614 = vmatpush.bf16.msra.mxu0 0
      %615 = vmatpush.bf16.msra.mxu0 0
      %616 = vmatpush.bf16.msra.mxu0 %v607
      %617 = vmatmul.bf16.gmra.mxu0 %v604
      %v618 = vpop.f32.mrf.mxu0
      %v619 = vadd.f32 0.0, %v618
      %v620 = vpop.f32.mrf.mxu0
      %621 = vdwg.mxu0
      %v622 = vadd.f32 %v599, %v619
      %623 = vst.msk [vmem:[%s592] sm:$0xff] %vm297, %v622
      %624 = vst.msk [vmem:[%s567] sm:$0xff] %vm340, %v572
      // Predicated region
      $region37: #{transformer_forward.38} parent=31 // pred_check
        %p625 = pneg %p276
      $region38: #{transformer_forward.38} parent=31 // pred_check_branch
        %627 = sbr.rel (%p625) target = $region40
      $region39: #{transformer_forward.38} parent=31 // pred_region
        %v628 = vld [vmem:[#allocation3] sm:$0xff]
        %v629 = vrcp.pop %v628
        %v630 = vld [vmem:[#allocation4] sm:$0xff]
        %632 = vset.pattern.permute.xlu0 0
        %633 = vperm.xlu0 %632, %v629
        %v634 = vpop.permute.xlu0 %633
        %v636 = vmul.f32 %v630, %v634
        %v637 = vpack.c.bf16 %v636, %v636
        %vm638 = vcmask 257024
        %639 = vst.msk [vmem:[%s274] sm:$0xf] %vm638, %v637
        %v640 = vld [vmem:[%s419] sm:$0xff]
        %v641 = vrcp.pop %v640
        %v642 = vld [vmem:[%s427] sm:$0xff]
        %644 = vset.pattern.permute.xlu0 0
        %645 = vperm.xlu0 %644, %v641
        %v646 = vpop.permute.xlu0 %645
        %v648 = vmul.f32 %v642, %v646
        %v649 = vpack.c.bf16 %v648, %v648
        %651 = vrot.lane.b32.xlu0 %v649, 32
        %v652 = vpop.permute.xlu0 %651
        %vm654 = vcmask 519424
        %655 = vst.msk [vmem:[%s274] sm:$0xf] %vm654, %v652
        %v656 = vld [vmem:[%s503] sm:$0xff]
        %v657 = vrcp.pop %v656
        %v658 = vld [vmem:[%s511] sm:$0xff]
        %660 = vset.pattern.permute.xlu0 0
        %661 = vperm.xlu0 %660, %v657
        %v662 = vpop.permute.xlu0 %661
        %v664 = vmul.f32 %v658, %v662
        %v665 = vpack.c.bf16 %v664, %v664
        %667 = vrot.lane.b32.xlu0 %v665, 64
        %v668 = vpop.permute.xlu0 %667
        %vm670 = vcmask 781824
        %671 = vst.msk [vmem:[%s274] sm:$0xf] %vm670, %v668
        %v672 = vld [vmem:[%s584] sm:$0xff]
        %v673 = vrcp.pop %v672
        %v674 = vld [vmem:[%s592] sm:$0xff]
        %676 = vset.pattern.permute.xlu0 0
        %677 = vperm.xlu0 %676, %v673
        %v678 = vpop.permute.xlu0 %677
        %v680 = vmul.f32 %v674, %v678
        %v681 = vpack.c.bf16 %v680, %v680
        %683 = vrot.lane.b32.xlu0 %v681, 96
        %v684 = vpop.permute.xlu0 %683
        %vm686 = vcmask 1044224
        %687 = vst.msk [vmem:[%s274] sm:$0xf] %vm686, %v684
      $region40: #{transformer_forward.38} parent=31 // pred_fallthru
        _
      %p688 = scmp.lt.s32.totalorder %s19, 1
      %s689 = scalar_select %p688, %s19, 1
      %p690 = scmp.lt.s32.totalorder %s20, 0
      %s691 = scalar_select %p690, %s20, 0
      %s692 = sadd.s32 %s691, %s689
      %s693 = smul.addr %s692, 4
      %s694 = scalar_lea.vmem %s3, %s693
      // Predicated region
      $region41: #{transformer_forward.38} parent=31 // pred_check
        %p695 = pneg %p137
      $region42: #{transformer_forward.38} parent=31 // pred_check_branch
        %697 = sbr.rel (%p695) target = $region44
      $region43: #{transformer_forward.38} parent=31 // pred_region
        _
      $region44: #{transformer_forward.38} parent=31 // pred_fallthru
        _
    $region32: #{transformer_forward.38} parent=5 // pred_fallthru
      _
    %p698 = scmp.le.s32.totalorder 2, %s9
    // Predicated region
    $region45: #{transformer_forward.38} parent=5 // pred_check
      %p699 = pneg %p698
    $region46: #{transformer_forward.38} parent=5 // pred_check_branch
      %701 = sbr.rel (%p699) target = $region48
    $region47: #{transformer_forward.38} parent=5 // pred_region
      %s702 = ssub.s32 %s9, 2
      // Predicated region
      $region49: #{transformer_forward.38} parent=47 // pred_check
        %p703 = pneg %p143
      $region50: #{transformer_forward.38} parent=47 // pred_check_branch
        %705 = sbr.rel (%p703) target = $region52
      $region51: #{transformer_forward.38} parent=47 // pred_region
        %p706 = scmp.lt.s32.totalorder %s22, 1
        %s707 = scalar_select %p706, %s22, 1
        %p708 = scmp.lt.s32.totalorder %s23, 0
        %s709 = scalar_select %p708, %s23, 0
        %s710 = sadd.s32 %s709, %s707
        %s711 = smul.addr %s710, 4
        %s712 = scalar_lea.vmem %s3, %s711
      $region52: #{transformer_forward.38} parent=47 // pred_fallthru
        _
    $region48: #{transformer_forward.38} parent=5 // pred_fallthru
      _
  $region6: #{transformer_forward.38} parent=0 // loop_footer
    %s13 = sadd.s32 1, %s9
  $region7: #{transformer_forward.38} parent=0 // loop_footer_branch
    %8 = sbr.rel target = $region3
  $region8: #{transformer_forward.38} parent=0 // loop_exit
    _

// kernel: transformer_forward.41
$region0: #{transformer_forward.41}
  #allocation0 [shape = 'u32[]', space=smem, size = 0x4, offset = 0x4, fixed_abs, tag = 'smem constant byte address 0x4 - core index']
  #allocation1 [shape = 'u32[72,128]{1,0:T(1,128)}', space=vmem, size = 0x9000, scoped, tag = 'internal scratch']
  #allocation2 [shape = 'f32[16,384]{1,0:T(8,128)}', space=vmem, size = 0x6000, scoped, tag = 'scratch operand']
  %s0 = inlined_call_operand.vmem [shape: bf16[16,128], index: 0, kind: input, shape index: {}]
  %s1 = inlined_call_operand.hbm [shape: bf16[128,384], index: 1, kind: input, shape index: {}]
  %s2 = inlined_call_operand.vmem [shape: f32[1,384], index: 2, kind: input, shape index: {}]
  %s3 = inlined_call_operand.vmem [shape: bf16[16,384], index: 3, kind: output, shape index: {}]
  %s4 = sld [smem:[#allocation0]]
  $region34: #{transformer_forward.41} parent=0
    _
  %s6 = ssub.s32 1, %s4
  %s7 = scalar_select 0, %s6, %s4
  $region1: #{transformer_forward.41} parent=0
    #allocation3 [shape = 'u8[98304]{0}', space=vmem, size = 0x18000, scoped, tag = 'input window, operand 1, single buffered']
    #allocation4 [shape = 's32[1]{0}', space=sflag, size = 0x4, scoped, tag = 'scoped memory for transformer_forward.41']
    %8 = vsyncpa [#allocation4], 0
    // Predicated region
    $region2: #{transformer_forward.41} parent=1 // pred_check
      _
    $region3: #{transformer_forward.41} parent=1 // pred_check_branch
      %10 = sbr.rel (0) target = $region5
    $region4: #{transformer_forward.41} parent=1 // pred_region
      _
    $region5: #{transformer_forward.41} parent=1 // pred_fallthru
      _
    // Predicated region
    $region6: #{transformer_forward.41} parent=1 // pred_check
      _
    $region7: #{transformer_forward.41} parent=1 // pred_check_branch
      %12 = sbr.rel (0) target = $region9
    $region8: #{transformer_forward.41} parent=1 // pred_region
      %14 = vsyncadd [#allocation4], 0
      %s15 = sshll.u32 %s1, 4
      %s16 = int_to_ptr.hbm [resolvable:$true] %s15
      %s17 = sshll.u32 [#allocation3], 4
      %s18 = int_to_ptr.vmem [resolvable:$true] %s17
      %23 = dma.hbm_to_vmem [thread:$0]  %s16, 3072, %s18, [#allocation4], 192, 192, 12
    $region9: #{transformer_forward.41} parent=1 // pred_fallthru
      _
    // Predicated region
    $region10: #{transformer_forward.41} parent=1 // pred_check
      _
    $region11: #{transformer_forward.41} parent=1 // pred_check_branch
      %25 = sbr.rel (0) target = $region13
    $region12: #{transformer_forward.41} parent=1 // pred_region
      _
    $region13: #{transformer_forward.41} parent=1 // pred_fallthru
      _
    // Predicated region
    $region14: #{transformer_forward.41} parent=1 // pred_check
      _
    $region15: #{transformer_forward.41} parent=1 // pred_check_branch
      %27 = sbr.rel (0) target = $region17
    $region16: #{transformer_forward.41} parent=1 // pred_region
      %29 = dma.done [#allocation4], 3072
    $region17: #{transformer_forward.41} parent=1 // pred_fallthru
      _
    %p30 = scmp.eq.s32.totalorder 0, 0
    // Predicated region
    $region18: #{transformer_forward.41} parent=1 // pred_check
      %p31 = pneg %p30
    $region19: #{transformer_forward.41} parent=1 // pred_check_branch
      %33 = sbr.rel (%p31) target = $region21
    $region20: #{transformer_forward.41} parent=1 // pred_region
      %34 = vst [vmem:[#allocation2] sm:$0xff] 0.0
      %35 = vst [vmem:[#allocation2 + $0x8] sm:$0xff] 0.0
      %36 = vst [vmem:[#allocation2 + $0x10] sm:$0xff] 0.0
      %37 = vst [vmem:[#allocation2 + $0x18] sm:$0xff] 0.0
      %38 = vst [vmem:[#allocation2 + $0x20] sm:$0xff] 0.0
      %39 = vst [vmem:[#allocation2 + $0x28] sm:$0xff] 0.0
    $region21: #{transformer_forward.41} parent=1 // pred_fallthru
      _
    %v40 = vld [vmem:[#allocation2] sm:$0xff]
    %v41 = vld [vmem:[#allocation2 + $0x8] sm:$0xff]
    %v42 = vld [vmem:[#allocation2 + $0x10] sm:$0xff]
    %v43 = vld [vmem:[#allocation2 + $0x18] sm:$0xff]
    %v44 = vld [vmem:[#allocation2 + $0x20] sm:$0xff]
    %v45 = vld [vmem:[#allocation2 + $0x28] sm:$0xff]
    %v46 = vld [vmem:[%s0] sm:$0xf]
    %v47 = vld [vmem:[%s0 + $0x4] sm:$0xf]
    %v48 = vld [vmem:[#allocation3] sm:$0xff]
    %v49 = vld [vmem:[#allocation3 + $0x8] sm:$0xf]
    %v50 = vld [vmem:[#allocation3 + $0xc] sm:$0xff]
    %v51 = vld [vmem:[#allocation3 + $0x14] sm:$0xf]
    %v52 = vld [vmem:[#allocation3 + $0x18] sm:$0xff]
    %v53 = vld [vmem:[#allocation3 + $0x20] sm:$0xf]
    %v54 = vld [vmem:[#allocation3 + $0x24] sm:$0xff]
    %v55 = vld [vmem:[#allocation3 + $0x2c] sm:$0xf]
    %v56 = vld [vmem:[#allocation3 + $0x30] sm:$0xff]
    %v57 = vld [vmem:[#allocation3 + $0x38] sm:$0xf]
    %v58 = vld [vmem:[#allocation3 + $0x3c] sm:$0xff]
    %v59 = vld [vmem:[#allocation3 + $0x44] sm:$0xf]
    %v60 = vld [vmem:[#allocation3 + $0x48] sm:$0xff]
    %v61 = vld [vmem:[#allocation3 + $0x50] sm:$0xf]
    %v62 = vld [vmem:[#allocation3 + $0x54] sm:$0xff]
    %v63 = vld [vmem:[#allocation3 + $0x5c] sm:$0xf]
    %v64 = vld [vmem:[#allocation3 + $0x60] sm:$0xff]
    %v65 = vld [vmem:[#allocation3 + $0x68] sm:$0xf]
    %v66 = vld [vmem:[#allocation3 + $0x6c] sm:$0xff]
    %v67 = vld [vmem:[#allocation3 + $0x74] sm:$0xf]
    %v68 = vld [vmem:[#allocation3 + $0x78] sm:$0xff]
    %v69 = vld [vmem:[#allocation3 + $0x80] sm:$0xf]
    %v70 = vld [vmem:[#allocation3 + $0x84] sm:$0xff]
    %v71 = vld [vmem:[#allocation3 + $0x8c] sm:$0xf]
    %v72 = vld [vmem:[#allocation3 + $0x90] sm:$0xff]
    %v73 = vld [vmem:[#allocation3 + $0x98] sm:$0xf]
    %v74 = vld [vmem:[#allocation3 + $0x9c] sm:$0xff]
    %v75 = vld [vmem:[#allocation3 + $0xa4] sm:$0xf]
    %v76 = vld [vmem:[#allocation3 + $0xa8] sm:$0xff]
    %v77 = vld [vmem:[#allocation3 + $0xb0] sm:$0xf]
    %v78 = vld [vmem:[#allocation3 + $0xb4] sm:$0xff]
    %v79 = vld [vmem:[#allocation3 + $0xbc] sm:$0xf]
    %v82 = vunpack.c.l.b16 %v46
    %v83 = vunpack.c.l.b16 %v47
    %v84 = vpack.c.b16 %v83, %v82
    %v118 = vunpack.c.l.b16 %v48
    %v119 = vunpack.c.h.b16 %v48
    %v120 = vunpack.c.l.b16 %v49
    %v121 = vunpack.c.l.b16 %v50
    %v122 = vunpack.c.h.b16 %v50
    %v123 = vunpack.c.l.b16 %v51
    %v124 = vunpack.c.l.b16 %v52
    %v125 = vunpack.c.h.b16 %v52
    %v126 = vunpack.c.l.b16 %v53
    %v127 = vunpack.c.l.b16 %v54
    %v128 = vunpack.c.h.b16 %v54
    %v129 = vunpack.c.l.b16 %v55
    %v130 = vunpack.c.l.b16 %v56
    %v131 = vunpack.c.h.b16 %v56
    %v132 = vunpack.c.l.b16 %v57
    %v133 = vunpack.c.l.b16 %v58
    %v134 = vunpack.c.h.b16 %v58
    %v135 = vunpack.c.l.b16 %v59
    %v136 = vunpack.c.l.b16 %v60
    %v137 = vunpack.c.h.b16 %v60
    %v138 = vunpack.c.l.b16 %v61
    %v139 = vunpack.c.l.b16 %v62
    %v140 = vunpack.c.h.b16 %v62
    %v141 = vunpack.c.l.b16 %v63
    %v142 = vunpack.c.l.b16 %v64
    %v143 = vunpack.c.h.b16 %v64
    %v144 = vunpack.c.l.b16 %v65
    %v145 = vunpack.c.l.b16 %v66
    %v146 = vunpack.c.h.b16 %v66
    %v147 = vunpack.c.l.b16 %v67
    %v148 = vunpack.c.l.b16 %v68
    %v149 = vunpack.c.h.b16 %v68
    %v150 = vunpack.c.l.b16 %v69
    %v151 = vunpack.c.l.b16 %v70
    %v152 = vunpack.c.h.b16 %v70
    %v153 = vunpack.c.l.b16 %v71
    %v154 = vunpack.c.l.b16 %v72
    %v155 = vunpack.c.h.b16 %v72
    %v156 = vunpack.c.l.b16 %v73
    %v157 = vunpack.c.l.b16 %v74
    %v158 = vunpack.c.h.b16 %v74
    %v159 = vunpack.c.l.b16 %v75
    %v160 = vunpack.c.l.b16 %v76
    %v161 = vunpack.c.h.b16 %v76
    %v162 = vunpack.c.l.b16 %v77
    %v163 = vunpack.c.l.b16 %v78
    %v164 = vunpack.c.h.b16 %v78
    %v165 = vunpack.c.l.b16 %v79
    %v166 = vpack.c.b16 %v121, %v118
    %v167 = vpack.c.b16 %v122, %v119
    %v168 = vpack.c.b16 %v123, %v120
    %v169 = vpack.c.b16 %v127, %v124
    %v170 = vpack.c.b16 %v128, %v125
    %v171 = vpack.c.b16 %v129, %v126
    %v172 = vpack.c.b16 %v133, %v130
    %v173 = vpack.c.b16 %v134, %v131
    %v174 = vpack.c.b16 %v135, %v132
    %v175 = vpack.c.b16 %v139, %v136
    %v176 = vpack.c.b16 %v140, %v137
    %v177 = vpack.c.b16 %v141, %v138
    %v178 = vpack.c.b16 %v145, %v142
    %v179 = vpack.c.b16 %v146, %v143
    %v180 = vpack.c.b16 %v147, %v144
    %v181 = vpack.c.b16 %v151, %v148
    %v182 = vpack.c.b16 %v152, %v149
    %v183 = vpack.c.b16 %v153, %v150
    %v184 = vpack.c.b16 %v157, %v154
    %v185 = vpack.c.b16 %v158, %v155
    %v186 = vpack.c.b16 %v159, %v156
    %v187 = vpack.c.b16 %v163, %v160
    %v188 = vpack.c.b16 %v164, %v161
    %v189 = vpack.c.b16 %v165, %v162
    %214 = vmatpush.bf16.msra.mxu0 %v187
    %215 = vmatpush.bf16.msra.mxu0 %v184
    %216 = vmatpush.bf16.msra.mxu0 %v181
    %217 = vmatpush.bf16.msra.mxu0 %v178
    %218 = vmatpush.bf16.msra.mxu0 %v175
    %219 = vmatpush.bf16.msra.mxu0 %v172
    %220 = vmatpush.bf16.msra.mxu0 %v169
    %221 = vmatpush.bf16.msra.mxu0 %v166
    %222 = vmatmul.bf16.gmra.mxu0 %v84
    %v223 = vpop.f32.mrf.mxu0
    %v224 = vadd.f32 0.0, %v223
    %v225 = vpop.f32.mrf.mxu0
    %v226 = vadd.f32 0.0, %v225
    %227 = vdwg.mxu0
    %228 = vmatpush.bf16.msra.mxu0 %v188
    %229 = vmatpush.bf16.msra.mxu0 %v185
    %230 = vmatpush.bf16.msra.mxu0 %v182
    %231 = vmatpush.bf16.msra.mxu0 %v179
    %232 = vmatpush.bf16.msra.mxu0 %v176
    %233 = vmatpush.bf16.msra.mxu0 %v173
    %234 = vmatpush.bf16.msra.mxu0 %v170
    %235 = vmatpush.bf16.msra.mxu0 %v167
    %236 = vmatmul.bf16.gmra.mxu0 %v84
    %v237 = vpop.f32.mrf.mxu0
    %v238 = vadd.f32 0.0, %v237
    %v239 = vpop.f32.mrf.mxu0
    %v240 = vadd.f32 0.0, %v239
    %241 = vdwg.mxu0
    %242 = vmatpush.bf16.msra.mxu0 %v189
    %243 = vmatpush.bf16.msra.mxu0 %v186
    %244 = vmatpush.bf16.msra.mxu0 %v183
    %245 = vmatpush.bf16.msra.mxu0 %v180
    %246 = vmatpush.bf16.msra.mxu0 %v177
    %247 = vmatpush.bf16.msra.mxu0 %v174
    %248 = vmatpush.bf16.msra.mxu0 %v171
    %249 = vmatpush.bf16.msra.mxu0 %v168
    %250 = vmatmul.bf16.gmra.mxu0 %v84
    %v251 = vpop.f32.mrf.mxu0
    %v252 = vadd.f32 0.0, %v251
    %v253 = vpop.f32.mrf.mxu0
    %v254 = vadd.f32 0.0, %v253
    %255 = vdwg.mxu0
    %v256 = vadd.f32 %v40, %v224
    %v257 = vadd.f32 %v41, %v238
    %v258 = vadd.f32 %v42, %v252
    %v259 = vadd.f32 %v43, %v226
    %v260 = vadd.f32 %v44, %v240
    %v261 = vadd.f32 %v45, %v254
    %262 = vst [vmem:[#allocation2] sm:$0xff] %v256
    %263 = vst [vmem:[#allocation2 + $0x8] sm:$0xff] %v257
    %264 = vst [vmem:[#allocation2 + $0x10] sm:$0xff] %v258
    %265 = vst [vmem:[#allocation2 + $0x18] sm:$0xff] %v259
    %266 = vst [vmem:[#allocation2 + $0x20] sm:$0xff] %v260
    %267 = vst [vmem:[#allocation2 + $0x28] sm:$0xff] %v261
    // Predicated region
    $region22: #{transformer_forward.41} parent=1 // pred_check
      %p268 = pneg %p30
    $region23: #{transformer_forward.41} parent=1 // pred_check_branch
      %270 = sbr.rel (%p268) target = $region25
    $region24: #{transformer_forward.41} parent=1 // pred_region
      %v271 = vld [vmem:[#allocation2] sm:$0xff]
      %v272 = vld [vmem:[#allocation2 + $0x8] sm:$0xff]
      %v273 = vld [vmem:[#allocation2 + $0x10] sm:$0xff]
      %v274 = vld [vmem:[#allocation2 + $0x18] sm:$0xff]
      %v275 = vld [vmem:[#allocation2 + $0x20] sm:$0xff]
      %v276 = vld [vmem:[#allocation2 + $0x28] sm:$0xff]
      %v277 = vld [vmem:[%s2] sm:$0x7]
      %v279 = vperm.slane %v277, 0
      %v280 = vperm.slane %v277, 1
      %v281 = vperm.slane %v277, 2
      %v285 = vadd.f32 %v271, %v279
      %v286 = vadd.f32 %v272, %v280
      %v287 = vadd.f32 %v273, %v281
      %v288 = vadd.f32 %v274, %v279
      %v289 = vadd.f32 %v275, %v280
      %v290 = vadd.f32 %v276, %v281
      %v291 = vpack.c.bf16 %v286, %v285
      %v292 = vpack.c.bf16 %v287, %v287
      %v293 = vpack.c.bf16 %v289, %v288
      %v294 = vpack.c.bf16 %v290, %v290
      %295 = vst [vmem:[%s3] sm:$0xff] %v291
      %296 = vst [vmem:[%s3 + $0x8] sm:$0xf] %v292
      %297 = vst [vmem:[%s3 + $0xc] sm:$0xff] %v293
      %298 = vst [vmem:[%s3 + $0x14] sm:$0xf] %v294
    $region25: #{transformer_forward.41} parent=1 // pred_fallthru
      _
    // Predicated region
    $region26: #{transformer_forward.41} parent=1 // pred_check
      _
    $region27: #{transformer_forward.41} parent=1 // pred_check_branch
      %300 = sbr.rel (0) target = $region29
    $region28: #{transformer_forward.41} parent=1 // pred_region
      _
    $region29: #{transformer_forward.41} parent=1 // pred_fallthru
      _
    // Predicated region
    $region30: #{transformer_forward.41} parent=1 // pred_check
      _
    $region31: #{transformer_forward.41} parent=1 // pred_check_branch
      %302 = sbr.rel (0) target = $region33
    $region32: #{transformer_forward.41} parent=1 // pred_region
      _
    $region33: #{transformer_forward.41} parent=1 // pred_fallthru
      _
    %303 = vsyncpa [#allocation4], 1

</llo_original>
